<compile_context>
chip_gen: v7x
topology: tpu7x:2x2x1
jax: 0.10.0
libtpu: 0.0.40
codegen_flags: <defaults>
</compile_context>

<pallas_src>
import math
import functools

import jax
import jax.numpy as jnp
from jax.experimental import pallas as pl
from jax.experimental.pallas import tpu as pltpu

# ----------------------- config (small, ESM2-style) -----------------------
VOCAB = 33          # ESM alphabet size
PAD_IDX = 1         # alphabet.padding_idx
B, S = 2, 8         # batch, sequence length
D = 32              # embed_dim
H = 4               # attention heads
DH = D // H         # head dim
FFN = 64            # ffn hidden
L = 2               # num_layers
POOL_MODE = 2       # module default
MAX_LENGTH = 16     # for pool_mode == 3 positional table


# ------------------------------ kernel helpers ------------------------------

def _ln(x, g, b):
    mu = jnp.mean(x, axis=-1, keepdims=True)
    var = jnp.mean((x - mu) * (x - mu), axis=-1, keepdims=True)
    return (x - mu) * jax.lax.rsqrt(var + 1e-5) * g + b


def _mxu(a, b):
    # bf16 operands, f32 accumulation (v6e/v7x MXU is bf16-native).
    return jnp.dot(a.astype(jnp.bfloat16), b.astype(jnp.bfloat16),
                   preferred_element_type=jnp.float32)


# ------------------------------ fused kernel --------------------------------

def _esm2_fused_kernel(tok_ref, embed_ref, ln1g_ref, ln1b_ref, wqkv_ref,
                       bqkv_ref, wo_ref, bo_ref, ln2g_ref, ln2b_ref,
                       w1_ref, b1_ref, w2_ref, b2_ref, lnfg_ref, lnfb_ref,
                       *rest, num_heads, num_layers, pool_mode):
    """Embedding + L pre-LN encoder layers + final LN + pooling, all in VMEM."""
    if pool_mode == 3:
        pe_ref, o_ref = rest
    else:
        (o_ref,) = rest

    b, s = tok_ref.shape
    vocab, d = embed_ref.shape
    n = b * s
    dh = d // num_heads
    scale = 1.0 / math.sqrt(dh)

    tok = tok_ref[...]                                              # (B,S) int32

    # --- fused embedding lookup as a one-hot matmul (pad row of table is 0) ---
    oneh = (tok[:, :, None] ==
            jax.lax.broadcasted_iota(jnp.int32, (b, s, vocab), 2))
    oneh = oneh.astype(jnp.float32).reshape(n, vocab)               # (n, VOCAB)
    x = _mxu(oneh, embed_ref[...])                                  # (n, D) f32

    # --- key-padding additive bias, built ONCE for all layers & heads ---
    padf = (tok != PAD_IDX).astype(jnp.float32)                     # (B,S)
    neg = jnp.where(tok == PAD_IDX, -1e9, 0.0)                      # (B,S) f32
    neg_bss = jnp.broadcast_to(neg[:, None, :], (b, s, s))          # (B,S,S)
    bias = jnp.concatenate([neg_bss] * num_heads, axis=0)           # (H*B,S,S)

    # ---------------------------- encoder layers ----------------------------
    for l in range(num_layers):                                     # static unroll
        # pre-LN multi-head self-attention, single fused QKV matmul
        h1 = _ln(x, ln1g_ref[l], ln1b_ref[l])
        qkv = _mxu(h1, wqkv_ref[l]) + bqkv_ref[l]                   # (n, 3D)

        def heads(off):
            # (n, 3D) column window -> (H*B, S, DH), head-major batch
            return jnp.concatenate(
                [qkv[:, off + hh * dh: off + (hh + 1) * dh].reshape(b, s, dh)
                 for hh in range(num_heads)], axis=0)

        q, k, v = heads(0), heads(d), heads(2 * d)                  # (H*B,S,DH)

        sc = jnp.einsum('bqd,bkd->bqk',
                        q.astype(jnp.bfloat16), k.astype(jnp.bfloat16),
                        preferred_element_type=jnp.float32) * scale + bias
        mx = jnp.max(sc, axis=-1, keepdims=True)
        p = jnp.exp(sc - mx)
        p = p * pl.reciprocal(jnp.sum(p, axis=-1, keepdims=True), approx=True)
        oh = jnp.einsum('bqk,bkd->bqd',
                        p.astype(jnp.bfloat16), v.astype(jnp.bfloat16),
                        preferred_element_type=jnp.float32)          # (H*B,S,DH)

        # re-assemble heads along lanes -> single output-projection matmul
        attn = jnp.concatenate(
            [oh[hh * b:(hh + 1) * b].reshape(n, dh) for hh in range(num_heads)],
            axis=-1)                                                 # (n, D)
        x = x + _mxu(attn, wo_ref[l]) + bo_ref[l]

        # pre-LN feed-forward
        h2 = _ln(x, ln2g_ref[l], ln2b_ref[l])
        f = _mxu(h2, w1_ref[l]) + b1_ref[l]
        # TODO(synk): ESM2 uses exact erf-GELU; tanh approximation used here.
        g = 0.5 * f * (1.0 + jnp.tanh(0.7978845608028654 *
                                      (f + 0.044715 * f * f * f)))
        x = x + _mxu(g, w2_ref[l]) + b2_ref[l]

    # ------------------ emb_layer_norm_after + pooling -----------------------
    rf = _ln(x, lnfg_ref[...], lnfb_ref[...]).reshape(b, s, d)       # (B,S,D)
    if pool_mode == 1:
        o_ref[...] = rf[:, 0, :]
    else:
        if pool_mode == 3:
            rf = rf * pe_ref[...]                                    # (1,S,D)
        m = padf[:, :, None]                                         # (B,S,1)
        num = jnp.sum(rf * m, axis=1)                                # (B,D)
        den = jnp.maximum(jnp.sum(padf, axis=1, keepdims=True), 1.0)  # NaN guard
        o_ref[...] = num * pl.reciprocal(den, approx=True)


# --------------------------- parameter creation ----------------------------

def init_params(key):
    ks = jax.random.split(key, 6)

    def w(k, shape, scl=0.02):
        return jax.random.normal(k, shape, jnp.float32) * scl

    embed = w(ks[0], (VOCAB, D))
    embed = embed.at[PAD_IDX].set(0.0)           # padding_idx row is zero

    # per-layer weights stacked with a leading L axis (indexed in-kernel);
    # matmul weights kept in bf16 (MXU operands), biases / LN params in f32.
    return dict(
        embed=embed.astype(jnp.bfloat16),
        ln1_g=jnp.ones((L, 1, D), jnp.float32),
        ln1_b=jnp.zeros((L, 1, D), jnp.float32),
        w_qkv=w(ks[1], (L, D, 3 * D)).astype(jnp.bfloat16),
        b_qkv=jnp.zeros((L, 1, 3 * D), jnp.float32),
        wo=w(ks[2], (L, D, D)).astype(jnp.bfloat16),
        bo=jnp.zeros((L, 1, D), jnp.float32),
        ln2_g=jnp.ones((L, 1, D), jnp.float32),
        ln2_b=jnp.zeros((L, 1, D), jnp.float32),
        w1=w(ks[3], (L, D, FFN)).astype(jnp.bfloat16),
        b1=jnp.zeros((L, 1, FFN), jnp.float32),
        w2=w(ks[4], (L, FFN, D)).astype(jnp.bfloat16),
        b2=jnp.zeros((L, 1, D), jnp.float32),
        lnf_g=jnp.ones((1, D), jnp.float32),
        lnf_b=jnp.zeros((1, D), jnp.float32),
    )


def get_embedding(embed_dim, num_embeddings):
    # Sinusoidal table, mirrors the PyTorch helper (used only for pool_mode=3).
    half_dim = embed_dim // 2
    emb = math.log(10000.0) / (half_dim - 1)
    emb = jnp.exp(jnp.arange(half_dim, dtype=jnp.float32) * -emb)
    emb = jnp.arange(num_embeddings, dtype=jnp.float32)[:, None] * emb[None, :]
    emb = jnp.concatenate([jnp.sin(emb), jnp.cos(emb)], axis=1)
    emb = emb.reshape(num_embeddings, -1)
    if embed_dim % 2 == 1:
        emb = jnp.concatenate([emb, jnp.zeros((num_embeddings, 1), jnp.float32)],
                              axis=1)
    return emb


# --------------------------------- forward ---------------------------------

def esm2_representation_lora_forward(params, tokens, pool_mode=POOL_MODE):
    # TODO(synk): ESM2 rotary position embeddings, token-dropout rescale and the
    # LoRA adapter deltas are omitted (pretrained PEFT checkpoint not loadable).
    b, s = tokens.shape
    args = [tokens.astype(jnp.int32), params['embed'],
            params['ln1_g'], params['ln1_b'],
            params['w_qkv'], params['b_qkv'],
            params['wo'], params['bo'],
            params['ln2_g'], params['ln2_b'],
            params['w1'], params['b1'],
            params['w2'], params['b2'],
            params['lnf_g'], params['lnf_b']]
    if pool_mode == 3:
        args.append(get_embedding(D, MAX_LENGTH + 2)[:s, :][None, :, :])  # (1,S,D)

    kernel = functools.partial(_esm2_fused_kernel, num_heads=H,
                               num_layers=L, pool_mode=pool_mode)
    # Whole-array VMEM blocks, no grid: total footprint is a few tens of KiB so
    # a single invocation avoids all pipelining / launch overhead.  At real
    # ESM2 sizes, add a "parallel" grid axis over batch and tile vs VMEM.
    return pl.pallas_call(
        kernel,
        out_shape=jax.ShapeDtypeStruct((b, D), jnp.float32),
        in_specs=[pl.BlockSpec(memory_space=pltpu.MemorySpace.VMEM)] * len(args),
        out_specs=pl.BlockSpec(memory_space=pltpu.MemorySpace.VMEM),
    )(*args)


# ----------------------------------- main -----------------------------------

if __name__ == "__main__":
    key = jax.random.PRNGKey(0)
    kp, kt = jax.random.split(key)
    params = init_params(kp)

    # tokens in [2, VOCAB) with trailing padding to exercise the mask
    tokens = jax.random.randint(kt, (B, S), 2, VOCAB, dtype=jnp.int32)
    tokens = tokens.at[0, 6:].set(PAD_IDX)
    tokens = tokens.at[1, 5:].set(PAD_IDX)

    fwd = jax.jit(esm2_representation_lora_forward, static_argnums=(2,))
    out = fwd(params, tokens, POOL_MODE)
    jax.block_until_ready(out)
    assert out.shape == (B, D) and out.dtype == jnp.float32
    assert bool(jnp.all(jnp.isfinite(out)))
    print("KERNEL_OK")
</pallas_src>

<mosaic_0001>
module attributes {stable_mosaic.version = 11 : i64} {
  func.func @_esm2_fused_kernel(%arg0: memref<2x8xi32, #tpu.memory_space<vmem>>, %arg1: memref<33x32xbf16, #tpu.memory_space<vmem>>, %arg2: memref<2x1x32xf32, #tpu.memory_space<vmem>>, %arg3: memref<2x1x32xf32, #tpu.memory_space<vmem>>, %arg4: memref<2x32x96xbf16, #tpu.memory_space<vmem>>, %arg5: memref<2x1x96xf32, #tpu.memory_space<vmem>>, %arg6: memref<2x32x32xbf16, #tpu.memory_space<vmem>>, %arg7: memref<2x1x32xf32, #tpu.memory_space<vmem>>, %arg8: memref<2x1x32xf32, #tpu.memory_space<vmem>>, %arg9: memref<2x1x32xf32, #tpu.memory_space<vmem>>, %arg10: memref<2x32x64xbf16, #tpu.memory_space<vmem>>, %arg11: memref<2x1x64xf32, #tpu.memory_space<vmem>>, %arg12: memref<2x64x32xbf16, #tpu.memory_space<vmem>>, %arg13: memref<2x1x32xf32, #tpu.memory_space<vmem>>, %arg14: memref<1x32xf32, #tpu.memory_space<vmem>>, %arg15: memref<1x32xf32, #tpu.memory_space<vmem>>, %arg16: memref<2x32xf32, #tpu.memory_space<vmem>>) attributes {dimension_semantics = [], scalar_prefetch = 0 : i64, scratch_operands = 0 : i64, tpu.core_type = #tpu.core_type<tc>} {
    %c0 = arith.constant 0 : index
    %c0_0 = arith.constant 0 : index
    %0 = vector.load %arg0[%c0, %c0_0] : memref<2x8xi32, #tpu.memory_space<vmem>>, vector<2x8xi32>
    %1 = vector.shape_cast %0 : vector<2x8xi32> to vector<2x8x1xi32>
    %2 = tpu.iota {dimensions = array<i32: 2>} : vector<2x8x33xi32>
    %3 = vector.broadcast %1 : vector<2x8x1xi32> to vector<2x8x33xi32>
    %4 = arith.cmpi eq, %3, %2 : vector<2x8x33xi32>
    %5 = arith.extui %4 : vector<2x8x33xi1> to vector<2x8x33xi32>
    %6 = arith.sitofp %5 : vector<2x8x33xi32> to vector<2x8x33xf32>
    %7 = vector.shape_cast %6 : vector<2x8x33xf32> to vector<16x33xf32>
    %c0_1 = arith.constant 0 : index
    %c0_2 = arith.constant 0 : index
    %8 = vector.load %arg1[%c0_1, %c0_2] : memref<33x32xbf16, #tpu.memory_space<vmem>>, vector<33x32xbf16>
    %9 = arith.truncf %7 : vector<16x33xf32> to vector<16x33xbf16>
    %cst = arith.constant dense<0.000000e+00> : vector<16x32xf32>
    %10 = tpu.matmul %9, %8, %cst {dimension_numbers = #tpu.dot_dimension_numbers<[1], [0], [0], [1], [0, 0, 1, 1], [], []>} : vector<16x33xbf16>, vector<33x32xbf16>, vector<16x32xf32> -> vector<16x32xf32>
    %c1_i32 = arith.constant 1 : i32
    %11 = vector.broadcast %c1_i32 : i32 to vector<2x8xi32>
    %12 = arith.cmpi ne, %0, %11 : vector<2x8xi32>
    %13 = arith.extui %12 : vector<2x8xi1> to vector<2x8xi32>
    %14 = arith.sitofp %13 : vector<2x8xi32> to vector<2x8xf32>
    %c1_i32_3 = arith.constant 1 : i32
    %15 = vector.broadcast %c1_i32_3 : i32 to vector<2x8xi32>
    %16 = arith.cmpi eq, %0, %15 : vector<2x8xi32>
    %cst_4 = arith.constant -1.000000e+09 : f32
    %cst_5 = arith.constant 0.000000e+00 : f32
    %17 = vector.broadcast %cst_4 : f32 to vector<2x8xf32>
    %18 = vector.broadcast %cst_5 : f32 to vector<2x8xf32>
    %19 = arith.select %16, %17, %18 : vector<2x8xi1>, vector<2x8xf32>
    %20 = vector.shape_cast %19 : vector<2x8xf32> to vector<2x1x8xf32>
    %21 = vector.shape_cast %20 : vector<2x1x8xf32> to vector<2x1x8xf32>
    %22 = vector.broadcast %21 : vector<2x1x8xf32> to vector<2x8x8xf32>
    %23 = tpu.concatenate %22, %22, %22, %22 in 0 : vector<2x8x8xf32>, vector<2x8x8xf32>, vector<2x8x8xf32>, vector<2x8x8xf32> -> vector<8x8x8xf32>
    %c0_6 = arith.constant 0 : index
    %c0_7 = arith.constant 0 : index
    %c0_8 = arith.constant 0 : index
    %24 = vector.load %arg2[%c0_6, %c0_7, %c0_8] : memref<2x1x32xf32, #tpu.memory_space<vmem>>, vector<1x1x32xf32>
    %25 = vector.shape_cast %24 : vector<1x1x32xf32> to vector<1x32xf32>
    %c0_9 = arith.constant 0 : index
    %c0_10 = arith.constant 0 : index
    %c0_11 = arith.constant 0 : index
    %26 = vector.load %arg3[%c0_9, %c0_10, %c0_11] : memref<2x1x32xf32, #tpu.memory_space<vmem>>, vector<1x1x32xf32>
    %27 = vector.shape_cast %26 : vector<1x1x32xf32> to vector<1x32xf32>
    %cst_12 = arith.constant dense<0.000000e+00> : vector<16xf32>
    %28 = vector.multi_reduction <add>, %10, %cst_12 [1] : vector<16x32xf32> to vector<16xf32>
    %29 = vector.shape_cast %28 : vector<16xf32> to vector<16x1xf32>
    %cst_13 = arith.constant 3.200000e+01 : f32
    %30 = vector.broadcast %cst_13 : f32 to vector<16x1xf32>
    %31 = arith.divf %29, %30 : vector<16x1xf32>
    %32 = vector.broadcast %31 : vector<16x1xf32> to vector<16x32xf32>
    %33 = arith.subf %10, %32 : vector<16x32xf32>
    %34 = vector.broadcast %31 : vector<16x1xf32> to vector<16x32xf32>
    %35 = arith.subf %10, %34 : vector<16x32xf32>
    %36 = arith.mulf %33, %35 : vector<16x32xf32>
    %cst_14 = arith.constant dense<0.000000e+00> : vector<16xf32>
    %37 = vector.multi_reduction <add>, %36, %cst_14 [1] : vector<16x32xf32> to vector<16xf32>
    %38 = vector.shape_cast %37 : vector<16xf32> to vector<16x1xf32>
    %cst_15 = arith.constant 3.200000e+01 : f32
    %39 = vector.broadcast %cst_15 : f32 to vector<16x1xf32>
    %40 = arith.divf %38, %39 : vector<16x1xf32>
    %41 = vector.broadcast %31 : vector<16x1xf32> to vector<16x32xf32>
    %42 = arith.subf %10, %41 : vector<16x32xf32>
    %cst_16 = arith.constant 9.99999974E-6 : f32
    %43 = vector.broadcast %cst_16 : f32 to vector<16x1xf32>
    %44 = arith.addf %40, %43 : vector<16x1xf32>
    %45 = math.rsqrt %44 : vector<16x1xf32>
    %46 = vector.broadcast %45 : vector<16x1xf32> to vector<16x32xf32>
    %47 = arith.mulf %42, %46 : vector<16x32xf32>
    %48 = vector.broadcast %25 : vector<1x32xf32> to vector<16x32xf32>
    %49 = arith.mulf %47, %48 : vector<16x32xf32>
    %50 = vector.broadcast %27 : vector<1x32xf32> to vector<16x32xf32>
    %51 = arith.addf %49, %50 : vector<16x32xf32>
    %c0_17 = arith.constant 0 : index
    %c0_18 = arith.constant 0 : index
    %c0_19 = arith.constant 0 : index
    %52 = vector.load %arg4[%c0_17, %c0_18, %c0_19] : memref<2x32x96xbf16, #tpu.memory_space<vmem>>, vector<1x32x96xbf16>
    %53 = vector.shape_cast %52 : vector<1x32x96xbf16> to vector<32x96xbf16>
    %54 = arith.truncf %51 : vector<16x32xf32> to vector<16x32xbf16>
    %cst_20 = arith.constant dense<0.000000e+00> : vector<16x96xf32>
    %55 = tpu.matmul %54, %53, %cst_20 {dimension_numbers = #tpu.dot_dimension_numbers<[1], [0], [0], [1], [0, 0, 1, 1], [], []>} : vector<16x32xbf16>, vector<32x96xbf16>, vector<16x96xf32> -> vector<16x96xf32>
    %c0_21 = arith.constant 0 : index
    %c0_22 = arith.constant 0 : index
    %c0_23 = arith.constant 0 : index
    %56 = vector.load %arg5[%c0_21, %c0_22, %c0_23] : memref<2x1x96xf32, #tpu.memory_space<vmem>>, vector<1x1x96xf32>
    %57 = vector.shape_cast %56 : vector<1x1x96xf32> to vector<1x96xf32>
    %58 = vector.broadcast %57 : vector<1x96xf32> to vector<16x96xf32>
    %59 = arith.addf %55, %58 : vector<16x96xf32>
    %60 = vector.extract_strided_slice %59 {offsets = [0, 0], sizes = [16, 8], strides = [1, 1]} : vector<16x96xf32> to vector<16x8xf32>
    %61 = vector.shape_cast %60 : vector<16x8xf32> to vector<2x8x8xf32>
    %62 = vector.extract_strided_slice %59 {offsets = [0, 8], sizes = [16, 8], strides = [1, 1]} : vector<16x96xf32> to vector<16x8xf32>
    %63 = vector.shape_cast %62 : vector<16x8xf32> to vector<2x8x8xf32>
    %64 = vector.extract_strided_slice %59 {offsets = [0, 16], sizes = [16, 8], strides = [1, 1]} : vector<16x96xf32> to vector<16x8xf32>
    %65 = vector.shape_cast %64 : vector<16x8xf32> to vector<2x8x8xf32>
    %66 = vector.extract_strided_slice %59 {offsets = [0, 24], sizes = [16, 8], strides = [1, 1]} : vector<16x96xf32> to vector<16x8xf32>
    %67 = vector.shape_cast %66 : vector<16x8xf32> to vector<2x8x8xf32>
    %68 = tpu.concatenate %61, %63, %65, %67 in 0 : vector<2x8x8xf32>, vector<2x8x8xf32>, vector<2x8x8xf32>, vector<2x8x8xf32> -> vector<8x8x8xf32>
    %69 = vector.extract_strided_slice %59 {offsets = [0, 32], sizes = [16, 8], strides = [1, 1]} : vector<16x96xf32> to vector<16x8xf32>
    %70 = vector.shape_cast %69 : vector<16x8xf32> to vector<2x8x8xf32>
    %71 = vector.extract_strided_slice %59 {offsets = [0, 40], sizes = [16, 8], strides = [1, 1]} : vector<16x96xf32> to vector<16x8xf32>
    %72 = vector.shape_cast %71 : vector<16x8xf32> to vector<2x8x8xf32>
    %73 = vector.extract_strided_slice %59 {offsets = [0, 48], sizes = [16, 8], strides = [1, 1]} : vector<16x96xf32> to vector<16x8xf32>
    %74 = vector.shape_cast %73 : vector<16x8xf32> to vector<2x8x8xf32>
    %75 = vector.extract_strided_slice %59 {offsets = [0, 56], sizes = [16, 8], strides = [1, 1]} : vector<16x96xf32> to vector<16x8xf32>
    %76 = vector.shape_cast %75 : vector<16x8xf32> to vector<2x8x8xf32>
    %77 = tpu.concatenate %70, %72, %74, %76 in 0 : vector<2x8x8xf32>, vector<2x8x8xf32>, vector<2x8x8xf32>, vector<2x8x8xf32> -> vector<8x8x8xf32>
    %78 = vector.extract_strided_slice %59 {offsets = [0, 64], sizes = [16, 8], strides = [1, 1]} : vector<16x96xf32> to vector<16x8xf32>
    %79 = vector.shape_cast %78 : vector<16x8xf32> to vector<2x8x8xf32>
    %80 = vector.extract_strided_slice %59 {offsets = [0, 72], sizes = [16, 8], strides = [1, 1]} : vector<16x96xf32> to vector<16x8xf32>
    %81 = vector.shape_cast %80 : vector<16x8xf32> to vector<2x8x8xf32>
    %82 = vector.extract_strided_slice %59 {offsets = [0, 80], sizes = [16, 8], strides = [1, 1]} : vector<16x96xf32> to vector<16x8xf32>
    %83 = vector.shape_cast %82 : vector<16x8xf32> to vector<2x8x8xf32>
    %84 = vector.extract_strided_slice %59 {offsets = [0, 88], sizes = [16, 8], strides = [1, 1]} : vector<16x96xf32> to vector<16x8xf32>
    %85 = vector.shape_cast %84 : vector<16x8xf32> to vector<2x8x8xf32>
    %86 = tpu.concatenate %79, %81, %83, %85 in 0 : vector<2x8x8xf32>, vector<2x8x8xf32>, vector<2x8x8xf32>, vector<2x8x8xf32> -> vector<8x8x8xf32>
    %87 = arith.truncf %68 : vector<8x8x8xf32> to vector<8x8x8xbf16>
    %88 = arith.truncf %77 : vector<8x8x8xf32> to vector<8x8x8xbf16>
    "tpu.trace_start"() <{level = 10 : i32, message = "bqd,bkd->bqk"}> : () -> ()
    %cst_24 = arith.constant dense<0.000000e+00> : vector<8x8x8xf32>
    %89 = tpu.matmul %87, %88, %cst_24 {dimension_numbers = #tpu.dot_dimension_numbers<[2], [2], [1], [1], [0, 0, 0, 1, 1, 1], [0], [0]>} : vector<8x8x8xbf16>, vector<8x8x8xbf16>, vector<8x8x8xf32> -> vector<8x8x8xf32>
    "tpu.trace_stop"() : () -> ()
    %cst_25 = arith.constant 0.353553385 : f32
    %90 = vector.broadcast %cst_25 : f32 to vector<8x8x8xf32>
    %91 = arith.mulf %89, %90 : vector<8x8x8xf32>
    %92 = arith.addf %91, %23 : vector<8x8x8xf32>
    %cst_26 = arith.constant dense<0xFF800000> : vector<8x8xf32>
    %93 = vector.multi_reduction <maximumf>, %92, %cst_26 [2] : vector<8x8x8xf32> to vector<8x8xf32>
    %94 = vector.shape_cast %93 : vector<8x8xf32> to vector<8x8x1xf32>
    %95 = vector.broadcast %94 : vector<8x8x1xf32> to vector<8x8x8xf32>
    %96 = arith.subf %92, %95 : vector<8x8x8xf32>
    %97 = math.exp %96 : vector<8x8x8xf32>
    %cst_27 = arith.constant dense<0.000000e+00> : vector<8x8xf32>
    %98 = vector.multi_reduction <add>, %97, %cst_27 [2] : vector<8x8x8xf32> to vector<8x8xf32>
    %99 = vector.shape_cast %98 : vector<8x8xf32> to vector<8x8x1xf32>
    %100 = tpu.reciprocal %99 {approx = true} : vector<8x8x1xf32> -> vector<8x8x1xf32>
    %101 = vector.broadcast %100 : vector<8x8x1xf32> to vector<8x8x8xf32>
    %102 = arith.mulf %97, %101 : vector<8x8x8xf32>
    %103 = arith.truncf %102 : vector<8x8x8xf32> to vector<8x8x8xbf16>
    %104 = arith.truncf %86 : vector<8x8x8xf32> to vector<8x8x8xbf16>
    "tpu.trace_start"() <{level = 10 : i32, message = "bqk,bkd->bqd"}> : () -> ()
    %cst_28 = arith.constant dense<0.000000e+00> : vector<8x8x8xf32>
    %105 = tpu.matmul %103, %104, %cst_28 {dimension_numbers = #tpu.dot_dimension_numbers<[2], [1], [1], [2], [0, 0, 0, 1, 1, 2], [0], [0]>} : vector<8x8x8xbf16>, vector<8x8x8xbf16>, vector<8x8x8xf32> -> vector<8x8x8xf32>
    "tpu.trace_stop"() : () -> ()
    %106 = vector.extract_strided_slice %105 {offsets = [0, 0, 0], sizes = [2, 8, 8], strides = [1, 1, 1]} : vector<8x8x8xf32> to vector<2x8x8xf32>
    %107 = vector.shape_cast %106 : vector<2x8x8xf32> to vector<16x8xf32>
    %108 = vector.extract_strided_slice %105 {offsets = [2, 0, 0], sizes = [2, 8, 8], strides = [1, 1, 1]} : vector<8x8x8xf32> to vector<2x8x8xf32>
    %109 = vector.shape_cast %108 : vector<2x8x8xf32> to vector<16x8xf32>
    %110 = vector.extract_strided_slice %105 {offsets = [4, 0, 0], sizes = [2, 8, 8], strides = [1, 1, 1]} : vector<8x8x8xf32> to vector<2x8x8xf32>
    %111 = vector.shape_cast %110 : vector<2x8x8xf32> to vector<16x8xf32>
    %112 = vector.extract_strided_slice %105 {offsets = [6, 0, 0], sizes = [2, 8, 8], strides = [1, 1, 1]} : vector<8x8x8xf32> to vector<2x8x8xf32>
    %113 = vector.shape_cast %112 : vector<2x8x8xf32> to vector<16x8xf32>
    %114 = tpu.concatenate %107, %109, %111, %113 in 1 : vector<16x8xf32>, vector<16x8xf32>, vector<16x8xf32>, vector<16x8xf32> -> vector<16x32xf32>
    %c0_29 = arith.constant 0 : index
    %c0_30 = arith.constant 0 : index
    %c0_31 = arith.constant 0 : index
    %115 = vector.load %arg6[%c0_29, %c0_30, %c0_31] : memref<2x32x32xbf16, #tpu.memory_space<vmem>>, vector<1x32x32xbf16>
    %116 = vector.shape_cast %115 : vector<1x32x32xbf16> to vector<32x32xbf16>
    %117 = arith.truncf %114 : vector<16x32xf32> to vector<16x32xbf16>
    %cst_32 = arith.constant dense<0.000000e+00> : vector<16x32xf32>
    %118 = tpu.matmul %117, %116, %cst_32 {dimension_numbers = #tpu.dot_dimension_numbers<[1], [0], [0], [1], [0, 0, 1, 1], [], []>} : vector<16x32xbf16>, vector<32x32xbf16>, vector<16x32xf32> -> vector<16x32xf32>
    %119 = arith.addf %10, %118 : vector<16x32xf32>
    %c0_33 = arith.constant 0 : index
    %c0_34 = arith.constant 0 : index
    %c0_35 = arith.constant 0 : index
    %120 = vector.load %arg7[%c0_33, %c0_34, %c0_35] : memref<2x1x32xf32, #tpu.memory_space<vmem>>, vector<1x1x32xf32>
    %121 = vector.shape_cast %120 : vector<1x1x32xf32> to vector<1x32xf32>
    %122 = vector.broadcast %121 : vector<1x32xf32> to vector<16x32xf32>
    %123 = arith.addf %119, %122 : vector<16x32xf32>
    %c0_36 = arith.constant 0 : index
    %c0_37 = arith.constant 0 : index
    %c0_38 = arith.constant 0 : index
    %124 = vector.load %arg8[%c0_36, %c0_37, %c0_38] : memref<2x1x32xf32, #tpu.memory_space<vmem>>, vector<1x1x32xf32>
    %125 = vector.shape_cast %124 : vector<1x1x32xf32> to vector<1x32xf32>
    %c0_39 = arith.constant 0 : index
    %c0_40 = arith.constant 0 : index
    %c0_41 = arith.constant 0 : index
    %126 = vector.load %arg9[%c0_39, %c0_40, %c0_41] : memref<2x1x32xf32, #tpu.memory_space<vmem>>, vector<1x1x32xf32>
    %127 = vector.shape_cast %126 : vector<1x1x32xf32> to vector<1x32xf32>
    %cst_42 = arith.constant dense<0.000000e+00> : vector<16xf32>
    %128 = vector.multi_reduction <add>, %123, %cst_42 [1] : vector<16x32xf32> to vector<16xf32>
    %129 = vector.shape_cast %128 : vector<16xf32> to vector<16x1xf32>
    %cst_43 = arith.constant 3.200000e+01 : f32
    %130 = vector.broadcast %cst_43 : f32 to vector<16x1xf32>
    %131 = arith.divf %129, %130 : vector<16x1xf32>
    %132 = vector.broadcast %131 : vector<16x1xf32> to vector<16x32xf32>
    %133 = arith.subf %123, %132 : vector<16x32xf32>
    %134 = vector.broadcast %131 : vector<16x1xf32> to vector<16x32xf32>
    %135 = arith.subf %123, %134 : vector<16x32xf32>
    %136 = arith.mulf %133, %135 : vector<16x32xf32>
    %cst_44 = arith.constant dense<0.000000e+00> : vector<16xf32>
    %137 = vector.multi_reduction <add>, %136, %cst_44 [1] : vector<16x32xf32> to vector<16xf32>
    %138 = vector.shape_cast %137 : vector<16xf32> to vector<16x1xf32>
    %cst_45 = arith.constant 3.200000e+01 : f32
    %139 = vector.broadcast %cst_45 : f32 to vector<16x1xf32>
    %140 = arith.divf %138, %139 : vector<16x1xf32>
    %141 = vector.broadcast %131 : vector<16x1xf32> to vector<16x32xf32>
    %142 = arith.subf %123, %141 : vector<16x32xf32>
    %cst_46 = arith.constant 9.99999974E-6 : f32
    %143 = vector.broadcast %cst_46 : f32 to vector<16x1xf32>
    %144 = arith.addf %140, %143 : vector<16x1xf32>
    %145 = math.rsqrt %144 : vector<16x1xf32>
    %146 = vector.broadcast %145 : vector<16x1xf32> to vector<16x32xf32>
    %147 = arith.mulf %142, %146 : vector<16x32xf32>
    %148 = vector.broadcast %125 : vector<1x32xf32> to vector<16x32xf32>
    %149 = arith.mulf %147, %148 : vector<16x32xf32>
    %150 = vector.broadcast %127 : vector<1x32xf32> to vector<16x32xf32>
    %151 = arith.addf %149, %150 : vector<16x32xf32>
    %c0_47 = arith.constant 0 : index
    %c0_48 = arith.constant 0 : index
    %c0_49 = arith.constant 0 : index
    %152 = vector.load %arg10[%c0_47, %c0_48, %c0_49] : memref<2x32x64xbf16, #tpu.memory_space<vmem>>, vector<1x32x64xbf16>
    %153 = vector.shape_cast %152 : vector<1x32x64xbf16> to vector<32x64xbf16>
    %154 = arith.truncf %151 : vector<16x32xf32> to vector<16x32xbf16>
    %cst_50 = arith.constant dense<0.000000e+00> : vector<16x64xf32>
    %155 = tpu.matmul %154, %153, %cst_50 {dimension_numbers = #tpu.dot_dimension_numbers<[1], [0], [0], [1], [0, 0, 1, 1], [], []>} : vector<16x32xbf16>, vector<32x64xbf16>, vector<16x64xf32> -> vector<16x64xf32>
    %c0_51 = arith.constant 0 : index
    %c0_52 = arith.constant 0 : index
    %c0_53 = arith.constant 0 : index
    %156 = vector.load %arg11[%c0_51, %c0_52, %c0_53] : memref<2x1x64xf32, #tpu.memory_space<vmem>>, vector<1x1x64xf32>
    %157 = vector.shape_cast %156 : vector<1x1x64xf32> to vector<1x64xf32>
    %158 = vector.broadcast %157 : vector<1x64xf32> to vector<16x64xf32>
    %159 = arith.addf %155, %158 : vector<16x64xf32>
    %cst_54 = arith.constant 5.000000e-01 : f32
    %160 = vector.broadcast %cst_54 : f32 to vector<16x64xf32>
    %161 = arith.mulf %160, %159 : vector<16x64xf32>
    %cst_55 = arith.constant 4.471500e-02 : f32
    %162 = vector.broadcast %cst_55 : f32 to vector<16x64xf32>
    %163 = arith.mulf %162, %159 : vector<16x64xf32>
    %164 = arith.mulf %163, %159 : vector<16x64xf32>
    %165 = arith.mulf %164, %159 : vector<16x64xf32>
    %166 = arith.addf %159, %165 : vector<16x64xf32>
    %cst_56 = arith.constant 0.797884583 : f32
    %167 = vector.broadcast %cst_56 : f32 to vector<16x64xf32>
    %168 = arith.mulf %167, %166 : vector<16x64xf32>
    %169 = math.tanh %168 : vector<16x64xf32>
    %cst_57 = arith.constant 1.000000e+00 : f32
    %170 = vector.broadcast %cst_57 : f32 to vector<16x64xf32>
    %171 = arith.addf %170, %169 : vector<16x64xf32>
    %172 = arith.mulf %161, %171 : vector<16x64xf32>
    %c0_58 = arith.constant 0 : index
    %c0_59 = arith.constant 0 : index
    %c0_60 = arith.constant 0 : index
    %173 = vector.load %arg12[%c0_58, %c0_59, %c0_60] : memref<2x64x32xbf16, #tpu.memory_space<vmem>>, vector<1x64x32xbf16>
    %174 = vector.shape_cast %173 : vector<1x64x32xbf16> to vector<64x32xbf16>
    %175 = arith.truncf %172 : vector<16x64xf32> to vector<16x64xbf16>
    %cst_61 = arith.constant dense<0.000000e+00> : vector<16x32xf32>
    %176 = tpu.matmul %175, %174, %cst_61 {dimension_numbers = #tpu.dot_dimension_numbers<[1], [0], [0], [1], [0, 0, 1, 1], [], []>} : vector<16x64xbf16>, vector<64x32xbf16>, vector<16x32xf32> -> vector<16x32xf32>
    %177 = arith.addf %123, %176 : vector<16x32xf32>
    %c0_62 = arith.constant 0 : index
    %c0_63 = arith.constant 0 : index
    %c0_64 = arith.constant 0 : index
    %178 = vector.load %arg13[%c0_62, %c0_63, %c0_64] : memref<2x1x32xf32, #tpu.memory_space<vmem>>, vector<1x1x32xf32>
    %179 = vector.shape_cast %178 : vector<1x1x32xf32> to vector<1x32xf32>
    %180 = vector.broadcast %179 : vector<1x32xf32> to vector<16x32xf32>
    %181 = arith.addf %177, %180 : vector<16x32xf32>
    %c1 = arith.constant 1 : index
    %c0_65 = arith.constant 0 : index
    %c0_66 = arith.constant 0 : index
    %182 = vector.load %arg2[%c1, %c0_65, %c0_66] : memref<2x1x32xf32, #tpu.memory_space<vmem>>, vector<1x1x32xf32>
    %183 = vector.shape_cast %182 : vector<1x1x32xf32> to vector<1x32xf32>
    %c1_67 = arith.constant 1 : index
    %c0_68 = arith.constant 0 : index
    %c0_69 = arith.constant 0 : index
    %184 = vector.load %arg3[%c1_67, %c0_68, %c0_69] : memref<2x1x32xf32, #tpu.memory_space<vmem>>, vector<1x1x32xf32>
    %185 = vector.shape_cast %184 : vector<1x1x32xf32> to vector<1x32xf32>
    %cst_70 = arith.constant dense<0.000000e+00> : vector<16xf32>
    %186 = vector.multi_reduction <add>, %181, %cst_70 [1] : vector<16x32xf32> to vector<16xf32>
    %187 = vector.shape_cast %186 : vector<16xf32> to vector<16x1xf32>
    %cst_71 = arith.constant 3.200000e+01 : f32
    %188 = vector.broadcast %cst_71 : f32 to vector<16x1xf32>
    %189 = arith.divf %187, %188 : vector<16x1xf32>
    %190 = vector.broadcast %189 : vector<16x1xf32> to vector<16x32xf32>
    %191 = arith.subf %181, %190 : vector<16x32xf32>
    %192 = vector.broadcast %189 : vector<16x1xf32> to vector<16x32xf32>
    %193 = arith.subf %181, %192 : vector<16x32xf32>
    %194 = arith.mulf %191, %193 : vector<16x32xf32>
    %cst_72 = arith.constant dense<0.000000e+00> : vector<16xf32>
    %195 = vector.multi_reduction <add>, %194, %cst_72 [1] : vector<16x32xf32> to vector<16xf32>
    %196 = vector.shape_cast %195 : vector<16xf32> to vector<16x1xf32>
    %cst_73 = arith.constant 3.200000e+01 : f32
    %197 = vector.broadcast %cst_73 : f32 to vector<16x1xf32>
    %198 = arith.divf %196, %197 : vector<16x1xf32>
    %199 = vector.broadcast %189 : vector<16x1xf32> to vector<16x32xf32>
    %200 = arith.subf %181, %199 : vector<16x32xf32>
    %cst_74 = arith.constant 9.99999974E-6 : f32
    %201 = vector.broadcast %cst_74 : f32 to vector<16x1xf32>
    %202 = arith.addf %198, %201 : vector<16x1xf32>
    %203 = math.rsqrt %202 : vector<16x1xf32>
    %204 = vector.broadcast %203 : vector<16x1xf32> to vector<16x32xf32>
    %205 = arith.mulf %200, %204 : vector<16x32xf32>
    %206 = vector.broadcast %183 : vector<1x32xf32> to vector<16x32xf32>
    %207 = arith.mulf %205, %206 : vector<16x32xf32>
    %208 = vector.broadcast %185 : vector<1x32xf32> to vector<16x32xf32>
    %209 = arith.addf %207, %208 : vector<16x32xf32>
    %c1_75 = arith.constant 1 : index
    %c0_76 = arith.constant 0 : index
    %c0_77 = arith.constant 0 : index
    %210 = vector.load %arg4[%c1_75, %c0_76, %c0_77] : memref<2x32x96xbf16, #tpu.memory_space<vmem>>, vector<1x32x96xbf16>
    %211 = vector.shape_cast %210 : vector<1x32x96xbf16> to vector<32x96xbf16>
    %212 = arith.truncf %209 : vector<16x32xf32> to vector<16x32xbf16>
    %cst_78 = arith.constant dense<0.000000e+00> : vector<16x96xf32>
    %213 = tpu.matmul %212, %211, %cst_78 {dimension_numbers = #tpu.dot_dimension_numbers<[1], [0], [0], [1], [0, 0, 1, 1], [], []>} : vector<16x32xbf16>, vector<32x96xbf16>, vector<16x96xf32> -> vector<16x96xf32>
    %c1_79 = arith.constant 1 : index
    %c0_80 = arith.constant 0 : index
    %c0_81 = arith.constant 0 : index
    %214 = vector.load %arg5[%c1_79, %c0_80, %c0_81] : memref<2x1x96xf32, #tpu.memory_space<vmem>>, vector<1x1x96xf32>
    %215 = vector.shape_cast %214 : vector<1x1x96xf32> to vector<1x96xf32>
    %216 = vector.broadcast %215 : vector<1x96xf32> to vector<16x96xf32>
    %217 = arith.addf %213, %216 : vector<16x96xf32>
    %218 = vector.extract_strided_slice %217 {offsets = [0, 0], sizes = [16, 8], strides = [1, 1]} : vector<16x96xf32> to vector<16x8xf32>
    %219 = vector.shape_cast %218 : vector<16x8xf32> to vector<2x8x8xf32>
    %220 = vector.extract_strided_slice %217 {offsets = [0, 8], sizes = [16, 8], strides = [1, 1]} : vector<16x96xf32> to vector<16x8xf32>
    %221 = vector.shape_cast %220 : vector<16x8xf32> to vector<2x8x8xf32>
    %222 = vector.extract_strided_slice %217 {offsets = [0, 16], sizes = [16, 8], strides = [1, 1]} : vector<16x96xf32> to vector<16x8xf32>
    %223 = vector.shape_cast %222 : vector<16x8xf32> to vector<2x8x8xf32>
    %224 = vector.extract_strided_slice %217 {offsets = [0, 24], sizes = [16, 8], strides = [1, 1]} : vector<16x96xf32> to vector<16x8xf32>
    %225 = vector.shape_cast %224 : vector<16x8xf32> to vector<2x8x8xf32>
    %226 = tpu.concatenate %219, %221, %223, %225 in 0 : vector<2x8x8xf32>, vector<2x8x8xf32>, vector<2x8x8xf32>, vector<2x8x8xf32> -> vector<8x8x8xf32>
    %227 = vector.extract_strided_slice %217 {offsets = [0, 32], sizes = [16, 8], strides = [1, 1]} : vector<16x96xf32> to vector<16x8xf32>
    %228 = vector.shape_cast %227 : vector<16x8xf32> to vector<2x8x8xf32>
    %229 = vector.extract_strided_slice %217 {offsets = [0, 40], sizes = [16, 8], strides = [1, 1]} : vector<16x96xf32> to vector<16x8xf32>
    %230 = vector.shape_cast %229 : vector<16x8xf32> to vector<2x8x8xf32>
    %231 = vector.extract_strided_slice %217 {offsets = [0, 48], sizes = [16, 8], strides = [1, 1]} : vector<16x96xf32> to vector<16x8xf32>
    %232 = vector.shape_cast %231 : vector<16x8xf32> to vector<2x8x8xf32>
    %233 = vector.extract_strided_slice %217 {offsets = [0, 56], sizes = [16, 8], strides = [1, 1]} : vector<16x96xf32> to vector<16x8xf32>
    %234 = vector.shape_cast %233 : vector<16x8xf32> to vector<2x8x8xf32>
    %235 = tpu.concatenate %228, %230, %232, %234 in 0 : vector<2x8x8xf32>, vector<2x8x8xf32>, vector<2x8x8xf32>, vector<2x8x8xf32> -> vector<8x8x8xf32>
    %236 = vector.extract_strided_slice %217 {offsets = [0, 64], sizes = [16, 8], strides = [1, 1]} : vector<16x96xf32> to vector<16x8xf32>
    %237 = vector.shape_cast %236 : vector<16x8xf32> to vector<2x8x8xf32>
    %238 = vector.extract_strided_slice %217 {offsets = [0, 72], sizes = [16, 8], strides = [1, 1]} : vector<16x96xf32> to vector<16x8xf32>
    %239 = vector.shape_cast %238 : vector<16x8xf32> to vector<2x8x8xf32>
    %240 = vector.extract_strided_slice %217 {offsets = [0, 80], sizes = [16, 8], strides = [1, 1]} : vector<16x96xf32> to vector<16x8xf32>
    %241 = vector.shape_cast %240 : vector<16x8xf32> to vector<2x8x8xf32>
    %242 = vector.extract_strided_slice %217 {offsets = [0, 88], sizes = [16, 8], strides = [1, 1]} : vector<16x96xf32> to vector<16x8xf32>
    %243 = vector.shape_cast %242 : vector<16x8xf32> to vector<2x8x8xf32>
    %244 = tpu.concatenate %237, %239, %241, %243 in 0 : vector<2x8x8xf32>, vector<2x8x8xf32>, vector<2x8x8xf32>, vector<2x8x8xf32> -> vector<8x8x8xf32>
    %245 = arith.truncf %226 : vector<8x8x8xf32> to vector<8x8x8xbf16>
    %246 = arith.truncf %235 : vector<8x8x8xf32> to vector<8x8x8xbf16>
    "tpu.trace_start"() <{level = 10 : i32, message = "bqd,bkd->bqk"}> : () -> ()
    %cst_82 = arith.constant dense<0.000000e+00> : vector<8x8x8xf32>
    %247 = tpu.matmul %245, %246, %cst_82 {dimension_numbers = #tpu.dot_dimension_numbers<[2], [2], [1], [1], [0, 0, 0, 1, 1, 1], [0], [0]>} : vector<8x8x8xbf16>, vector<8x8x8xbf16>, vector<8x8x8xf32> -> vector<8x8x8xf32>
    "tpu.trace_stop"() : () -> ()
    %cst_83 = arith.constant 0.353553385 : f32
    %248 = vector.broadcast %cst_83 : f32 to vector<8x8x8xf32>
    %249 = arith.mulf %247, %248 : vector<8x8x8xf32>
    %250 = arith.addf %249, %23 : vector<8x8x8xf32>
    %cst_84 = arith.constant dense<0xFF800000> : vector<8x8xf32>
    %251 = vector.multi_reduction <maximumf>, %250, %cst_84 [2] : vector<8x8x8xf32> to vector<8x8xf32>
    %252 = vector.shape_cast %251 : vector<8x8xf32> to vector<8x8x1xf32>
    %253 = vector.broadcast %252 : vector<8x8x1xf32> to vector<8x8x8xf32>
    %254 = arith.subf %250, %253 : vector<8x8x8xf32>
    %255 = math.exp %254 : vector<8x8x8xf32>
    %cst_85 = arith.constant dense<0.000000e+00> : vector<8x8xf32>
    %256 = vector.multi_reduction <add>, %255, %cst_85 [2] : vector<8x8x8xf32> to vector<8x8xf32>
    %257 = vector.shape_cast %256 : vector<8x8xf32> to vector<8x8x1xf32>
    %258 = tpu.reciprocal %257 {approx = true} : vector<8x8x1xf32> -> vector<8x8x1xf32>
    %259 = vector.broadcast %258 : vector<8x8x1xf32> to vector<8x8x8xf32>
    %260 = arith.mulf %255, %259 : vector<8x8x8xf32>
    %261 = arith.truncf %260 : vector<8x8x8xf32> to vector<8x8x8xbf16>
    %262 = arith.truncf %244 : vector<8x8x8xf32> to vector<8x8x8xbf16>
    "tpu.trace_start"() <{level = 10 : i32, message = "bqk,bkd->bqd"}> : () -> ()
    %cst_86 = arith.constant dense<0.000000e+00> : vector<8x8x8xf32>
    %263 = tpu.matmul %261, %262, %cst_86 {dimension_numbers = #tpu.dot_dimension_numbers<[2], [1], [1], [2], [0, 0, 0, 1, 1, 2], [0], [0]>} : vector<8x8x8xbf16>, vector<8x8x8xbf16>, vector<8x8x8xf32> -> vector<8x8x8xf32>
    "tpu.trace_stop"() : () -> ()
    %264 = vector.extract_strided_slice %263 {offsets = [0, 0, 0], sizes = [2, 8, 8], strides = [1, 1, 1]} : vector<8x8x8xf32> to vector<2x8x8xf32>
    %265 = vector.shape_cast %264 : vector<2x8x8xf32> to vector<16x8xf32>
    %266 = vector.extract_strided_slice %263 {offsets = [2, 0, 0], sizes = [2, 8, 8], strides = [1, 1, 1]} : vector<8x8x8xf32> to vector<2x8x8xf32>
    %267 = vector.shape_cast %266 : vector<2x8x8xf32> to vector<16x8xf32>
    %268 = vector.extract_strided_slice %263 {offsets = [4, 0, 0], sizes = [2, 8, 8], strides = [1, 1, 1]} : vector<8x8x8xf32> to vector<2x8x8xf32>
    %269 = vector.shape_cast %268 : vector<2x8x8xf32> to vector<16x8xf32>
    %270 = vector.extract_strided_slice %263 {offsets = [6, 0, 0], sizes = [2, 8, 8], strides = [1, 1, 1]} : vector<8x8x8xf32> to vector<2x8x8xf32>
    %271 = vector.shape_cast %270 : vector<2x8x8xf32> to vector<16x8xf32>
    %272 = tpu.concatenate %265, %267, %269, %271 in 1 : vector<16x8xf32>, vector<16x8xf32>, vector<16x8xf32>, vector<16x8xf32> -> vector<16x32xf32>
    %c1_87 = arith.constant 1 : index
    %c0_88 = arith.constant 0 : index
    %c0_89 = arith.constant 0 : index
    %273 = vector.load %arg6[%c1_87, %c0_88, %c0_89] : memref<2x32x32xbf16, #tpu.memory_space<vmem>>, vector<1x32x32xbf16>
    %274 = vector.shape_cast %273 : vector<1x32x32xbf16> to vector<32x32xbf16>
    %275 = arith.truncf %272 : vector<16x32xf32> to vector<16x32xbf16>
    %cst_90 = arith.constant dense<0.000000e+00> : vector<16x32xf32>
    %276 = tpu.matmul %275, %274, %cst_90 {dimension_numbers = #tpu.dot_dimension_numbers<[1], [0], [0], [1], [0, 0, 1, 1], [], []>} : vector<16x32xbf16>, vector<32x32xbf16>, vector<16x32xf32> -> vector<16x32xf32>
    %277 = arith.addf %181, %276 : vector<16x32xf32>
    %c1_91 = arith.constant 1 : index
    %c0_92 = arith.constant 0 : index
    %c0_93 = arith.constant 0 : index
    %278 = vector.load %arg7[%c1_91, %c0_92, %c0_93] : memref<2x1x32xf32, #tpu.memory_space<vmem>>, vector<1x1x32xf32>
    %279 = vector.shape_cast %278 : vector<1x1x32xf32> to vector<1x32xf32>
    %280 = vector.broadcast %279 : vector<1x32xf32> to vector<16x32xf32>
    %281 = arith.addf %277, %280 : vector<16x32xf32>
    %c1_94 = arith.constant 1 : index
    %c0_95 = arith.constant 0 : index
    %c0_96 = arith.constant 0 : index
    %282 = vector.load %arg8[%c1_94, %c0_95, %c0_96] : memref<2x1x32xf32, #tpu.memory_space<vmem>>, vector<1x1x32xf32>
    %283 = vector.shape_cast %282 : vector<1x1x32xf32> to vector<1x32xf32>
    %c1_97 = arith.constant 1 : index
    %c0_98 = arith.constant 0 : index
    %c0_99 = arith.constant 0 : index
    %284 = vector.load %arg9[%c1_97, %c0_98, %c0_99] : memref<2x1x32xf32, #tpu.memory_space<vmem>>, vector<1x1x32xf32>
    %285 = vector.shape_cast %284 : vector<1x1x32xf32> to vector<1x32xf32>
    %cst_100 = arith.constant dense<0.000000e+00> : vector<16xf32>
    %286 = vector.multi_reduction <add>, %281, %cst_100 [1] : vector<16x32xf32> to vector<16xf32>
    %287 = vector.shape_cast %286 : vector<16xf32> to vector<16x1xf32>
    %cst_101 = arith.constant 3.200000e+01 : f32
    %288 = vector.broadcast %cst_101 : f32 to vector<16x1xf32>
    %289 = arith.divf %287, %288 : vector<16x1xf32>
    %290 = vector.broadcast %289 : vector<16x1xf32> to vector<16x32xf32>
    %291 = arith.subf %281, %290 : vector<16x32xf32>
    %292 = vector.broadcast %289 : vector<16x1xf32> to vector<16x32xf32>
    %293 = arith.subf %281, %292 : vector<16x32xf32>
    %294 = arith.mulf %291, %293 : vector<16x32xf32>
    %cst_102 = arith.constant dense<0.000000e+00> : vector<16xf32>
    %295 = vector.multi_reduction <add>, %294, %cst_102 [1] : vector<16x32xf32> to vector<16xf32>
    %296 = vector.shape_cast %295 : vector<16xf32> to vector<16x1xf32>
    %cst_103 = arith.constant 3.200000e+01 : f32
    %297 = vector.broadcast %cst_103 : f32 to vector<16x1xf32>
    %298 = arith.divf %296, %297 : vector<16x1xf32>
    %299 = vector.broadcast %289 : vector<16x1xf32> to vector<16x32xf32>
    %300 = arith.subf %281, %299 : vector<16x32xf32>
    %cst_104 = arith.constant 9.99999974E-6 : f32
    %301 = vector.broadcast %cst_104 : f32 to vector<16x1xf32>
    %302 = arith.addf %298, %301 : vector<16x1xf32>
    %303 = math.rsqrt %302 : vector<16x1xf32>
    %304 = vector.broadcast %303 : vector<16x1xf32> to vector<16x32xf32>
    %305 = arith.mulf %300, %304 : vector<16x32xf32>
    %306 = vector.broadcast %283 : vector<1x32xf32> to vector<16x32xf32>
    %307 = arith.mulf %305, %306 : vector<16x32xf32>
    %308 = vector.broadcast %285 : vector<1x32xf32> to vector<16x32xf32>
    %309 = arith.addf %307, %308 : vector<16x32xf32>
    %c1_105 = arith.constant 1 : index
    %c0_106 = arith.constant 0 : index
    %c0_107 = arith.constant 0 : index
    %310 = vector.load %arg10[%c1_105, %c0_106, %c0_107] : memref<2x32x64xbf16, #tpu.memory_space<vmem>>, vector<1x32x64xbf16>
    %311 = vector.shape_cast %310 : vector<1x32x64xbf16> to vector<32x64xbf16>
    %312 = arith.truncf %309 : vector<16x32xf32> to vector<16x32xbf16>
    %cst_108 = arith.constant dense<0.000000e+00> : vector<16x64xf32>
    %313 = tpu.matmul %312, %311, %cst_108 {dimension_numbers = #tpu.dot_dimension_numbers<[1], [0], [0], [1], [0, 0, 1, 1], [], []>} : vector<16x32xbf16>, vector<32x64xbf16>, vector<16x64xf32> -> vector<16x64xf32>
    %c1_109 = arith.constant 1 : index
    %c0_110 = arith.constant 0 : index
    %c0_111 = arith.constant 0 : index
    %314 = vector.load %arg11[%c1_109, %c0_110, %c0_111] : memref<2x1x64xf32, #tpu.memory_space<vmem>>, vector<1x1x64xf32>
    %315 = vector.shape_cast %314 : vector<1x1x64xf32> to vector<1x64xf32>
    %316 = vector.broadcast %315 : vector<1x64xf32> to vector<16x64xf32>
    %317 = arith.addf %313, %316 : vector<16x64xf32>
    %cst_112 = arith.constant 5.000000e-01 : f32
    %318 = vector.broadcast %cst_112 : f32 to vector<16x64xf32>
    %319 = arith.mulf %318, %317 : vector<16x64xf32>
    %cst_113 = arith.constant 4.471500e-02 : f32
    %320 = vector.broadcast %cst_113 : f32 to vector<16x64xf32>
    %321 = arith.mulf %320, %317 : vector<16x64xf32>
    %322 = arith.mulf %321, %317 : vector<16x64xf32>
    %323 = arith.mulf %322, %317 : vector<16x64xf32>
    %324 = arith.addf %317, %323 : vector<16x64xf32>
    %cst_114 = arith.constant 0.797884583 : f32
    %325 = vector.broadcast %cst_114 : f32 to vector<16x64xf32>
    %326 = arith.mulf %325, %324 : vector<16x64xf32>
    %327 = math.tanh %326 : vector<16x64xf32>
    %cst_115 = arith.constant 1.000000e+00 : f32
    %328 = vector.broadcast %cst_115 : f32 to vector<16x64xf32>
    %329 = arith.addf %328, %327 : vector<16x64xf32>
    %330 = arith.mulf %319, %329 : vector<16x64xf32>
    %c1_116 = arith.constant 1 : index
    %c0_117 = arith.constant 0 : index
    %c0_118 = arith.constant 0 : index
    %331 = vector.load %arg12[%c1_116, %c0_117, %c0_118] : memref<2x64x32xbf16, #tpu.memory_space<vmem>>, vector<1x64x32xbf16>
    %332 = vector.shape_cast %331 : vector<1x64x32xbf16> to vector<64x32xbf16>
    %333 = arith.truncf %330 : vector<16x64xf32> to vector<16x64xbf16>
    %cst_119 = arith.constant dense<0.000000e+00> : vector<16x32xf32>
    %334 = tpu.matmul %333, %332, %cst_119 {dimension_numbers = #tpu.dot_dimension_numbers<[1], [0], [0], [1], [0, 0, 1, 1], [], []>} : vector<16x64xbf16>, vector<64x32xbf16>, vector<16x32xf32> -> vector<16x32xf32>
    %335 = arith.addf %281, %334 : vector<16x32xf32>
    %c1_120 = arith.constant 1 : index
    %c0_121 = arith.constant 0 : index
    %c0_122 = arith.constant 0 : index
    %336 = vector.load %arg13[%c1_120, %c0_121, %c0_122] : memref<2x1x32xf32, #tpu.memory_space<vmem>>, vector<1x1x32xf32>
    %337 = vector.shape_cast %336 : vector<1x1x32xf32> to vector<1x32xf32>
    %338 = vector.broadcast %337 : vector<1x32xf32> to vector<16x32xf32>
    %339 = arith.addf %335, %338 : vector<16x32xf32>
    %c0_123 = arith.constant 0 : index
    %c0_124 = arith.constant 0 : index
    %340 = vector.load %arg14[%c0_123, %c0_124] : memref<1x32xf32, #tpu.memory_space<vmem>>, vector<1x32xf32>
    %c0_125 = arith.constant 0 : index
    %c0_126 = arith.constant 0 : index
    %341 = vector.load %arg15[%c0_125, %c0_126] : memref<1x32xf32, #tpu.memory_space<vmem>>, vector<1x32xf32>
    %cst_127 = arith.constant dense<0.000000e+00> : vector<16xf32>
    %342 = vector.multi_reduction <add>, %339, %cst_127 [1] : vector<16x32xf32> to vector<16xf32>
    %343 = vector.shape_cast %342 : vector<16xf32> to vector<16x1xf32>
    %cst_128 = arith.constant 3.200000e+01 : f32
    %344 = vector.broadcast %cst_128 : f32 to vector<16x1xf32>
    %345 = arith.divf %343, %344 : vector<16x1xf32>
    %346 = vector.broadcast %345 : vector<16x1xf32> to vector<16x32xf32>
    %347 = arith.subf %339, %346 : vector<16x32xf32>
    %348 = vector.broadcast %345 : vector<16x1xf32> to vector<16x32xf32>
    %349 = arith.subf %339, %348 : vector<16x32xf32>
    %350 = arith.mulf %347, %349 : vector<16x32xf32>
    %cst_129 = arith.constant dense<0.000000e+00> : vector<16xf32>
    %351 = vector.multi_reduction <add>, %350, %cst_129 [1] : vector<16x32xf32> to vector<16xf32>
    %352 = vector.shape_cast %351 : vector<16xf32> to vector<16x1xf32>
    %cst_130 = arith.constant 3.200000e+01 : f32
    %353 = vector.broadcast %cst_130 : f32 to vector<16x1xf32>
    %354 = arith.divf %352, %353 : vector<16x1xf32>
    %355 = vector.broadcast %345 : vector<16x1xf32> to vector<16x32xf32>
    %356 = arith.subf %339, %355 : vector<16x32xf32>
    %cst_131 = arith.constant 9.99999974E-6 : f32
    %357 = vector.broadcast %cst_131 : f32 to vector<16x1xf32>
    %358 = arith.addf %354, %357 : vector<16x1xf32>
    %359 = math.rsqrt %358 : vector<16x1xf32>
    %360 = vector.broadcast %359 : vector<16x1xf32> to vector<16x32xf32>
    %361 = arith.mulf %356, %360 : vector<16x32xf32>
    %362 = vector.broadcast %340 : vector<1x32xf32> to vector<16x32xf32>
    %363 = arith.mulf %361, %362 : vector<16x32xf32>
    %364 = vector.broadcast %341 : vector<1x32xf32> to vector<16x32xf32>
    %365 = arith.addf %363, %364 : vector<16x32xf32>
    %366 = vector.shape_cast %365 : vector<16x32xf32> to vector<2x8x32xf32>
    %367 = vector.shape_cast %14 : vector<2x8xf32> to vector<2x8x1xf32>
    %368 = vector.broadcast %367 : vector<2x8x1xf32> to vector<2x8x32xf32>
    %369 = arith.mulf %366, %368 : vector<2x8x32xf32>
    %cst_132 = arith.constant dense<0.000000e+00> : vector<2x32xf32>
    %370 = vector.multi_reduction <add>, %369, %cst_132 [1] : vector<2x8x32xf32> to vector<2x32xf32>
    %cst_133 = arith.constant dense<0.000000e+00> : vector<2xf32>
    %371 = vector.multi_reduction <add>, %14, %cst_133 [1] : vector<2x8xf32> to vector<2xf32>
    %372 = vector.shape_cast %371 : vector<2xf32> to vector<2x1xf32>
    %cst_134 = arith.constant 1.000000e+00 : f32
    %373 = vector.broadcast %cst_134 : f32 to vector<2x1xf32>
    %374 = arith.maximumf %372, %373 : vector<2x1xf32>
    %375 = tpu.reciprocal %374 {approx = true} : vector<2x1xf32> -> vector<2x1xf32>
    %376 = vector.broadcast %375 : vector<2x1xf32> to vector<2x32xf32>
    %377 = arith.mulf %370, %376 : vector<2x32xf32>
    %c0_135 = arith.constant 0 : index
    %c0_136 = arith.constant 0 : index
    %378 = vector.load %arg16[%c0_135, %c0_136] : memref<2x32xf32, #tpu.memory_space<vmem>>, vector<2x32xf32>
    tpu.vector_store %arg16[%c0_135, %c0_136], %377 {strides = array<i32>} : memref<2x32xf32, #tpu.memory_space<vmem>>, vector<2x32xf32>,
    return
  }
}

</mosaic_0001>

<llo_original>
// kernel: esm2_representation_lora_forward.1
$region0: #{esm2_representation_lora_forward.1}
  #allocation0 [shape = 'u32[]', space=smem, size = 0x4, offset = 0x4, fixed_abs, tag = 'smem constant byte address 0x4 - core index']
  #allocation1 [shape = 'u32[144,128]{1,0:T(1,128)}', space=vmem, size = 0x12000, scoped, tag = 'internal scratch']
  %s0 = inlined_call_operand.vmem [shape: s32[2,8], index: 0, kind: input, shape index: {}]
  %s1 = inlined_call_operand.vmem [shape: bf16[33,32], index: 1, kind: input, shape index: {}]
  %s2 = inlined_call_operand.vmem [shape: f32[2,1,32], index: 2, kind: input, shape index: {}]
  %s3 = inlined_call_operand.vmem [shape: f32[2,1,32], index: 3, kind: input, shape index: {}]
  %s4 = inlined_call_operand.vmem [shape: bf16[2,32,96], index: 4, kind: input, shape index: {}]
  %s5 = inlined_call_operand.vmem [shape: f32[2,1,96], index: 5, kind: input, shape index: {}]
  %s6 = inlined_call_operand.vmem [shape: bf16[2,32,32], index: 6, kind: input, shape index: {}]
  %s7 = inlined_call_operand.vmem [shape: f32[2,1,32], index: 7, kind: input, shape index: {}]
  %s8 = inlined_call_operand.vmem [shape: f32[2,1,32], index: 8, kind: input, shape index: {}]
  %s9 = inlined_call_operand.vmem [shape: f32[2,1,32], index: 9, kind: input, shape index: {}]
  %s10 = inlined_call_operand.vmem [shape: bf16[2,32,64], index: 10, kind: input, shape index: {}]
  %s11 = inlined_call_operand.vmem [shape: f32[2,1,64], index: 11, kind: input, shape index: {}]
  %s12 = inlined_call_operand.vmem [shape: bf16[2,64,32], index: 12, kind: input, shape index: {}]
  %s13 = inlined_call_operand.vmem [shape: f32[2,1,32], index: 13, kind: input, shape index: {}]
  %s14 = inlined_call_operand.vmem [shape: f32[1,32], index: 14, kind: input, shape index: {}]
  %s15 = inlined_call_operand.vmem [shape: f32[1,32], index: 15, kind: input, shape index: {}]
  %s16 = inlined_call_operand.hbm [shape: f32[2,32], index: 16, kind: output, shape index: {}]
  %s17 = sld [smem:[#allocation0]]
  $region74: #{esm2_representation_lora_forward.1} parent=0
    _
  %s19 = ssub.s32 1, %s17
  %s20 = scalar_select 0, %s19, %s17
  $region1: #{esm2_representation_lora_forward.1} parent=0
    #allocation2 [shape = 'u8[1024]{0}', space=vmem, size = 0x400, scoped, tag = 'output window, operand 0, single buffered']
    #allocation3 [shape = 's32[1]{0}', space=sflag, size = 0x4, scoped, tag = 'scoped memory for esm2_representation_lora_forward.1']
    %21 = vsyncpa [#allocation3], 0
    // Predicated region
    $region2: #{esm2_representation_lora_forward.1} parent=1 // pred_check
      _
    $region3: #{esm2_representation_lora_forward.1} parent=1 // pred_check_branch
      %23 = sbr.rel (0) target = $region5
    $region4: #{esm2_representation_lora_forward.1} parent=1 // pred_region
      _
    $region5: #{esm2_representation_lora_forward.1} parent=1 // pred_fallthru
      _
    // Predicated region
    $region6: #{esm2_representation_lora_forward.1} parent=1 // pred_check
      _
    $region7: #{esm2_representation_lora_forward.1} parent=1 // pred_check_branch
      %25 = sbr.rel (0) target = $region9
    $region8: #{esm2_representation_lora_forward.1} parent=1 // pred_region
      _
    $region9: #{esm2_representation_lora_forward.1} parent=1 // pred_fallthru
      _
    // Predicated region
    $region10: #{esm2_representation_lora_forward.1} parent=1 // pred_check
      _
    $region11: #{esm2_representation_lora_forward.1} parent=1 // pred_check_branch
      %27 = sbr.rel (0) target = $region13
    $region12: #{esm2_representation_lora_forward.1} parent=1 // pred_region
      _
    $region13: #{esm2_representation_lora_forward.1} parent=1 // pred_fallthru
      _
    // Predicated region
    $region14: #{esm2_representation_lora_forward.1} parent=1 // pred_check
      _
    $region15: #{esm2_representation_lora_forward.1} parent=1 // pred_check_branch
      %29 = sbr.rel (0) target = $region17
    $region16: #{esm2_representation_lora_forward.1} parent=1 // pred_region
      _
    $region17: #{esm2_representation_lora_forward.1} parent=1 // pred_fallthru
      _
    // Predicated region
    $region18: #{esm2_representation_lora_forward.1} parent=1 // pred_check
      _
    $region19: #{esm2_representation_lora_forward.1} parent=1 // pred_check_branch
      %31 = sbr.rel (0) target = $region21
    $region20: #{esm2_representation_lora_forward.1} parent=1 // pred_region
      _
    $region21: #{esm2_representation_lora_forward.1} parent=1 // pred_fallthru
      _
    // Predicated region
    $region22: #{esm2_representation_lora_forward.1} parent=1 // pred_check
      _
    $region23: #{esm2_representation_lora_forward.1} parent=1 // pred_check_branch
      %33 = sbr.rel (0) target = $region25
    $region24: #{esm2_representation_lora_forward.1} parent=1 // pred_region
      _
    $region25: #{esm2_representation_lora_forward.1} parent=1 // pred_fallthru
      _
    // Predicated region
    $region26: #{esm2_representation_lora_forward.1} parent=1 // pred_check
      _
    $region27: #{esm2_representation_lora_forward.1} parent=1 // pred_check_branch
      %35 = sbr.rel (0) target = $region29
    $region28: #{esm2_representation_lora_forward.1} parent=1 // pred_region
      _
    $region29: #{esm2_representation_lora_forward.1} parent=1 // pred_fallthru
      _
    // Predicated region
    $region30: #{esm2_representation_lora_forward.1} parent=1 // pred_check
      _
    $region31: #{esm2_representation_lora_forward.1} parent=1 // pred_check_branch
      %37 = sbr.rel (0) target = $region33
    $region32: #{esm2_representation_lora_forward.1} parent=1 // pred_region
      _
    $region33: #{esm2_representation_lora_forward.1} parent=1 // pred_fallthru
      _
    // Predicated region
    $region34: #{esm2_representation_lora_forward.1} parent=1 // pred_check
      _
    $region35: #{esm2_representation_lora_forward.1} parent=1 // pred_check_branch
      %39 = sbr.rel (0) target = $region37
    $region36: #{esm2_representation_lora_forward.1} parent=1 // pred_region
      _
    $region37: #{esm2_representation_lora_forward.1} parent=1 // pred_fallthru
      _
    // Predicated region
    $region38: #{esm2_representation_lora_forward.1} parent=1 // pred_check
      _
    $region39: #{esm2_representation_lora_forward.1} parent=1 // pred_check_branch
      %41 = sbr.rel (0) target = $region41
    $region40: #{esm2_representation_lora_forward.1} parent=1 // pred_region
      _
    $region41: #{esm2_representation_lora_forward.1} parent=1 // pred_fallthru
      _
    // Predicated region
    $region42: #{esm2_representation_lora_forward.1} parent=1 // pred_check
      _
    $region43: #{esm2_representation_lora_forward.1} parent=1 // pred_check_branch
      %43 = sbr.rel (0) target = $region45
    $region44: #{esm2_representation_lora_forward.1} parent=1 // pred_region
      _
    $region45: #{esm2_representation_lora_forward.1} parent=1 // pred_fallthru
      _
    // Predicated region
    $region46: #{esm2_representation_lora_forward.1} parent=1 // pred_check
      _
    $region47: #{esm2_representation_lora_forward.1} parent=1 // pred_check_branch
      %45 = sbr.rel (0) target = $region49
    $region48: #{esm2_representation_lora_forward.1} parent=1 // pred_region
      _
    $region49: #{esm2_representation_lora_forward.1} parent=1 // pred_fallthru
      _
    // Predicated region
    $region50: #{esm2_representation_lora_forward.1} parent=1 // pred_check
      _
    $region51: #{esm2_representation_lora_forward.1} parent=1 // pred_check_branch
      %47 = sbr.rel (0) target = $region53
    $region52: #{esm2_representation_lora_forward.1} parent=1 // pred_region
      _
    $region53: #{esm2_representation_lora_forward.1} parent=1 // pred_fallthru
      _
    // Predicated region
    $region54: #{esm2_representation_lora_forward.1} parent=1 // pred_check
      _
    $region55: #{esm2_representation_lora_forward.1} parent=1 // pred_check_branch
      %49 = sbr.rel (0) target = $region57
    $region56: #{esm2_representation_lora_forward.1} parent=1 // pred_region
      _
    $region57: #{esm2_representation_lora_forward.1} parent=1 // pred_fallthru
      _
    // Predicated region
    $region58: #{esm2_representation_lora_forward.1} parent=1 // pred_check
      _
    $region59: #{esm2_representation_lora_forward.1} parent=1 // pred_check_branch
      %51 = sbr.rel (0) target = $region61
    $region60: #{esm2_representation_lora_forward.1} parent=1 // pred_region
      _
    $region61: #{esm2_representation_lora_forward.1} parent=1 // pred_fallthru
      _
    // Predicated region
    $region62: #{esm2_representation_lora_forward.1} parent=1 // pred_check
      _
    $region63: #{esm2_representation_lora_forward.1} parent=1 // pred_check_branch
      %53 = sbr.rel (0) target = $region65
    $region64: #{esm2_representation_lora_forward.1} parent=1 // pred_region
      _
    $region65: #{esm2_representation_lora_forward.1} parent=1 // pred_fallthru
      _
    %v55 = vld [vmem:[%s0] sm:$0x3]
    %v56 = vlaneseq
    %v57 = vshrl.u32 %v56, 7
    %v58 = vsub.s32 0, %v57
    %v59 = vrot.slane %v55, %v58
    %61 = vbcast.lane.b32.xlu0 %v59, 256
    %v62 = vpop.permute.xlu0 %61
    %v63 = vlaneseq
    %v64 = vshrl.u32 %v63, 7
    %v65 = vsub.s32 1, %v64
    %v66 = vrot.slane %v55, %v65
    %68 = vbcast.lane.b32.xlu0 %v66, 256
    %v69 = vpop.permute.xlu0 %68
    %v70 = vlaneseq
    %v71 = vand.u32 %v70, 127
    %vm72 = vcmp.eq.s32.totalorder %v62, %v71
    %vm73 = vcmp.eq.s32.totalorder %v69, %v71
    %v74 = vsel %vm72, 1, 0
    %v75 = vsel %vm73, 1, 0
    %v76 = vcvt.s32.f32 %v74
    %v77 = vcvt.s32.f32 %v75
    %v78 = vld [vmem:[%s1] sm:$0xf]
    %v79 = vld [vmem:[%s1 + $0x4] sm:$0xf]
    %v80 = vld [vmem:[%s1 + $0x8] sm:$0xf]
    %v81 = vld [vmem:[%s1 + $0xc] sm:$0xf]
    %v82 = vld [vmem:[%s1 + $0x10] sm:$0x1]
    %v83 = vpack.c.bf16 %v77, %v76
    %v89 = vunpack.c.l.b16 %v78
    %v90 = vunpack.c.l.b16 %v79
    %v91 = vunpack.c.l.b16 %v80
    %v92 = vunpack.c.l.b16 %v81
    %v93 = vunpack.c.l.b16 %v82
    %v94 = vpack.c.b16 %v90, %v89
    %v95 = vpack.c.b16 %v92, %v91
    %v96 = vpack.c.b16 %v93, %v93
    %vm99 = vcmask 269312
    %v101 = vsel %vm99, %v83, 0
    %vm103 = vcmask 1040384
    %v104 = vsel 0, 4294967295, 65535
    %v105 = vsel %vm103, %v104, 0
    %v107 = vand.u32 %v96, %v105
    %109 = vmatprep.subr.bf16.mxu0 0
    %110 = vmatpush1.bf16.msra.mxu0 %v94
    %111 = vmatprep.subr.bf16.mxu0 0
    %112 = vmatpush1.bf16.msra.mxu0 %v95
    %113 = vmatprep.subr.bf16.mxu0 0
    %114 = vmatpush1.bf16.msra.mxu0 %v107
    %115 = vmatprep.subr.bf16.mxu0 0
    %116 = vmatpush1.bf16.msra.mxu0 0
    %117 = vmatprep.subr.bf16.mxu0 0
    %118 = vmatpush1.bf16.msra.mxu0 0
    %119 = vmatprep.subr.bf16.mxu0 0
    %120 = vmatpush1.bf16.msra.mxu0 0
    %121 = vmatprep.subr.bf16.mxu0 0
    %122 = vmatpush1.bf16.msra.mxu0 0
    %123 = vmatprep.subr.bf16.mxu0 0
    %124 = vmatpush1.bf16.msra.mxu0 0
    %125 = vmatprep.subr.bf16.mxu0 0
    %126 = vmatpush1.bf16.msra.mxu0 0
    %127 = vmatprep.subr.bf16.mxu0 0
    %128 = vmatpush1.bf16.msra.mxu0 0
    %129 = vmatprep.subr.bf16.mxu0 0
    %130 = vmatpush1.bf16.msra.mxu0 0
    %131 = vmatprep.subr.bf16.mxu0 0
    %132 = vmatpush1.bf16.msra.mxu0 0
    %133 = vmatprep.subr.bf16.mxu0 0
    %134 = vmatpush1.bf16.msra.mxu0 0
    %135 = vmatprep.subr.bf16.mxu0 0
    %136 = vmatpush1.bf16.msra.mxu0 0
    %137 = vmatprep.subr.bf16.mxu0 0
    %138 = vmatpush1.bf16.msra.mxu0 0
    %139 = vmatprep.subr.bf16.mxu0 0
    %140 = vmatpush1.bf16.msra.mxu0 0
    %141 = vmatprep.mubr.bf16.mxu0 0
    %142 = vmatmul.mubr.bf16.gmra.mrb[0].mxu0 %v101
    %v143 = vpop.f32.mrb[0].mxu0
    %v144 = vadd.f32 0.0, %v143
    %v145 = vpop.f32.mrb[0].mxu0
    %v146 = vpop.f32.mrb[0].mxu0
    %v147 = vadd.f32 0.0, %v146
    %v148 = vpop.f32.mrb[0].mxu0
    %149 = vdwg.mxu0
    %vm150 = vcmp.ne.s32.totalorder %v55, 1
    %v151 = vsel %vm150, 1, 0
    %v152 = vcvt.s32.f32 %v151
    %vm153 = vcmp.eq.s32.totalorder %v55, 1
    %v154 = vsel %vm153, -1e+09, 0.0
    %v157 = vunpack.c.l.s4 1966171168
    %v158 = vunpack.c.0.s8 %v157
    %v159 = vlaneseq
    %v160 = vshrl.u32 %v159, 7
    %v161 = vsub.s32 %v158, %v160
    %v162 = vrot.slane %v154, %v161
    %v163 = vcombine.high %v162, %v162
    %v165 = vunpack.c.l.s4 1966171168
    %v166 = vunpack.c.0.s8 %v165
    %v167 = vlaneseq
    %v168 = vshrl.u32 %v167, 7
    %v169 = vsub.s32 %v166, %v168
    %v170 = vrot.slane %v162, %v169
    %v172 = vunpack.c.l.s4 1966171168
    %v173 = vunpack.c.0.s8 %v172
    %v174 = vlaneseq
    %v175 = vshrl.u32 %v174, 7
    %v176 = vsub.s32 %v173, %v175
    %v177 = vrot.slane %v163, %v176
    %v178 = vlaneseq
    %v179 = vshrl.u32 %v178, 7
    %v180 = vsub.s32 0, %v179
    %v181 = vrot.slane %v170, %v180
    %v182 = vlaneseq
    %v183 = vshrl.u32 %v182, 7
    %v184 = vsub.s32 0, %v183
    %v185 = vrot.slane %v177, %v184
    %v188 = vld [vmem:[%s2] sm:$0x1]
    %v189 = vld [vmem:[%s3] sm:$0x1]
    %vm190 = vcmask 261120
    %v191 = vsel %vm190, %v144, 0.0
    %192 = vadd.xlane.f32.xlu0 %v191
    %v193 = vpop.xlane.xlu0 %192
    %v194 = vsel %vm190, %v147, 0.0
    %195 = vadd.xlane.f32.xlu0 %v194
    %v196 = vpop.xlane.xlu0 %195
    %v197 = vrcp.pop 32.0
    %v198 = vmul.f32 %v193, %v197
    %v199 = vmul.f32 %v196, %v197
    %v200 = vsub.f32 %v144, %v198
    %v201 = vsub.f32 %v147, %v199
    %v202 = vmul.f32 %v200, %v200
    %v203 = vmul.f32 %v201, %v201
    %v204 = vsel %vm190, %v202, 0.0
    %205 = vadd.xlane.f32.xlu0 %v204
    %v206 = vpop.xlane.xlu0 %205
    %v207 = vsel %vm190, %v203, 0.0
    %208 = vadd.xlane.f32.xlu0 %v207
    %v209 = vpop.xlane.xlu0 %208
    %v210 = vmul.f32 %v206, %v197
    %v211 = vmul.f32 %v209, %v197
    %v212 = vadd.f32 %v210, 1e-05
    %v213 = vadd.f32 %v211, 1e-05
    %v214 = vrsqrt.pop %v212
    %v215 = vrsqrt.pop %v213
    %v216 = vmul.f32 %v200, %v214
    %v217 = vmul.f32 %v201, %v215
    %v219 = vlaneseq
    %v220 = vshrl.u32 %v219, 7
    %v221 = vsub.s32 0, %v220
    %v222 = vrot.slane %v188, %v221
    %v224 = vmul.f32 %v216, %v222
    %v225 = vmul.f32 %v217, %v222
    %v227 = vlaneseq
    %v228 = vshrl.u32 %v227, 7
    %v229 = vsub.s32 0, %v228
    %v230 = vrot.slane %v189, %v229
    %v232 = vadd.f32 %v224, %v230
    %v233 = vadd.f32 %v225, %v230
    %v234 = vld [vmem:[%s4] sm:$0xf]
    %v235 = vld [vmem:[%s4 + $0x4] sm:$0xf]
    %v236 = vld [vmem:[%s4 + $0x8] sm:$0xf]
    %v237 = vld [vmem:[%s4 + $0xc] sm:$0xf]
    %v238 = vpack.c.bf16 %v233, %v232
    %v239 = vld [vmem:[%s5] sm:$0x1]
    %v241 = vlaneseq
    %v242 = vshrl.u32 %v241, 7
    %v243 = vsub.s32 0, %v242
    %v244 = vrot.slane %v239, %v243
    %v250 = vunpack.c.l.b16 %v234
    %v251 = vunpack.c.l.b16 %v235
    %v252 = vunpack.c.l.b16 %v236
    %v253 = vunpack.c.l.b16 %v237
    %v254 = vpack.c.b16 %v251, %v250
    %v255 = vpack.c.b16 %v253, %v252
    %v259 = vsel %vm190, %v238, 0
    %261 = vmatprep.subr.bf16.mxu0 0
    %262 = vmatpush1.bf16.msra.mxu0 %v254
    %263 = vmatprep.subr.bf16.mxu0 0
    %264 = vmatpush1.bf16.msra.mxu0 %v255
    %265 = vmatprep.subr.bf16.mxu0 0
    %266 = vmatpush1.bf16.msra.mxu0 0
    %267 = vmatprep.subr.bf16.mxu0 0
    %268 = vmatpush1.bf16.msra.mxu0 0
    %269 = vmatprep.subr.bf16.mxu0 0
    %270 = vmatpush1.bf16.msra.mxu0 0
    %271 = vmatprep.subr.bf16.mxu0 0
    %272 = vmatpush1.bf16.msra.mxu0 0
    %273 = vmatprep.subr.bf16.mxu0 0
    %274 = vmatpush1.bf16.msra.mxu0 0
    %275 = vmatprep.subr.bf16.mxu0 0
    %276 = vmatpush1.bf16.msra.mxu0 0
    %277 = vmatprep.subr.bf16.mxu0 0
    %278 = vmatpush1.bf16.msra.mxu0 0
    %279 = vmatprep.subr.bf16.mxu0 0
    %280 = vmatpush1.bf16.msra.mxu0 0
    %281 = vmatprep.subr.bf16.mxu0 0
    %282 = vmatpush1.bf16.msra.mxu0 0
    %283 = vmatprep.subr.bf16.mxu0 0
    %284 = vmatpush1.bf16.msra.mxu0 0
    %285 = vmatprep.subr.bf16.mxu0 0
    %286 = vmatpush1.bf16.msra.mxu0 0
    %287 = vmatprep.subr.bf16.mxu0 0
    %288 = vmatpush1.bf16.msra.mxu0 0
    %289 = vmatprep.subr.bf16.mxu0 0
    %290 = vmatpush1.bf16.msra.mxu0 0
    %291 = vmatprep.subr.bf16.mxu0 0
    %292 = vmatpush1.bf16.msra.mxu0 0
    %293 = vmatprep.mubr.bf16.mxu0 0
    %294 = vmatmul.mubr.bf16.gmra.mrb[0].mxu0 %v259
    %v295 = vpop.f32.mrb[0].mxu0
    %v296 = vadd.f32 %v244, %v295
    %v297 = vpop.f32.mrb[0].mxu0
    %v298 = vpop.f32.mrb[0].mxu0
    %v299 = vadd.f32 %v244, %v298
    %v300 = vpop.f32.mrb[0].mxu0
    %301 = vdwg.mxu0
    %304 = vrot.lane.b32.xlu0 %v296, 120
    %v305 = vpop.permute.xlu0 %304
    %306 = vrot.lane.b32.xlu0 %v299, 120
    %v307 = vpop.permute.xlu0 %306
    %310 = vrot.lane.b32.xlu0 %v296, 112
    %v311 = vpop.permute.xlu0 %310
    %312 = vrot.lane.b32.xlu0 %v299, 112
    %v313 = vpop.permute.xlu0 %312
    %316 = vrot.lane.b32.xlu0 %v296, 104
    %v317 = vpop.permute.xlu0 %316
    %318 = vrot.lane.b32.xlu0 %v299, 104
    %v319 = vpop.permute.xlu0 %318
    %v322 = vpack.c.bf16 %v296, %v296
    %v323 = vpack.c.bf16 %v299, %v299
    %v324 = vpack.c.bf16 %v305, %v305
    %v325 = vpack.c.bf16 %v307, %v307
    %v326 = vpack.c.bf16 %v311, %v311
    %v327 = vpack.c.bf16 %v313, %v313
    %v328 = vpack.c.bf16 %v317, %v317
    %v329 = vpack.c.bf16 %v319, %v319
    %331 = vrot.lane.b32.xlu0 %v322, 96
    %v332 = vpop.permute.xlu0 %331
    %vm333 = vcmask 64512
    %v335 = vsel %vm333, %v322, 0
    %v338 = vsel %vm333, %v332, 0
    %340 = vmatprep.subr.bf16.mxu0 0
    %341 = vmatpush1.bf16.xpose.msra.mxu0 %v338
    %342 = vmatprep.subr.bf16.mxu0 0
    %343 = vmatpush1.bf16.xpose.msra.mxu0 0
    %344 = vmatprep.subr.bf16.mxu0 0
    %345 = vmatpush1.bf16.xpose.msra.mxu0 0
    %346 = vmatprep.subr.bf16.mxu0 0
    %347 = vmatpush1.bf16.xpose.msra.mxu0 0
    %348 = vmatprep.subr.bf16.mxu0 0
    %349 = vmatpush1.bf16.xpose.msra.mxu0 0
    %350 = vmatprep.subr.bf16.mxu0 0
    %351 = vmatpush1.bf16.xpose.msra.mxu0 0
    %352 = vmatprep.subr.bf16.mxu0 0
    %353 = vmatpush1.bf16.xpose.msra.mxu0 0
    %354 = vmatprep.subr.bf16.mxu0 0
    %355 = vmatpush1.bf16.xpose.msra.mxu0 0
    %356 = vmatprep.subr.bf16.mxu0 0
    %357 = vmatpush1.bf16.xpose.msra.mxu0 0
    %358 = vmatprep.subr.bf16.mxu0 0
    %359 = vmatpush1.bf16.xpose.msra.mxu0 0
    %360 = vmatprep.subr.bf16.mxu0 0
    %361 = vmatpush1.bf16.xpose.msra.mxu0 0
    %362 = vmatprep.subr.bf16.mxu0 0
    %363 = vmatpush1.bf16.xpose.msra.mxu0 0
    %364 = vmatprep.subr.bf16.mxu0 0
    %365 = vmatpush1.bf16.xpose.msra.mxu0 0
    %366 = vmatprep.subr.bf16.mxu0 0
    %367 = vmatpush1.bf16.xpose.msra.mxu0 0
    %368 = vmatprep.subr.bf16.mxu0 0
    %369 = vmatpush1.bf16.xpose.msra.mxu0 0
    %370 = vmatprep.subr.bf16.mxu0 0
    %371 = vmatpush1.bf16.xpose.msra.mxu0 0
    %372 = vmatprep.mubr.bf16.mxu0 0
    %373 = vmatmul.mubr.bf16.gmra.mrb[0].mxu0 %v335
    %v374 = vpop.f32.mrb[0].mxu0
    %v375 = vadd.f32 0.0, %v374
    %v376 = vpop.f32.mrb[0].mxu0
    %v377 = vpop.f32.mrb[0].mxu0
    %v378 = vpop.f32.mrb[0].mxu0
    %379 = vdwg.mxu0
    %381 = vrot.lane.b32.xlu0 %v323, 96
    %v382 = vpop.permute.xlu0 %381
    %v384 = vsel %vm333, %v323, 0
    %v387 = vsel %vm333, %v382, 0
    %389 = vmatprep.subr.bf16.mxu0 0
    %390 = vmatpush1.bf16.xpose.msra.mxu0 %v387
    %391 = vmatprep.subr.bf16.mxu0 0
    %392 = vmatpush1.bf16.xpose.msra.mxu0 0
    %393 = vmatprep.subr.bf16.mxu0 0
    %394 = vmatpush1.bf16.xpose.msra.mxu0 0
    %395 = vmatprep.subr.bf16.mxu0 0
    %396 = vmatpush1.bf16.xpose.msra.mxu0 0
    %397 = vmatprep.subr.bf16.mxu0 0
    %398 = vmatpush1.bf16.xpose.msra.mxu0 0
    %399 = vmatprep.subr.bf16.mxu0 0
    %400 = vmatpush1.bf16.xpose.msra.mxu0 0
    %401 = vmatprep.subr.bf16.mxu0 0
    %402 = vmatpush1.bf16.xpose.msra.mxu0 0
    %403 = vmatprep.subr.bf16.mxu0 0
    %404 = vmatpush1.bf16.xpose.msra.mxu0 0
    %405 = vmatprep.subr.bf16.mxu0 0
    %406 = vmatpush1.bf16.xpose.msra.mxu0 0
    %407 = vmatprep.subr.bf16.mxu0 0
    %408 = vmatpush1.bf16.xpose.msra.mxu0 0
    %409 = vmatprep.subr.bf16.mxu0 0
    %410 = vmatpush1.bf16.xpose.msra.mxu0 0
    %411 = vmatprep.subr.bf16.mxu0 0
    %412 = vmatpush1.bf16.xpose.msra.mxu0 0
    %413 = vmatprep.subr.bf16.mxu0 0
    %414 = vmatpush1.bf16.xpose.msra.mxu0 0
    %415 = vmatprep.subr.bf16.mxu0 0
    %416 = vmatpush1.bf16.xpose.msra.mxu0 0
    %417 = vmatprep.subr.bf16.mxu0 0
    %418 = vmatpush1.bf16.xpose.msra.mxu0 0
    %419 = vmatprep.subr.bf16.mxu0 0
    %420 = vmatpush1.bf16.xpose.msra.mxu0 0
    %421 = vmatprep.mubr.bf16.mxu0 0
    %422 = vmatmul.mubr.bf16.gmra.mrb[0].mxu0 %v384
    %v423 = vpop.f32.mrb[0].mxu0
    %v424 = vadd.f32 0.0, %v423
    %v425 = vpop.f32.mrb[0].mxu0
    %v426 = vpop.f32.mrb[0].mxu0
    %v427 = vpop.f32.mrb[0].mxu0
    %428 = vdwg.mxu0
    %430 = vrot.lane.b32.xlu0 %v324, 96
    %v431 = vpop.permute.xlu0 %430
    %v433 = vsel %vm333, %v324, 0
    %v436 = vsel %vm333, %v431, 0
    %438 = vmatprep.subr.bf16.mxu0 0
    %439 = vmatpush1.bf16.xpose.msra.mxu0 %v436
    %440 = vmatprep.subr.bf16.mxu0 0
    %441 = vmatpush1.bf16.xpose.msra.mxu0 0
    %442 = vmatprep.subr.bf16.mxu0 0
    %443 = vmatpush1.bf16.xpose.msra.mxu0 0
    %444 = vmatprep.subr.bf16.mxu0 0
    %445 = vmatpush1.bf16.xpose.msra.mxu0 0
    %446 = vmatprep.subr.bf16.mxu0 0
    %447 = vmatpush1.bf16.xpose.msra.mxu0 0
    %448 = vmatprep.subr.bf16.mxu0 0
    %449 = vmatpush1.bf16.xpose.msra.mxu0 0
    %450 = vmatprep.subr.bf16.mxu0 0
    %451 = vmatpush1.bf16.xpose.msra.mxu0 0
    %452 = vmatprep.subr.bf16.mxu0 0
    %453 = vmatpush1.bf16.xpose.msra.mxu0 0
    %454 = vmatprep.subr.bf16.mxu0 0
    %455 = vmatpush1.bf16.xpose.msra.mxu0 0
    %456 = vmatprep.subr.bf16.mxu0 0
    %457 = vmatpush1.bf16.xpose.msra.mxu0 0
    %458 = vmatprep.subr.bf16.mxu0 0
    %459 = vmatpush1.bf16.xpose.msra.mxu0 0
    %460 = vmatprep.subr.bf16.mxu0 0
    %461 = vmatpush1.bf16.xpose.msra.mxu0 0
    %462 = vmatprep.subr.bf16.mxu0 0
    %463 = vmatpush1.bf16.xpose.msra.mxu0 0
    %464 = vmatprep.subr.bf16.mxu0 0
    %465 = vmatpush1.bf16.xpose.msra.mxu0 0
    %466 = vmatprep.subr.bf16.mxu0 0
    %467 = vmatpush1.bf16.xpose.msra.mxu0 0
    %468 = vmatprep.subr.bf16.mxu0 0
    %469 = vmatpush1.bf16.xpose.msra.mxu0 0
    %470 = vmatprep.mubr.bf16.mxu0 0
    %471 = vmatmul.mubr.bf16.gmra.mrb[0].mxu0 %v433
    %v472 = vpop.f32.mrb[0].mxu0
    %v473 = vadd.f32 0.0, %v472
    %v474 = vpop.f32.mrb[0].mxu0
    %v475 = vpop.f32.mrb[0].mxu0
    %v476 = vpop.f32.mrb[0].mxu0
    %477 = vdwg.mxu0
    %479 = vrot.lane.b32.xlu0 %v325, 96
    %v480 = vpop.permute.xlu0 %479
    %v482 = vsel %vm333, %v325, 0
    %v485 = vsel %vm333, %v480, 0
    %487 = vmatprep.subr.bf16.mxu0 0
    %488 = vmatpush1.bf16.xpose.msra.mxu0 %v485
    %489 = vmatprep.subr.bf16.mxu0 0
    %490 = vmatpush1.bf16.xpose.msra.mxu0 0
    %491 = vmatprep.subr.bf16.mxu0 0
    %492 = vmatpush1.bf16.xpose.msra.mxu0 0
    %493 = vmatprep.subr.bf16.mxu0 0
    %494 = vmatpush1.bf16.xpose.msra.mxu0 0
    %495 = vmatprep.subr.bf16.mxu0 0
    %496 = vmatpush1.bf16.xpose.msra.mxu0 0
    %497 = vmatprep.subr.bf16.mxu0 0
    %498 = vmatpush1.bf16.xpose.msra.mxu0 0
    %499 = vmatprep.subr.bf16.mxu0 0
    %500 = vmatpush1.bf16.xpose.msra.mxu0 0
    %501 = vmatprep.subr.bf16.mxu0 0
    %502 = vmatpush1.bf16.xpose.msra.mxu0 0
    %503 = vmatprep.subr.bf16.mxu0 0
    %504 = vmatpush1.bf16.xpose.msra.mxu0 0
    %505 = vmatprep.subr.bf16.mxu0 0
    %506 = vmatpush1.bf16.xpose.msra.mxu0 0
    %507 = vmatprep.subr.bf16.mxu0 0
    %508 = vmatpush1.bf16.xpose.msra.mxu0 0
    %509 = vmatprep.subr.bf16.mxu0 0
    %510 = vmatpush1.bf16.xpose.msra.mxu0 0
    %511 = vmatprep.subr.bf16.mxu0 0
    %512 = vmatpush1.bf16.xpose.msra.mxu0 0
    %513 = vmatprep.subr.bf16.mxu0 0
    %514 = vmatpush1.bf16.xpose.msra.mxu0 0
    %515 = vmatprep.subr.bf16.mxu0 0
    %516 = vmatpush1.bf16.xpose.msra.mxu0 0
    %517 = vmatprep.subr.bf16.mxu0 0
    %518 = vmatpush1.bf16.xpose.msra.mxu0 0
    %519 = vmatprep.mubr.bf16.mxu0 0
    %520 = vmatmul.mubr.bf16.gmra.mrb[0].mxu0 %v482
    %v521 = vpop.f32.mrb[0].mxu0
    %v522 = vadd.f32 0.0, %v521
    %v523 = vpop.f32.mrb[0].mxu0
    %v524 = vpop.f32.mrb[0].mxu0
    %v525 = vpop.f32.mrb[0].mxu0
    %526 = vdwg.mxu0
    %528 = vrot.lane.b32.xlu0 %v326, 96
    %v529 = vpop.permute.xlu0 %528
    %v531 = vsel %vm333, %v326, 0
    %v534 = vsel %vm333, %v529, 0
    %536 = vmatprep.subr.bf16.mxu0 0
    %537 = vmatpush1.bf16.xpose.msra.mxu0 %v534
    %538 = vmatprep.subr.bf16.mxu0 0
    %539 = vmatpush1.bf16.xpose.msra.mxu0 0
    %540 = vmatprep.subr.bf16.mxu0 0
    %541 = vmatpush1.bf16.xpose.msra.mxu0 0
    %542 = vmatprep.subr.bf16.mxu0 0
    %543 = vmatpush1.bf16.xpose.msra.mxu0 0
    %544 = vmatprep.subr.bf16.mxu0 0
    %545 = vmatpush1.bf16.xpose.msra.mxu0 0
    %546 = vmatprep.subr.bf16.mxu0 0
    %547 = vmatpush1.bf16.xpose.msra.mxu0 0
    %548 = vmatprep.subr.bf16.mxu0 0
    %549 = vmatpush1.bf16.xpose.msra.mxu0 0
    %550 = vmatprep.subr.bf16.mxu0 0
    %551 = vmatpush1.bf16.xpose.msra.mxu0 0
    %552 = vmatprep.subr.bf16.mxu0 0
    %553 = vmatpush1.bf16.xpose.msra.mxu0 0
    %554 = vmatprep.subr.bf16.mxu0 0
    %555 = vmatpush1.bf16.xpose.msra.mxu0 0
    %556 = vmatprep.subr.bf16.mxu0 0
    %557 = vmatpush1.bf16.xpose.msra.mxu0 0
    %558 = vmatprep.subr.bf16.mxu0 0
    %559 = vmatpush1.bf16.xpose.msra.mxu0 0
    %560 = vmatprep.subr.bf16.mxu0 0
    %561 = vmatpush1.bf16.xpose.msra.mxu0 0
    %562 = vmatprep.subr.bf16.mxu0 0
    %563 = vmatpush1.bf16.xpose.msra.mxu0 0
    %564 = vmatprep.subr.bf16.mxu0 0
    %565 = vmatpush1.bf16.xpose.msra.mxu0 0
    %566 = vmatprep.subr.bf16.mxu0 0
    %567 = vmatpush1.bf16.xpose.msra.mxu0 0
    %568 = vmatprep.mubr.bf16.mxu0 0
    %569 = vmatmul.mubr.bf16.gmra.mrb[0].mxu0 %v531
    %v570 = vpop.f32.mrb[0].mxu0
    %v571 = vadd.f32 0.0, %v570
    %v572 = vpop.f32.mrb[0].mxu0
    %v573 = vpop.f32.mrb[0].mxu0
    %v574 = vpop.f32.mrb[0].mxu0
    %575 = vdwg.mxu0
    %577 = vrot.lane.b32.xlu0 %v327, 96
    %v578 = vpop.permute.xlu0 %577
    %v580 = vsel %vm333, %v327, 0
    %v583 = vsel %vm333, %v578, 0
    %585 = vmatprep.subr.bf16.mxu0 0
    %586 = vmatpush1.bf16.xpose.msra.mxu0 %v583
    %587 = vmatprep.subr.bf16.mxu0 0
    %588 = vmatpush1.bf16.xpose.msra.mxu0 0
    %589 = vmatprep.subr.bf16.mxu0 0
    %590 = vmatpush1.bf16.xpose.msra.mxu0 0
    %591 = vmatprep.subr.bf16.mxu0 0
    %592 = vmatpush1.bf16.xpose.msra.mxu0 0
    %593 = vmatprep.subr.bf16.mxu0 0
    %594 = vmatpush1.bf16.xpose.msra.mxu0 0
    %595 = vmatprep.subr.bf16.mxu0 0
    %596 = vmatpush1.bf16.xpose.msra.mxu0 0
    %597 = vmatprep.subr.bf16.mxu0 0
    %598 = vmatpush1.bf16.xpose.msra.mxu0 0
    %599 = vmatprep.subr.bf16.mxu0 0
    %600 = vmatpush1.bf16.xpose.msra.mxu0 0
    %601 = vmatprep.subr.bf16.mxu0 0
    %602 = vmatpush1.bf16.xpose.msra.mxu0 0
    %603 = vmatprep.subr.bf16.mxu0 0
    %604 = vmatpush1.bf16.xpose.msra.mxu0 0
    %605 = vmatprep.subr.bf16.mxu0 0
    %606 = vmatpush1.bf16.xpose.msra.mxu0 0
    %607 = vmatprep.subr.bf16.mxu0 0
    %608 = vmatpush1.bf16.xpose.msra.mxu0 0
    %609 = vmatprep.subr.bf16.mxu0 0
    %610 = vmatpush1.bf16.xpose.msra.mxu0 0
    %611 = vmatprep.subr.bf16.mxu0 0
    %612 = vmatpush1.bf16.xpose.msra.mxu0 0
    %613 = vmatprep.subr.bf16.mxu0 0
    %614 = vmatpush1.bf16.xpose.msra.mxu0 0
    %615 = vmatprep.subr.bf16.mxu0 0
    %616 = vmatpush1.bf16.xpose.msra.mxu0 0
    %617 = vmatprep.mubr.bf16.mxu0 0
    %618 = vmatmul.mubr.bf16.gmra.mrb[0].mxu0 %v580
    %v619 = vpop.f32.mrb[0].mxu0
    %v620 = vadd.f32 0.0, %v619
    %v621 = vpop.f32.mrb[0].mxu0
    %v622 = vpop.f32.mrb[0].mxu0
    %v623 = vpop.f32.mrb[0].mxu0
    %624 = vdwg.mxu0
    %626 = vrot.lane.b32.xlu0 %v328, 96
    %v627 = vpop.permute.xlu0 %626
    %v629 = vsel %vm333, %v328, 0
    %v632 = vsel %vm333, %v627, 0
    %634 = vmatprep.subr.bf16.mxu0 0
    %635 = vmatpush1.bf16.xpose.msra.mxu0 %v632
    %636 = vmatprep.subr.bf16.mxu0 0
    %637 = vmatpush1.bf16.xpose.msra.mxu0 0
    %638 = vmatprep.subr.bf16.mxu0 0
    %639 = vmatpush1.bf16.xpose.msra.mxu0 0
    %640 = vmatprep.subr.bf16.mxu0 0
    %641 = vmatpush1.bf16.xpose.msra.mxu0 0
    %642 = vmatprep.subr.bf16.mxu0 0
    %643 = vmatpush1.bf16.xpose.msra.mxu0 0
    %644 = vmatprep.subr.bf16.mxu0 0
    %645 = vmatpush1.bf16.xpose.msra.mxu0 0
    %646 = vmatprep.subr.bf16.mxu0 0
    %647 = vmatpush1.bf16.xpose.msra.mxu0 0
    %648 = vmatprep.subr.bf16.mxu0 0
    %649 = vmatpush1.bf16.xpose.msra.mxu0 0
    %650 = vmatprep.subr.bf16.mxu0 0
    %651 = vmatpush1.bf16.xpose.msra.mxu0 0
    %652 = vmatprep.subr.bf16.mxu0 0
    %653 = vmatpush1.bf16.xpose.msra.mxu0 0
    %654 = vmatprep.subr.bf16.mxu0 0
    %655 = vmatpush1.bf16.xpose.msra.mxu0 0
    %656 = vmatprep.subr.bf16.mxu0 0
    %657 = vmatpush1.bf16.xpose.msra.mxu0 0
    %658 = vmatprep.subr.bf16.mxu0 0
    %659 = vmatpush1.bf16.xpose.msra.mxu0 0
    %660 = vmatprep.subr.bf16.mxu0 0
    %661 = vmatpush1.bf16.xpose.msra.mxu0 0
    %662 = vmatprep.subr.bf16.mxu0 0
    %663 = vmatpush1.bf16.xpose.msra.mxu0 0
    %664 = vmatprep.subr.bf16.mxu0 0
    %665 = vmatpush1.bf16.xpose.msra.mxu0 0
    %666 = vmatprep.mubr.bf16.mxu0 0
    %667 = vmatmul.mubr.bf16.gmra.mrb[0].mxu0 %v629
    %v668 = vpop.f32.mrb[0].mxu0
    %v669 = vadd.f32 0.0, %v668
    %v670 = vpop.f32.mrb[0].mxu0
    %v671 = vpop.f32.mrb[0].mxu0
    %v672 = vpop.f32.mrb[0].mxu0
    %673 = vdwg.mxu0
    %675 = vrot.lane.b32.xlu0 %v329, 96
    %v676 = vpop.permute.xlu0 %675
    %v678 = vsel %vm333, %v329, 0
    %v681 = vsel %vm333, %v676, 0
    %683 = vmatprep.subr.bf16.mxu0 0
    %684 = vmatpush1.bf16.xpose.msra.mxu0 %v681
    %685 = vmatprep.subr.bf16.mxu0 0
    %686 = vmatpush1.bf16.xpose.msra.mxu0 0
    %687 = vmatprep.subr.bf16.mxu0 0
    %688 = vmatpush1.bf16.xpose.msra.mxu0 0
    %689 = vmatprep.subr.bf16.mxu0 0
    %690 = vmatpush1.bf16.xpose.msra.mxu0 0
    %691 = vmatprep.subr.bf16.mxu0 0
    %692 = vmatpush1.bf16.xpose.msra.mxu0 0
    %693 = vmatprep.subr.bf16.mxu0 0
    %694 = vmatpush1.bf16.xpose.msra.mxu0 0
    %695 = vmatprep.subr.bf16.mxu0 0
    %696 = vmatpush1.bf16.xpose.msra.mxu0 0
    %697 = vmatprep.subr.bf16.mxu0 0
    %698 = vmatpush1.bf16.xpose.msra.mxu0 0
    %699 = vmatprep.subr.bf16.mxu0 0
    %700 = vmatpush1.bf16.xpose.msra.mxu0 0
    %701 = vmatprep.subr.bf16.mxu0 0
    %702 = vmatpush1.bf16.xpose.msra.mxu0 0
    %703 = vmatprep.subr.bf16.mxu0 0
    %704 = vmatpush1.bf16.xpose.msra.mxu0 0
    %705 = vmatprep.subr.bf16.mxu0 0
    %706 = vmatpush1.bf16.xpose.msra.mxu0 0
    %707 = vmatprep.subr.bf16.mxu0 0
    %708 = vmatpush1.bf16.xpose.msra.mxu0 0
    %709 = vmatprep.subr.bf16.mxu0 0
    %710 = vmatpush1.bf16.xpose.msra.mxu0 0
    %711 = vmatprep.subr.bf16.mxu0 0
    %712 = vmatpush1.bf16.xpose.msra.mxu0 0
    %713 = vmatprep.subr.bf16.mxu0 0
    %714 = vmatpush1.bf16.xpose.msra.mxu0 0
    %715 = vmatprep.mubr.bf16.mxu0 0
    %716 = vmatmul.mubr.bf16.gmra.mrb[0].mxu0 %v678
    %v717 = vpop.f32.mrb[0].mxu0
    %v718 = vadd.f32 0.0, %v717
    %v719 = vpop.f32.mrb[0].mxu0
    %v720 = vpop.f32.mrb[0].mxu0
    %v721 = vpop.f32.mrb[0].mxu0
    %722 = vdwg.mxu0
    %v723 = vmul.f32 %v375, 0.35355338
    %v724 = vmul.f32 %v424, 0.35355338
    %v725 = vmul.f32 %v473, 0.35355338
    %v726 = vmul.f32 %v522, 0.35355338
    %v727 = vmul.f32 %v571, 0.35355338
    %v728 = vmul.f32 %v620, 0.35355338
    %v729 = vmul.f32 %v669, 0.35355338
    %v730 = vmul.f32 %v718, 0.35355338
    %v731 = vadd.f32 %v723, %v181
    %v732 = vadd.f32 %v724, %v185
    %v733 = vadd.f32 %v725, %v181
    %v734 = vadd.f32 %v726, %v185
    %v735 = vadd.f32 %v727, %v181
    %v736 = vadd.f32 %v728, %v185
    %v737 = vadd.f32 %v729, %v181
    %v738 = vadd.f32 %v730, %v185
    %v739 = vsel %vm333, %v731, -inf
    %740 = vmax.xlane.f32.xlu0 %v739
    %v741 = vpop.xlane.xlu0 %740
    %v742 = vsel %vm333, %v732, -inf
    %743 = vmax.xlane.f32.xlu0 %v742
    %v744 = vpop.xlane.xlu0 %743
    %v745 = vsel %vm333, %v733, -inf
    %746 = vmax.xlane.f32.xlu0 %v745
    %v747 = vpop.xlane.xlu0 %746
    %v748 = vsel %vm333, %v734, -inf
    %749 = vmax.xlane.f32.xlu0 %v748
    %v750 = vpop.xlane.xlu0 %749
    %v751 = vsel %vm333, %v735, -inf
    %752 = vmax.xlane.f32.xlu0 %v751
    %v753 = vpop.xlane.xlu0 %752
    %v754 = vsel %vm333, %v736, -inf
    %755 = vmax.xlane.f32.xlu0 %v754
    %v756 = vpop.xlane.xlu0 %755
    %v757 = vsel %vm333, %v737, -inf
    %758 = vmax.xlane.f32.xlu0 %v757
    %v759 = vpop.xlane.xlu0 %758
    %v760 = vsel %vm333, %v738, -inf
    %761 = vmax.xlane.f32.xlu0 %v760
    %v762 = vpop.xlane.xlu0 %761
    %v763 = vsub.f32 %v731, %v741
    %v764 = vsub.f32 %v732, %v744
    %v765 = vsub.f32 %v733, %v747
    %v766 = vsub.f32 %v734, %v750
    %v767 = vsub.f32 %v735, %v753
    %v768 = vsub.f32 %v736, %v756
    %v769 = vsub.f32 %v737, %v759
    %v770 = vsub.f32 %v738, %v762
    %v771 = vmul.f32 %v763, 1.442695
    %v772 = vpow.pop %v771
    %v773 = vmul.f32 %v764, 1.442695
    %v774 = vpow.pop %v773
    %v775 = vmul.f32 %v765, 1.442695
    %v776 = vpow.pop %v775
    %v777 = vmul.f32 %v766, 1.442695
    %v778 = vpow.pop %v777
    %v779 = vmul.f32 %v767, 1.442695
    %v780 = vpow.pop %v779
    %v781 = vmul.f32 %v768, 1.442695
    %v782 = vpow.pop %v781
    %v783 = vmul.f32 %v769, 1.442695
    %v784 = vpow.pop %v783
    %v785 = vmul.f32 %v770, 1.442695
    %v786 = vpow.pop %v785
    %v787 = vsel %vm333, %v772, 0.0
    %788 = vadd.xlane.f32.xlu0 %v787
    %v789 = vpop.xlane.xlu0 %788
    %v790 = vsel %vm333, %v774, 0.0
    %791 = vadd.xlane.f32.xlu0 %v790
    %v792 = vpop.xlane.xlu0 %791
    %v793 = vsel %vm333, %v776, 0.0
    %794 = vadd.xlane.f32.xlu0 %v793
    %v795 = vpop.xlane.xlu0 %794
    %v796 = vsel %vm333, %v778, 0.0
    %797 = vadd.xlane.f32.xlu0 %v796
    %v798 = vpop.xlane.xlu0 %797
    %v799 = vsel %vm333, %v780, 0.0
    %800 = vadd.xlane.f32.xlu0 %v799
    %v801 = vpop.xlane.xlu0 %800
    %v802 = vsel %vm333, %v782, 0.0
    %803 = vadd.xlane.f32.xlu0 %v802
    %v804 = vpop.xlane.xlu0 %803
    %v805 = vsel %vm333, %v784, 0.0
    %806 = vadd.xlane.f32.xlu0 %v805
    %v807 = vpop.xlane.xlu0 %806
    %v808 = vsel %vm333, %v786, 0.0
    %809 = vadd.xlane.f32.xlu0 %v808
    %v810 = vpop.xlane.xlu0 %809
    %v811 = vrcp.pop %v789
    %v812 = vrcp.pop %v792
    %v813 = vrcp.pop %v795
    %v814 = vrcp.pop %v798
    %v815 = vrcp.pop %v801
    %v816 = vrcp.pop %v804
    %v817 = vrcp.pop %v807
    %v818 = vrcp.pop %v810
    %v819 = vmul.f32 %v772, %v811
    %v820 = vmul.f32 %v774, %v812
    %v821 = vmul.f32 %v776, %v813
    %v822 = vmul.f32 %v778, %v814
    %v823 = vmul.f32 %v780, %v815
    %v824 = vmul.f32 %v782, %v816
    %v825 = vmul.f32 %v784, %v817
    %v826 = vmul.f32 %v786, %v818
    %v827 = vpack.c.bf16 %v819, %v819
    %v828 = vpack.c.bf16 %v820, %v820
    %v829 = vpack.c.bf16 %v821, %v821
    %v830 = vpack.c.bf16 %v822, %v822
    %v831 = vpack.c.bf16 %v823, %v823
    %v832 = vpack.c.bf16 %v824, %v824
    %v833 = vpack.c.bf16 %v825, %v825
    %v834 = vpack.c.bf16 %v826, %v826
    %835 = vrot.lane.b32.xlu0 %v322, 64
    %v836 = vpop.permute.xlu0 %835
    %v838 = vsel %vm333, %v827, 0
    %vm840 = vcmask 1043456
    %v842 = vsel %vm840, %v836, 0
    %844 = vmatprep.subr.bf16.mxu0 0
    %845 = vmatpush1.bf16.msra.mxu0 %v842
    %846 = vmatprep.subr.bf16.mxu0 0
    %847 = vmatpush1.bf16.msra.mxu0 0
    %848 = vmatprep.subr.bf16.mxu0 0
    %849 = vmatpush1.bf16.msra.mxu0 0
    %850 = vmatprep.subr.bf16.mxu0 0
    %851 = vmatpush1.bf16.msra.mxu0 0
    %852 = vmatprep.subr.bf16.mxu0 0
    %853 = vmatpush1.bf16.msra.mxu0 0
    %854 = vmatprep.subr.bf16.mxu0 0
    %855 = vmatpush1.bf16.msra.mxu0 0
    %856 = vmatprep.subr.bf16.mxu0 0
    %857 = vmatpush1.bf16.msra.mxu0 0
    %858 = vmatprep.subr.bf16.mxu0 0
    %859 = vmatpush1.bf16.msra.mxu0 0
    %860 = vmatprep.subr.bf16.mxu0 0
    %861 = vmatpush1.bf16.msra.mxu0 0
    %862 = vmatprep.subr.bf16.mxu0 0
    %863 = vmatpush1.bf16.msra.mxu0 0
    %864 = vmatprep.subr.bf16.mxu0 0
    %865 = vmatpush1.bf16.msra.mxu0 0
    %866 = vmatprep.subr.bf16.mxu0 0
    %867 = vmatpush1.bf16.msra.mxu0 0
    %868 = vmatprep.subr.bf16.mxu0 0
    %869 = vmatpush1.bf16.msra.mxu0 0
    %870 = vmatprep.subr.bf16.mxu0 0
    %871 = vmatpush1.bf16.msra.mxu0 0
    %872 = vmatprep.subr.bf16.mxu0 0
    %873 = vmatpush1.bf16.msra.mxu0 0
    %874 = vmatprep.subr.bf16.mxu0 0
    %875 = vmatpush1.bf16.msra.mxu0 0
    %876 = vmatprep.mubr.bf16.mxu0 0
    %877 = vmatmul.mubr.bf16.gmra.mrb[0].mxu0 %v838
    %v878 = vpop.f32.mrb[0].mxu0
    %v879 = vadd.f32 0.0, %v878
    %v880 = vpop.f32.mrb[0].mxu0
    %v881 = vpop.f32.mrb[0].mxu0
    %v882 = vpop.f32.mrb[0].mxu0
    %883 = vdwg.mxu0
    %884 = vrot.lane.b32.xlu0 %v323, 64
    %v885 = vpop.permute.xlu0 %884
    %v887 = vsel %vm333, %v828, 0
    %v890 = vsel %vm840, %v885, 0
    %892 = vmatprep.subr.bf16.mxu0 0
    %893 = vmatpush1.bf16.msra.mxu0 %v890
    %894 = vmatprep.subr.bf16.mxu0 0
    %895 = vmatpush1.bf16.msra.mxu0 0
    %896 = vmatprep.subr.bf16.mxu0 0
    %897 = vmatpush1.bf16.msra.mxu0 0
    %898 = vmatprep.subr.bf16.mxu0 0
    %899 = vmatpush1.bf16.msra.mxu0 0
    %900 = vmatprep.subr.bf16.mxu0 0
    %901 = vmatpush1.bf16.msra.mxu0 0
    %902 = vmatprep.subr.bf16.mxu0 0
    %903 = vmatpush1.bf16.msra.mxu0 0
    %904 = vmatprep.subr.bf16.mxu0 0
    %905 = vmatpush1.bf16.msra.mxu0 0
    %906 = vmatprep.subr.bf16.mxu0 0
    %907 = vmatpush1.bf16.msra.mxu0 0
    %908 = vmatprep.subr.bf16.mxu0 0
    %909 = vmatpush1.bf16.msra.mxu0 0
    %910 = vmatprep.subr.bf16.mxu0 0
    %911 = vmatpush1.bf16.msra.mxu0 0
    %912 = vmatprep.subr.bf16.mxu0 0
    %913 = vmatpush1.bf16.msra.mxu0 0
    %914 = vmatprep.subr.bf16.mxu0 0
    %915 = vmatpush1.bf16.msra.mxu0 0
    %916 = vmatprep.subr.bf16.mxu0 0
    %917 = vmatpush1.bf16.msra.mxu0 0
    %918 = vmatprep.subr.bf16.mxu0 0
    %919 = vmatpush1.bf16.msra.mxu0 0
    %920 = vmatprep.subr.bf16.mxu0 0
    %921 = vmatpush1.bf16.msra.mxu0 0
    %922 = vmatprep.subr.bf16.mxu0 0
    %923 = vmatpush1.bf16.msra.mxu0 0
    %924 = vmatprep.mubr.bf16.mxu0 0
    %925 = vmatmul.mubr.bf16.gmra.mrb[0].mxu0 %v887
    %v926 = vpop.f32.mrb[0].mxu0
    %v927 = vadd.f32 0.0, %v926
    %v928 = vpop.f32.mrb[0].mxu0
    %v929 = vpop.f32.mrb[0].mxu0
    %v930 = vpop.f32.mrb[0].mxu0
    %931 = vdwg.mxu0
    %932 = vrot.lane.b32.xlu0 %v324, 64
    %v933 = vpop.permute.xlu0 %932
    %v935 = vsel %vm333, %v829, 0
    %v938 = vsel %vm840, %v933, 0
    %940 = vmatprep.subr.bf16.mxu0 0
    %941 = vmatpush1.bf16.msra.mxu0 %v938
    %942 = vmatprep.subr.bf16.mxu0 0
    %943 = vmatpush1.bf16.msra.mxu0 0
    %944 = vmatprep.subr.bf16.mxu0 0
    %945 = vmatpush1.bf16.msra.mxu0 0
    %946 = vmatprep.subr.bf16.mxu0 0
    %947 = vmatpush1.bf16.msra.mxu0 0
    %948 = vmatprep.subr.bf16.mxu0 0
    %949 = vmatpush1.bf16.msra.mxu0 0
    %950 = vmatprep.subr.bf16.mxu0 0
    %951 = vmatpush1.bf16.msra.mxu0 0
    %952 = vmatprep.subr.bf16.mxu0 0
    %953 = vmatpush1.bf16.msra.mxu0 0
    %954 = vmatprep.subr.bf16.mxu0 0
    %955 = vmatpush1.bf16.msra.mxu0 0
    %956 = vmatprep.subr.bf16.mxu0 0
    %957 = vmatpush1.bf16.msra.mxu0 0
    %958 = vmatprep.subr.bf16.mxu0 0
    %959 = vmatpush1.bf16.msra.mxu0 0
    %960 = vmatprep.subr.bf16.mxu0 0
    %961 = vmatpush1.bf16.msra.mxu0 0
    %962 = vmatprep.subr.bf16.mxu0 0
    %963 = vmatpush1.bf16.msra.mxu0 0
    %964 = vmatprep.subr.bf16.mxu0 0
    %965 = vmatpush1.bf16.msra.mxu0 0
    %966 = vmatprep.subr.bf16.mxu0 0
    %967 = vmatpush1.bf16.msra.mxu0 0
    %968 = vmatprep.subr.bf16.mxu0 0
    %969 = vmatpush1.bf16.msra.mxu0 0
    %970 = vmatprep.subr.bf16.mxu0 0
    %971 = vmatpush1.bf16.msra.mxu0 0
    %972 = vmatprep.mubr.bf16.mxu0 0
    %973 = vmatmul.mubr.bf16.gmra.mrb[0].mxu0 %v935
    %v974 = vpop.f32.mrb[0].mxu0
    %v975 = vadd.f32 0.0, %v974
    %v976 = vpop.f32.mrb[0].mxu0
    %v977 = vpop.f32.mrb[0].mxu0
    %v978 = vpop.f32.mrb[0].mxu0
    %979 = vdwg.mxu0
    %980 = vrot.lane.b32.xlu0 %v325, 64
    %v981 = vpop.permute.xlu0 %980
    %v983 = vsel %vm333, %v830, 0
    %v986 = vsel %vm840, %v981, 0
    %988 = vmatprep.subr.bf16.mxu0 0
    %989 = vmatpush1.bf16.msra.mxu0 %v986
    %990 = vmatprep.subr.bf16.mxu0 0
    %991 = vmatpush1.bf16.msra.mxu0 0
    %992 = vmatprep.subr.bf16.mxu0 0
    %993 = vmatpush1.bf16.msra.mxu0 0
    %994 = vmatprep.subr.bf16.mxu0 0
    %995 = vmatpush1.bf16.msra.mxu0 0
    %996 = vmatprep.subr.bf16.mxu0 0
    %997 = vmatpush1.bf16.msra.mxu0 0
    %998 = vmatprep.subr.bf16.mxu0 0
    %999 = vmatpush1.bf16.msra.mxu0 0
    %1000 = vmatprep.subr.bf16.mxu0 0
    %1001 = vmatpush1.bf16.msra.mxu0 0
    %1002 = vmatprep.subr.bf16.mxu0 0
    %1003 = vmatpush1.bf16.msra.mxu0 0
    %1004 = vmatprep.subr.bf16.mxu0 0
    %1005 = vmatpush1.bf16.msra.mxu0 0
    %1006 = vmatprep.subr.bf16.mxu0 0
    %1007 = vmatpush1.bf16.msra.mxu0 0
    %1008 = vmatprep.subr.bf16.mxu0 0
    %1009 = vmatpush1.bf16.msra.mxu0 0
    %1010 = vmatprep.subr.bf16.mxu0 0
    %1011 = vmatpush1.bf16.msra.mxu0 0
    %1012 = vmatprep.subr.bf16.mxu0 0
    %1013 = vmatpush1.bf16.msra.mxu0 0
    %1014 = vmatprep.subr.bf16.mxu0 0
    %1015 = vmatpush1.bf16.msra.mxu0 0
    %1016 = vmatprep.subr.bf16.mxu0 0
    %1017 = vmatpush1.bf16.msra.mxu0 0
    %1018 = vmatprep.subr.bf16.mxu0 0
    %1019 = vmatpush1.bf16.msra.mxu0 0
    %1020 = vmatprep.mubr.bf16.mxu0 0
    %1021 = vmatmul.mubr.bf16.gmra.mrb[0].mxu0 %v983
    %v1022 = vpop.f32.mrb[0].mxu0
    %v1023 = vadd.f32 0.0, %v1022
    %v1024 = vpop.f32.mrb[0].mxu0
    %v1025 = vpop.f32.mrb[0].mxu0
    %v1026 = vpop.f32.mrb[0].mxu0
    %1027 = vdwg.mxu0
    %1028 = vrot.lane.b32.xlu0 %v326, 64
    %v1029 = vpop.permute.xlu0 %1028
    %v1031 = vsel %vm333, %v831, 0
    %v1034 = vsel %vm840, %v1029, 0
    %1036 = vmatprep.subr.bf16.mxu0 0
    %1037 = vmatpush1.bf16.msra.mxu0 %v1034
    %1038 = vmatprep.subr.bf16.mxu0 0
    %1039 = vmatpush1.bf16.msra.mxu0 0
    %1040 = vmatprep.subr.bf16.mxu0 0
    %1041 = vmatpush1.bf16.msra.mxu0 0
    %1042 = vmatprep.subr.bf16.mxu0 0
    %1043 = vmatpush1.bf16.msra.mxu0 0
    %1044 = vmatprep.subr.bf16.mxu0 0
    %1045 = vmatpush1.bf16.msra.mxu0 0
    %1046 = vmatprep.subr.bf16.mxu0 0
    %1047 = vmatpush1.bf16.msra.mxu0 0
    %1048 = vmatprep.subr.bf16.mxu0 0
    %1049 = vmatpush1.bf16.msra.mxu0 0
    %1050 = vmatprep.subr.bf16.mxu0 0
    %1051 = vmatpush1.bf16.msra.mxu0 0
    %1052 = vmatprep.subr.bf16.mxu0 0
    %1053 = vmatpush1.bf16.msra.mxu0 0
    %1054 = vmatprep.subr.bf16.mxu0 0
    %1055 = vmatpush1.bf16.msra.mxu0 0
    %1056 = vmatprep.subr.bf16.mxu0 0
    %1057 = vmatpush1.bf16.msra.mxu0 0
    %1058 = vmatprep.subr.bf16.mxu0 0
    %1059 = vmatpush1.bf16.msra.mxu0 0
    %1060 = vmatprep.subr.bf16.mxu0 0
    %1061 = vmatpush1.bf16.msra.mxu0 0
    %1062 = vmatprep.subr.bf16.mxu0 0
    %1063 = vmatpush1.bf16.msra.mxu0 0
    %1064 = vmatprep.subr.bf16.mxu0 0
    %1065 = vmatpush1.bf16.msra.mxu0 0
    %1066 = vmatprep.subr.bf16.mxu0 0
    %1067 = vmatpush1.bf16.msra.mxu0 0
    %1068 = vmatprep.mubr.bf16.mxu0 0
    %1069 = vmatmul.mubr.bf16.gmra.mrb[0].mxu0 %v1031
    %v1070 = vpop.f32.mrb[0].mxu0
    %v1071 = vadd.f32 0.0, %v1070
    %v1072 = vpop.f32.mrb[0].mxu0
    %v1073 = vpop.f32.mrb[0].mxu0
    %v1074 = vpop.f32.mrb[0].mxu0
    %1075 = vdwg.mxu0
    %1076 = vrot.lane.b32.xlu0 %v327, 64
    %v1077 = vpop.permute.xlu0 %1076
    %v1079 = vsel %vm333, %v832, 0
    %v1082 = vsel %vm840, %v1077, 0
    %1084 = vmatprep.subr.bf16.mxu0 0
    %1085 = vmatpush1.bf16.msra.mxu0 %v1082
    %1086 = vmatprep.subr.bf16.mxu0 0
    %1087 = vmatpush1.bf16.msra.mxu0 0
    %1088 = vmatprep.subr.bf16.mxu0 0
    %1089 = vmatpush1.bf16.msra.mxu0 0
    %1090 = vmatprep.subr.bf16.mxu0 0
    %1091 = vmatpush1.bf16.msra.mxu0 0
    %1092 = vmatprep.subr.bf16.mxu0 0
    %1093 = vmatpush1.bf16.msra.mxu0 0
    %1094 = vmatprep.subr.bf16.mxu0 0
    %1095 = vmatpush1.bf16.msra.mxu0 0
    %1096 = vmatprep.subr.bf16.mxu0 0
    %1097 = vmatpush1.bf16.msra.mxu0 0
    %1098 = vmatprep.subr.bf16.mxu0 0
    %1099 = vmatpush1.bf16.msra.mxu0 0
    %1100 = vmatprep.subr.bf16.mxu0 0
    %1101 = vmatpush1.bf16.msra.mxu0 0
    %1102 = vmatprep.subr.bf16.mxu0 0
    %1103 = vmatpush1.bf16.msra.mxu0 0
    %1104 = vmatprep.subr.bf16.mxu0 0
    %1105 = vmatpush1.bf16.msra.mxu0 0
    %1106 = vmatprep.subr.bf16.mxu0 0
    %1107 = vmatpush1.bf16.msra.mxu0 0
    %1108 = vmatprep.subr.bf16.mxu0 0
    %1109 = vmatpush1.bf16.msra.mxu0 0
    %1110 = vmatprep.subr.bf16.mxu0 0
    %1111 = vmatpush1.bf16.msra.mxu0 0
    %1112 = vmatprep.subr.bf16.mxu0 0
    %1113 = vmatpush1.bf16.msra.mxu0 0
    %1114 = vmatprep.subr.bf16.mxu0 0
    %1115 = vmatpush1.bf16.msra.mxu0 0
    %1116 = vmatprep.mubr.bf16.mxu0 0
    %1117 = vmatmul.mubr.bf16.gmra.mrb[0].mxu0 %v1079
    %v1118 = vpop.f32.mrb[0].mxu0
    %v1119 = vadd.f32 0.0, %v1118
    %v1120 = vpop.f32.mrb[0].mxu0
    %v1121 = vpop.f32.mrb[0].mxu0
    %v1122 = vpop.f32.mrb[0].mxu0
    %1123 = vdwg.mxu0
    %1124 = vrot.lane.b32.xlu0 %v328, 64
    %v1125 = vpop.permute.xlu0 %1124
    %v1127 = vsel %vm333, %v833, 0
    %v1130 = vsel %vm840, %v1125, 0
    %1132 = vmatprep.subr.bf16.mxu0 0
    %1133 = vmatpush1.bf16.msra.mxu0 %v1130
    %1134 = vmatprep.subr.bf16.mxu0 0
    %1135 = vmatpush1.bf16.msra.mxu0 0
    %1136 = vmatprep.subr.bf16.mxu0 0
    %1137 = vmatpush1.bf16.msra.mxu0 0
    %1138 = vmatprep.subr.bf16.mxu0 0
    %1139 = vmatpush1.bf16.msra.mxu0 0
    %1140 = vmatprep.subr.bf16.mxu0 0
    %1141 = vmatpush1.bf16.msra.mxu0 0
    %1142 = vmatprep.subr.bf16.mxu0 0
    %1143 = vmatpush1.bf16.msra.mxu0 0
    %1144 = vmatprep.subr.bf16.mxu0 0
    %1145 = vmatpush1.bf16.msra.mxu0 0
    %1146 = vmatprep.subr.bf16.mxu0 0
    %1147 = vmatpush1.bf16.msra.mxu0 0
    %1148 = vmatprep.subr.bf16.mxu0 0
    %1149 = vmatpush1.bf16.msra.mxu0 0
    %1150 = vmatprep.subr.bf16.mxu0 0
    %1151 = vmatpush1.bf16.msra.mxu0 0
    %1152 = vmatprep.subr.bf16.mxu0 0
    %1153 = vmatpush1.bf16.msra.mxu0 0
    %1154 = vmatprep.subr.bf16.mxu0 0
    %1155 = vmatpush1.bf16.msra.mxu0 0
    %1156 = vmatprep.subr.bf16.mxu0 0
    %1157 = vmatpush1.bf16.msra.mxu0 0
    %1158 = vmatprep.subr.bf16.mxu0 0
    %1159 = vmatpush1.bf16.msra.mxu0 0
    %1160 = vmatprep.subr.bf16.mxu0 0
    %1161 = vmatpush1.bf16.msra.mxu0 0
    %1162 = vmatprep.subr.bf16.mxu0 0
    %1163 = vmatpush1.bf16.msra.mxu0 0
    %1164 = vmatprep.mubr.bf16.mxu0 0
    %1165 = vmatmul.mubr.bf16.gmra.mrb[0].mxu0 %v1127
    %v1166 = vpop.f32.mrb[0].mxu0
    %v1167 = vadd.f32 0.0, %v1166
    %v1168 = vpop.f32.mrb[0].mxu0
    %v1169 = vpop.f32.mrb[0].mxu0
    %v1170 = vpop.f32.mrb[0].mxu0
    %1171 = vdwg.mxu0
    %1172 = vrot.lane.b32.xlu0 %v329, 64
    %v1173 = vpop.permute.xlu0 %1172
    %v1175 = vsel %vm333, %v834, 0
    %v1178 = vsel %vm840, %v1173, 0
    %1180 = vmatprep.subr.bf16.mxu0 0
    %1181 = vmatpush1.bf16.msra.mxu0 %v1178
    %1182 = vmatprep.subr.bf16.mxu0 0
    %1183 = vmatpush1.bf16.msra.mxu0 0
    %1184 = vmatprep.subr.bf16.mxu0 0
    %1185 = vmatpush1.bf16.msra.mxu0 0
    %1186 = vmatprep.subr.bf16.mxu0 0
    %1187 = vmatpush1.bf16.msra.mxu0 0
    %1188 = vmatprep.subr.bf16.mxu0 0
    %1189 = vmatpush1.bf16.msra.mxu0 0
    %1190 = vmatprep.subr.bf16.mxu0 0
    %1191 = vmatpush1.bf16.msra.mxu0 0
    %1192 = vmatprep.subr.bf16.mxu0 0
    %1193 = vmatpush1.bf16.msra.mxu0 0
    %1194 = vmatprep.subr.bf16.mxu0 0
    %1195 = vmatpush1.bf16.msra.mxu0 0
    %1196 = vmatprep.subr.bf16.mxu0 0
    %1197 = vmatpush1.bf16.msra.mxu0 0
    %1198 = vmatprep.subr.bf16.mxu0 0
    %1199 = vmatpush1.bf16.msra.mxu0 0
    %1200 = vmatprep.subr.bf16.mxu0 0
    %1201 = vmatpush1.bf16.msra.mxu0 0
    %1202 = vmatprep.subr.bf16.mxu0 0
    %1203 = vmatpush1.bf16.msra.mxu0 0
    %1204 = vmatprep.subr.bf16.mxu0 0
    %1205 = vmatpush1.bf16.msra.mxu0 0
    %1206 = vmatprep.subr.bf16.mxu0 0
    %1207 = vmatpush1.bf16.msra.mxu0 0
    %1208 = vmatprep.subr.bf16.mxu0 0
    %1209 = vmatpush1.bf16.msra.mxu0 0
    %1210 = vmatprep.subr.bf16.mxu0 0
    %1211 = vmatpush1.bf16.msra.mxu0 0
    %1212 = vmatprep.mubr.bf16.mxu0 0
    %1213 = vmatmul.mubr.bf16.gmra.mrb[0].mxu0 %v1175
    %v1214 = vpop.f32.mrb[0].mxu0
    %v1215 = vadd.f32 0.0, %v1214
    %v1216 = vpop.f32.mrb[0].mxu0
    %v1217 = vpop.f32.mrb[0].mxu0
    %v1218 = vpop.f32.mrb[0].mxu0
    %1219 = vdwg.mxu0
    %1222 = vrot.lane.b32.xlu0 %v975, 8
    %v1223 = vpop.permute.xlu0 %1222
    %1224 = vrot.lane.b32.xlu0 %v1023, 8
    %v1225 = vpop.permute.xlu0 %1224
    %1230 = vrot.lane.b32.xlu0 %v1071, 16
    %v1231 = vpop.permute.xlu0 %1230
    %1232 = vrot.lane.b32.xlu0 %v1119, 16
    %v1233 = vpop.permute.xlu0 %1232
    %1238 = vrot.lane.b32.xlu0 %v1167, 24
    %v1239 = vpop.permute.xlu0 %1238
    %1240 = vrot.lane.b32.xlu0 %v1215, 24
    %v1241 = vpop.permute.xlu0 %1240
    %v1244 = vsel %vm333, %v879, %v1223
    %v1245 = vsel %vm333, %v927, %v1225
    %vm1246 = vcmask 130048
    %v1247 = vsel %vm1246, %v1244, %v1231
    %v1248 = vsel %vm1246, %v1245, %v1233
    %vm1249 = vcmask 195584
    %v1250 = vsel %vm1249, %v1247, %v1239
    %v1251 = vsel %vm1249, %v1248, %v1241
    %v1252 = vld [vmem:[%s6] sm:$0xf]
    %v1253 = vld [vmem:[%s6 + $0x4] sm:$0xf]
    %v1254 = vld [vmem:[%s6 + $0x8] sm:$0xf]
    %v1255 = vld [vmem:[%s6 + $0xc] sm:$0xf]
    %v1256 = vpack.c.bf16 %v1251, %v1250
    %v1261 = vunpack.c.l.b16 %v1252
    %v1262 = vunpack.c.l.b16 %v1253
    %v1263 = vunpack.c.l.b16 %v1254
    %v1264 = vunpack.c.l.b16 %v1255
    %v1265 = vpack.c.b16 %v1262, %v1261
    %v1266 = vpack.c.b16 %v1264, %v1263
    %v1270 = vsel %vm190, %v1256, 0
    %1272 = vmatprep.subr.bf16.mxu0 0
    %1273 = vmatpush1.bf16.msra.mxu0 %v1265
    %1274 = vmatprep.subr.bf16.mxu0 0
    %1275 = vmatpush1.bf16.msra.mxu0 %v1266
    %1276 = vmatprep.subr.bf16.mxu0 0
    %1277 = vmatpush1.bf16.msra.mxu0 0
    %1278 = vmatprep.subr.bf16.mxu0 0
    %1279 = vmatpush1.bf16.msra.mxu0 0
    %1280 = vmatprep.subr.bf16.mxu0 0
    %1281 = vmatpush1.bf16.msra.mxu0 0
    %1282 = vmatprep.subr.bf16.mxu0 0
    %1283 = vmatpush1.bf16.msra.mxu0 0
    %1284 = vmatprep.subr.bf16.mxu0 0
    %1285 = vmatpush1.bf16.msra.mxu0 0
    %1286 = vmatprep.subr.bf16.mxu0 0
    %1287 = vmatpush1.bf16.msra.mxu0 0
    %1288 = vmatprep.subr.bf16.mxu0 0
    %1289 = vmatpush1.bf16.msra.mxu0 0
    %1290 = vmatprep.subr.bf16.mxu0 0
    %1291 = vmatpush1.bf16.msra.mxu0 0
    %1292 = vmatprep.subr.bf16.mxu0 0
    %1293 = vmatpush1.bf16.msra.mxu0 0
    %1294 = vmatprep.subr.bf16.mxu0 0
    %1295 = vmatpush1.bf16.msra.mxu0 0
    %1296 = vmatprep.subr.bf16.mxu0 0
    %1297 = vmatpush1.bf16.msra.mxu0 0
    %1298 = vmatprep.subr.bf16.mxu0 0
    %1299 = vmatpush1.bf16.msra.mxu0 0
    %1300 = vmatprep.subr.bf16.mxu0 0
    %1301 = vmatpush1.bf16.msra.mxu0 0
    %1302 = vmatprep.subr.bf16.mxu0 0
    %1303 = vmatpush1.bf16.msra.mxu0 0
    %1304 = vmatprep.mubr.bf16.mxu0 0
    %1305 = vmatmul.mubr.bf16.gmra.mrb[0].mxu0 %v1270
    %v1306 = vpop.f32.mrb[0].mxu0
    %v1307 = vadd.f32 0.0, %v1306
    %v1308 = vpop.f32.mrb[0].mxu0
    %v1309 = vpop.f32.mrb[0].mxu0
    %v1310 = vadd.f32 0.0, %v1309
    %v1311 = vpop.f32.mrb[0].mxu0
    %1312 = vdwg.mxu0
    %v1313 = vadd.f32 %v144, %v1307
    %v1314 = vadd.f32 %v147, %v1310
    %v1315 = vld [vmem:[%s7] sm:$0x1]
    %v1317 = vlaneseq
    %v1318 = vshrl.u32 %v1317, 7
    %v1319 = vsub.s32 0, %v1318
    %v1320 = vrot.slane %v1315, %v1319
    %v1322 = vadd.f32 %v1313, %v1320
    %v1323 = vadd.f32 %v1314, %v1320
    %v1324 = vld [vmem:[%s8] sm:$0x1]
    %v1325 = vld [vmem:[%s9] sm:$0x1]
    %v1326 = vsel %vm190, %v1322, 0.0
    %1327 = vadd.xlane.f32.xlu0 %v1326
    %v1328 = vpop.xlane.xlu0 %1327
    %v1329 = vsel %vm190, %v1323, 0.0
    %1330 = vadd.xlane.f32.xlu0 %v1329
    %v1331 = vpop.xlane.xlu0 %1330
    %v1332 = vmul.f32 %v1328, %v197
    %v1333 = vmul.f32 %v1331, %v197
    %v1334 = vsub.f32 %v1322, %v1332
    %v1335 = vsub.f32 %v1323, %v1333
    %v1336 = vmul.f32 %v1334, %v1334
    %v1337 = vmul.f32 %v1335, %v1335
    %v1338 = vsel %vm190, %v1336, 0.0
    %1339 = vadd.xlane.f32.xlu0 %v1338
    %v1340 = vpop.xlane.xlu0 %1339
    %v1341 = vsel %vm190, %v1337, 0.0
    %1342 = vadd.xlane.f32.xlu0 %v1341
    %v1343 = vpop.xlane.xlu0 %1342
    %v1344 = vmul.f32 %v1340, %v197
    %v1345 = vmul.f32 %v1343, %v197
    %v1346 = vadd.f32 %v1344, 1e-05
    %v1347 = vadd.f32 %v1345, 1e-05
    %v1348 = vrsqrt.pop %v1346
    %v1349 = vrsqrt.pop %v1347
    %v1350 = vmul.f32 %v1334, %v1348
    %v1351 = vmul.f32 %v1335, %v1349
    %v1353 = vlaneseq
    %v1354 = vshrl.u32 %v1353, 7
    %v1355 = vsub.s32 0, %v1354
    %v1356 = vrot.slane %v1324, %v1355
    %v1358 = vmul.f32 %v1350, %v1356
    %v1359 = vmul.f32 %v1351, %v1356
    %v1361 = vlaneseq
    %v1362 = vshrl.u32 %v1361, 7
    %v1363 = vsub.s32 0, %v1362
    %v1364 = vrot.slane %v1325, %v1363
    %v1366 = vadd.f32 %v1358, %v1364
    %v1367 = vadd.f32 %v1359, %v1364
    %v1368 = vld [vmem:[%s10] sm:$0xf]
    %v1369 = vld [vmem:[%s10 + $0x4] sm:$0xf]
    %v1370 = vld [vmem:[%s10 + $0x8] sm:$0xf]
    %v1371 = vld [vmem:[%s10 + $0xc] sm:$0xf]
    %v1372 = vpack.c.bf16 %v1367, %v1366
    %v1373 = vld [vmem:[%s11] sm:$0x1]
    %v1375 = vlaneseq
    %v1376 = vshrl.u32 %v1375, 7
    %v1377 = vsub.s32 0, %v1376
    %v1378 = vrot.slane %v1373, %v1377
    %v1384 = vunpack.c.l.b16 %v1368
    %v1385 = vunpack.c.l.b16 %v1369
    %v1386 = vunpack.c.l.b16 %v1370
    %v1387 = vunpack.c.l.b16 %v1371
    %v1388 = vpack.c.b16 %v1385, %v1384
    %v1389 = vpack.c.b16 %v1387, %v1386
    %v1393 = vsel %vm190, %v1372, 0
    %1395 = vmatprep.subr.bf16.mxu0 0
    %1396 = vmatpush1.bf16.msra.mxu0 %v1388
    %1397 = vmatprep.subr.bf16.mxu0 0
    %1398 = vmatpush1.bf16.msra.mxu0 %v1389
    %1399 = vmatprep.subr.bf16.mxu0 0
    %1400 = vmatpush1.bf16.msra.mxu0 0
    %1401 = vmatprep.subr.bf16.mxu0 0
    %1402 = vmatpush1.bf16.msra.mxu0 0
    %1403 = vmatprep.subr.bf16.mxu0 0
    %1404 = vmatpush1.bf16.msra.mxu0 0
    %1405 = vmatprep.subr.bf16.mxu0 0
    %1406 = vmatpush1.bf16.msra.mxu0 0
    %1407 = vmatprep.subr.bf16.mxu0 0
    %1408 = vmatpush1.bf16.msra.mxu0 0
    %1409 = vmatprep.subr.bf16.mxu0 0
    %1410 = vmatpush1.bf16.msra.mxu0 0
    %1411 = vmatprep.subr.bf16.mxu0 0
    %1412 = vmatpush1.bf16.msra.mxu0 0
    %1413 = vmatprep.subr.bf16.mxu0 0
    %1414 = vmatpush1.bf16.msra.mxu0 0
    %1415 = vmatprep.subr.bf16.mxu0 0
    %1416 = vmatpush1.bf16.msra.mxu0 0
    %1417 = vmatprep.subr.bf16.mxu0 0
    %1418 = vmatpush1.bf16.msra.mxu0 0
    %1419 = vmatprep.subr.bf16.mxu0 0
    %1420 = vmatpush1.bf16.msra.mxu0 0
    %1421 = vmatprep.subr.bf16.mxu0 0
    %1422 = vmatpush1.bf16.msra.mxu0 0
    %1423 = vmatprep.subr.bf16.mxu0 0
    %1424 = vmatpush1.bf16.msra.mxu0 0
    %1425 = vmatprep.subr.bf16.mxu0 0
    %1426 = vmatpush1.bf16.msra.mxu0 0
    %1427 = vmatprep.mubr.bf16.mxu0 0
    %1428 = vmatmul.mubr.bf16.gmra.mrb[0].mxu0 %v1393
    %v1429 = vpop.f32.mrb[0].mxu0
    %v1430 = vadd.f32 %v1378, %v1429
    %v1431 = vpop.f32.mrb[0].mxu0
    %v1432 = vpop.f32.mrb[0].mxu0
    %v1433 = vadd.f32 %v1378, %v1432
    %v1434 = vpop.f32.mrb[0].mxu0
    %1435 = vdwg.mxu0
    %v1436 = vmul.f32 %v1430, 0.5
    %v1437 = vmul.f32 %v1433, 0.5
    %v1438 = vmul.f32 %v1430, 0.044715
    %v1439 = vmul.f32 %v1433, 0.044715
    %v1440 = vmul.f32 %v1438, %v1430
    %v1441 = vmul.f32 %v1439, %v1433
    %v1442 = vmul.f32 %v1440, %v1430
    %v1443 = vmul.f32 %v1441, %v1433
    %v1444 = vadd.f32 %v1430, %v1442
    %v1445 = vadd.f32 %v1433, %v1443
    %v1446 = vmul.f32 %v1444, 0.7978846
    %v1447 = vmul.f32 %v1445, 0.7978846
    %v1448 = vtanh.pop %v1446
    %v1449 = vtanh.pop %v1447
    %v1450 = vadd.f32 %v1448, 1.0
    %v1451 = vadd.f32 %v1449, 1.0
    %v1452 = vmul.f32 %v1436, %v1450
    %v1453 = vmul.f32 %v1437, %v1451
    %v1454 = vld [vmem:[%s12] sm:$0xf]
    %v1455 = vld [vmem:[%s12 + $0x4] sm:$0xf]
    %v1456 = vld [vmem:[%s12 + $0x8] sm:$0xf]
    %v1457 = vld [vmem:[%s12 + $0xc] sm:$0xf]
    %v1458 = vld [vmem:[%s12 + $0x10] sm:$0xf]
    %v1459 = vld [vmem:[%s12 + $0x14] sm:$0xf]
    %v1460 = vld [vmem:[%s12 + $0x18] sm:$0xf]
    %v1461 = vld [vmem:[%s12 + $0x1c] sm:$0xf]
    %v1462 = vpack.c.bf16 %v1453, %v1452
    %v1471 = vunpack.c.l.b16 %v1454
    %v1472 = vunpack.c.l.b16 %v1455
    %v1473 = vunpack.c.l.b16 %v1456
    %v1474 = vunpack.c.l.b16 %v1457
    %v1475 = vunpack.c.l.b16 %v1458
    %v1476 = vunpack.c.l.b16 %v1459
    %v1477 = vunpack.c.l.b16 %v1460
    %v1478 = vunpack.c.l.b16 %v1461
    %v1479 = vpack.c.b16 %v1472, %v1471
    %v1480 = vpack.c.b16 %v1474, %v1473
    %v1481 = vpack.c.b16 %v1476, %v1475
    %v1482 = vpack.c.b16 %v1478, %v1477
    %vm1487 = vcmask 523264
    %v1489 = vsel %vm1487, %v1462, 0
    %1491 = vmatprep.subr.bf16.mxu0 0
    %1492 = vmatpush1.bf16.msra.mxu0 %v1479
    %1493 = vmatprep.subr.bf16.mxu0 0
    %1494 = vmatpush1.bf16.msra.mxu0 %v1480
    %1495 = vmatprep.subr.bf16.mxu0 0
    %1496 = vmatpush1.bf16.msra.mxu0 %v1481
    %1497 = vmatprep.subr.bf16.mxu0 0
    %1498 = vmatpush1.bf16.msra.mxu0 %v1482
    %1499 = vmatprep.subr.bf16.mxu0 0
    %1500 = vmatpush1.bf16.msra.mxu0 0
    %1501 = vmatprep.subr.bf16.mxu0 0
    %1502 = vmatpush1.bf16.msra.mxu0 0
    %1503 = vmatprep.subr.bf16.mxu0 0
    %1504 = vmatpush1.bf16.msra.mxu0 0
    %1505 = vmatprep.subr.bf16.mxu0 0
    %1506 = vmatpush1.bf16.msra.mxu0 0
    %1507 = vmatprep.subr.bf16.mxu0 0
    %1508 = vmatpush1.bf16.msra.mxu0 0
    %1509 = vmatprep.subr.bf16.mxu0 0
    %1510 = vmatpush1.bf16.msra.mxu0 0
    %1511 = vmatprep.subr.bf16.mxu0 0
    %1512 = vmatpush1.bf16.msra.mxu0 0
    %1513 = vmatprep.subr.bf16.mxu0 0
    %1514 = vmatpush1.bf16.msra.mxu0 0
    %1515 = vmatprep.subr.bf16.mxu0 0
    %1516 = vmatpush1.bf16.msra.mxu0 0
    %1517 = vmatprep.subr.bf16.mxu0 0
    %1518 = vmatpush1.bf16.msra.mxu0 0
    %1519 = vmatprep.subr.bf16.mxu0 0
    %1520 = vmatpush1.bf16.msra.mxu0 0
    %1521 = vmatprep.subr.bf16.mxu0 0
    %1522 = vmatpush1.bf16.msra.mxu0 0
    %1523 = vmatprep.mubr.bf16.mxu0 0
    %1524 = vmatmul.mubr.bf16.gmra.mrb[0].mxu0 %v1489
    %v1525 = vpop.f32.mrb[0].mxu0
    %v1526 = vadd.f32 0.0, %v1525
    %v1527 = vpop.f32.mrb[0].mxu0
    %v1528 = vpop.f32.mrb[0].mxu0
    %v1529 = vadd.f32 0.0, %v1528
    %v1530 = vpop.f32.mrb[0].mxu0
    %1531 = vdwg.mxu0
    %v1532 = vadd.f32 %v1322, %v1526
    %v1533 = vadd.f32 %v1323, %v1529
    %v1534 = vld [vmem:[%s13] sm:$0x1]
    %v1536 = vlaneseq
    %v1537 = vshrl.u32 %v1536, 7
    %v1538 = vsub.s32 0, %v1537
    %v1539 = vrot.slane %v1534, %v1538
    %v1541 = vadd.f32 %v1532, %v1539
    %v1542 = vadd.f32 %v1533, %v1539
    %s1543 = scalar_lea.vmem %s2, 1
    %v1544 = vld [vmem:[%s1543] sm:$0x1]
    %s1545 = scalar_lea.vmem %s3, 1
    %v1546 = vld [vmem:[%s1545] sm:$0x1]
    %v1547 = vsel %vm190, %v1541, 0.0
    %1548 = vadd.xlane.f32.xlu0 %v1547
    %v1549 = vpop.xlane.xlu0 %1548
    %v1550 = vsel %vm190, %v1542, 0.0
    %1551 = vadd.xlane.f32.xlu0 %v1550
    %v1552 = vpop.xlane.xlu0 %1551
    %v1553 = vmul.f32 %v1549, %v197
    %v1554 = vmul.f32 %v1552, %v197
    %v1555 = vsub.f32 %v1541, %v1553
    %v1556 = vsub.f32 %v1542, %v1554
    %v1557 = vmul.f32 %v1555, %v1555
    %v1558 = vmul.f32 %v1556, %v1556
    %v1559 = vsel %vm190, %v1557, 0.0
    %1560 = vadd.xlane.f32.xlu0 %v1559
    %v1561 = vpop.xlane.xlu0 %1560
    %v1562 = vsel %vm190, %v1558, 0.0
    %1563 = vadd.xlane.f32.xlu0 %v1562
    %v1564 = vpop.xlane.xlu0 %1563
    %v1565 = vmul.f32 %v1561, %v197
    %v1566 = vmul.f32 %v1564, %v197
    %v1567 = vadd.f32 %v1565, 1e-05
    %v1568 = vadd.f32 %v1566, 1e-05
    %v1569 = vrsqrt.pop %v1567
    %v1570 = vrsqrt.pop %v1568
    %v1571 = vmul.f32 %v1555, %v1569
    %v1572 = vmul.f32 %v1556, %v1570
    %v1574 = vlaneseq
    %v1575 = vshrl.u32 %v1574, 7
    %v1576 = vsub.s32 0, %v1575
    %v1577 = vrot.slane %v1544, %v1576
    %v1579 = vmul.f32 %v1571, %v1577
    %v1580 = vmul.f32 %v1572, %v1577
    %v1582 = vlaneseq
    %v1583 = vshrl.u32 %v1582, 7
    %v1584 = vsub.s32 0, %v1583
    %v1585 = vrot.slane %v1546, %v1584
    %v1587 = vadd.f32 %v1579, %v1585
    %v1588 = vadd.f32 %v1580, %v1585
    %s1589 = scalar_lea.vmem %s4, 16
    %v1590 = vld [vmem:[%s1589] sm:$0xf]
    %v1591 = vld [vmem:[%s1589 + $0x4] sm:$0xf]
    %v1592 = vld [vmem:[%s1589 + $0x8] sm:$0xf]
    %v1593 = vld [vmem:[%s1589 + $0xc] sm:$0xf]
    %v1594 = vpack.c.bf16 %v1588, %v1587
    %s1595 = scalar_lea.vmem %s5, 1
    %v1596 = vld [vmem:[%s1595] sm:$0x1]
    %v1598 = vlaneseq
    %v1599 = vshrl.u32 %v1598, 7
    %v1600 = vsub.s32 0, %v1599
    %v1601 = vrot.slane %v1596, %v1600
    %v1607 = vunpack.c.l.b16 %v1590
    %v1608 = vunpack.c.l.b16 %v1591
    %v1609 = vunpack.c.l.b16 %v1592
    %v1610 = vunpack.c.l.b16 %v1593
    %v1611 = vpack.c.b16 %v1608, %v1607
    %v1612 = vpack.c.b16 %v1610, %v1609
    %v1616 = vsel %vm190, %v1594, 0
    %1618 = vmatprep.subr.bf16.mxu0 0
    %1619 = vmatpush1.bf16.msra.mxu0 %v1611
    %1620 = vmatprep.subr.bf16.mxu0 0
    %1621 = vmatpush1.bf16.msra.mxu0 %v1612
    %1622 = vmatprep.subr.bf16.mxu0 0
    %1623 = vmatpush1.bf16.msra.mxu0 0
    %1624 = vmatprep.subr.bf16.mxu0 0
    %1625 = vmatpush1.bf16.msra.mxu0 0
    %1626 = vmatprep.subr.bf16.mxu0 0
    %1627 = vmatpush1.bf16.msra.mxu0 0
    %1628 = vmatprep.subr.bf16.mxu0 0
    %1629 = vmatpush1.bf16.msra.mxu0 0
    %1630 = vmatprep.subr.bf16.mxu0 0
    %1631 = vmatpush1.bf16.msra.mxu0 0
    %1632 = vmatprep.subr.bf16.mxu0 0
    %1633 = vmatpush1.bf16.msra.mxu0 0
    %1634 = vmatprep.subr.bf16.mxu0 0
    %1635 = vmatpush1.bf16.msra.mxu0 0
    %1636 = vmatprep.subr.bf16.mxu0 0
    %1637 = vmatpush1.bf16.msra.mxu0 0
    %1638 = vmatprep.subr.bf16.mxu0 0
    %1639 = vmatpush1.bf16.msra.mxu0 0
    %1640 = vmatprep.subr.bf16.mxu0 0
    %1641 = vmatpush1.bf16.msra.mxu0 0
    %1642 = vmatprep.subr.bf16.mxu0 0
    %1643 = vmatpush1.bf16.msra.mxu0 0
    %1644 = vmatprep.subr.bf16.mxu0 0
    %1645 = vmatpush1.bf16.msra.mxu0 0
    %1646 = vmatprep.subr.bf16.mxu0 0
    %1647 = vmatpush1.bf16.msra.mxu0 0
    %1648 = vmatprep.subr.bf16.mxu0 0
    %1649 = vmatpush1.bf16.msra.mxu0 0
    %1650 = vmatprep.mubr.bf16.mxu0 0
    %1651 = vmatmul.mubr.bf16.gmra.mrb[0].mxu0 %v1616
    %v1652 = vpop.f32.mrb[0].mxu0
    %v1653 = vadd.f32 %v1601, %v1652
    %v1654 = vpop.f32.mrb[0].mxu0
    %v1655 = vpop.f32.mrb[0].mxu0
    %v1656 = vadd.f32 %v1601, %v1655
    %v1657 = vpop.f32.mrb[0].mxu0
    %1658 = vdwg.mxu0
    %1661 = vrot.lane.b32.xlu0 %v1653, 120
    %v1662 = vpop.permute.xlu0 %1661
    %1663 = vrot.lane.b32.xlu0 %v1656, 120
    %v1664 = vpop.permute.xlu0 %1663
    %1667 = vrot.lane.b32.xlu0 %v1653, 112
    %v1668 = vpop.permute.xlu0 %1667
    %1669 = vrot.lane.b32.xlu0 %v1656, 112
    %v1670 = vpop.permute.xlu0 %1669
    %1673 = vrot.lane.b32.xlu0 %v1653, 104
    %v1674 = vpop.permute.xlu0 %1673
    %1675 = vrot.lane.b32.xlu0 %v1656, 104
    %v1676 = vpop.permute.xlu0 %1675
    %v1679 = vpack.c.bf16 %v1653, %v1653
    %v1680 = vpack.c.bf16 %v1656, %v1656
    %v1681 = vpack.c.bf16 %v1662, %v1662
    %v1682 = vpack.c.bf16 %v1664, %v1664
    %v1683 = vpack.c.bf16 %v1668, %v1668
    %v1684 = vpack.c.bf16 %v1670, %v1670
    %v1685 = vpack.c.bf16 %v1674, %v1674
    %v1686 = vpack.c.bf16 %v1676, %v1676
    %1688 = vrot.lane.b32.xlu0 %v1679, 96
    %v1689 = vpop.permute.xlu0 %1688
    %v1691 = vsel %vm333, %v1679, 0
    %v1694 = vsel %vm333, %v1689, 0
    %1696 = vmatprep.subr.bf16.mxu0 0
    %1697 = vmatpush1.bf16.xpose.msra.mxu0 %v1694
    %1698 = vmatprep.subr.bf16.mxu0 0
    %1699 = vmatpush1.bf16.xpose.msra.mxu0 0
    %1700 = vmatprep.subr.bf16.mxu0 0
    %1701 = vmatpush1.bf16.xpose.msra.mxu0 0
    %1702 = vmatprep.subr.bf16.mxu0 0
    %1703 = vmatpush1.bf16.xpose.msra.mxu0 0
    %1704 = vmatprep.subr.bf16.mxu0 0
    %1705 = vmatpush1.bf16.xpose.msra.mxu0 0
    %1706 = vmatprep.subr.bf16.mxu0 0
    %1707 = vmatpush1.bf16.xpose.msra.mxu0 0
    %1708 = vmatprep.subr.bf16.mxu0 0
    %1709 = vmatpush1.bf16.xpose.msra.mxu0 0
    %1710 = vmatprep.subr.bf16.mxu0 0
    %1711 = vmatpush1.bf16.xpose.msra.mxu0 0
    %1712 = vmatprep.subr.bf16.mxu0 0
    %1713 = vmatpush1.bf16.xpose.msra.mxu0 0
    %1714 = vmatprep.subr.bf16.mxu0 0
    %1715 = vmatpush1.bf16.xpose.msra.mxu0 0
    %1716 = vmatprep.subr.bf16.mxu0 0
    %1717 = vmatpush1.bf16.xpose.msra.mxu0 0
    %1718 = vmatprep.subr.bf16.mxu0 0
    %1719 = vmatpush1.bf16.xpose.msra.mxu0 0
    %1720 = vmatprep.subr.bf16.mxu0 0
    %1721 = vmatpush1.bf16.xpose.msra.mxu0 0
    %1722 = vmatprep.subr.bf16.mxu0 0
    %1723 = vmatpush1.bf16.xpose.msra.mxu0 0
    %1724 = vmatprep.subr.bf16.mxu0 0
    %1725 = vmatpush1.bf16.xpose.msra.mxu0 0
    %1726 = vmatprep.subr.bf16.mxu0 0
    %1727 = vmatpush1.bf16.xpose.msra.mxu0 0
    %1728 = vmatprep.mubr.bf16.mxu0 0
    %1729 = vmatmul.mubr.bf16.gmra.mrb[0].mxu0 %v1691
    %v1730 = vpop.f32.mrb[0].mxu0
    %v1731 = vadd.f32 0.0, %v1730
    %v1732 = vpop.f32.mrb[0].mxu0
    %v1733 = vpop.f32.mrb[0].mxu0
    %v1734 = vpop.f32.mrb[0].mxu0
    %1735 = vdwg.mxu0
    %1737 = vrot.lane.b32.xlu0 %v1680, 96
    %v1738 = vpop.permute.xlu0 %1737
    %v1740 = vsel %vm333, %v1680, 0
    %v1743 = vsel %vm333, %v1738, 0
    %1745 = vmatprep.subr.bf16.mxu0 0
    %1746 = vmatpush1.bf16.xpose.msra.mxu0 %v1743
    %1747 = vmatprep.subr.bf16.mxu0 0
    %1748 = vmatpush1.bf16.xpose.msra.mxu0 0
    %1749 = vmatprep.subr.bf16.mxu0 0
    %1750 = vmatpush1.bf16.xpose.msra.mxu0 0
    %1751 = vmatprep.subr.bf16.mxu0 0
    %1752 = vmatpush1.bf16.xpose.msra.mxu0 0
    %1753 = vmatprep.subr.bf16.mxu0 0
    %1754 = vmatpush1.bf16.xpose.msra.mxu0 0
    %1755 = vmatprep.subr.bf16.mxu0 0
    %1756 = vmatpush1.bf16.xpose.msra.mxu0 0
    %1757 = vmatprep.subr.bf16.mxu0 0
    %1758 = vmatpush1.bf16.xpose.msra.mxu0 0
    %1759 = vmatprep.subr.bf16.mxu0 0
    %1760 = vmatpush1.bf16.xpose.msra.mxu0 0
    %1761 = vmatprep.subr.bf16.mxu0 0
    %1762 = vmatpush1.bf16.xpose.msra.mxu0 0
    %1763 = vmatprep.subr.bf16.mxu0 0
    %1764 = vmatpush1.bf16.xpose.msra.mxu0 0
    %1765 = vmatprep.subr.bf16.mxu0 0
    %1766 = vmatpush1.bf16.xpose.msra.mxu0 0
    %1767 = vmatprep.subr.bf16.mxu0 0
    %1768 = vmatpush1.bf16.xpose.msra.mxu0 0
    %1769 = vmatprep.subr.bf16.mxu0 0
    %1770 = vmatpush1.bf16.xpose.msra.mxu0 0
    %1771 = vmatprep.subr.bf16.mxu0 0
    %1772 = vmatpush1.bf16.xpose.msra.mxu0 0
    %1773 = vmatprep.subr.bf16.mxu0 0
    %1774 = vmatpush1.bf16.xpose.msra.mxu0 0
    %1775 = vmatprep.subr.bf16.mxu0 0
    %1776 = vmatpush1.bf16.xpose.msra.mxu0 0
    %1777 = vmatprep.mubr.bf16.mxu0 0
    %1778 = vmatmul.mubr.bf16.gmra.mrb[0].mxu0 %v1740
    %v1779 = vpop.f32.mrb[0].mxu0
    %v1780 = vadd.f32 0.0, %v1779
    %v1781 = vpop.f32.mrb[0].mxu0
    %v1782 = vpop.f32.mrb[0].mxu0
    %v1783 = vpop.f32.mrb[0].mxu0
    %1784 = vdwg.mxu0
    %1786 = vrot.lane.b32.xlu0 %v1681, 96
    %v1787 = vpop.permute.xlu0 %1786
    %v1789 = vsel %vm333, %v1681, 0
    %v1792 = vsel %vm333, %v1787, 0
    %1794 = vmatprep.subr.bf16.mxu0 0
    %1795 = vmatpush1.bf16.xpose.msra.mxu0 %v1792
    %1796 = vmatprep.subr.bf16.mxu0 0
    %1797 = vmatpush1.bf16.xpose.msra.mxu0 0
    %1798 = vmatprep.subr.bf16.mxu0 0
    %1799 = vmatpush1.bf16.xpose.msra.mxu0 0
    %1800 = vmatprep.subr.bf16.mxu0 0
    %1801 = vmatpush1.bf16.xpose.msra.mxu0 0
    %1802 = vmatprep.subr.bf16.mxu0 0
    %1803 = vmatpush1.bf16.xpose.msra.mxu0 0
    %1804 = vmatprep.subr.bf16.mxu0 0
    %1805 = vmatpush1.bf16.xpose.msra.mxu0 0
    %1806 = vmatprep.subr.bf16.mxu0 0
    %1807 = vmatpush1.bf16.xpose.msra.mxu0 0
    %1808 = vmatprep.subr.bf16.mxu0 0
    %1809 = vmatpush1.bf16.xpose.msra.mxu0 0
    %1810 = vmatprep.subr.bf16.mxu0 0
    %1811 = vmatpush1.bf16.xpose.msra.mxu0 0
    %1812 = vmatprep.subr.bf16.mxu0 0
    %1813 = vmatpush1.bf16.xpose.msra.mxu0 0
    %1814 = vmatprep.subr.bf16.mxu0 0
    %1815 = vmatpush1.bf16.xpose.msra.mxu0 0
    %1816 = vmatprep.subr.bf16.mxu0 0
    %1817 = vmatpush1.bf16.xpose.msra.mxu0 0
    %1818 = vmatprep.subr.bf16.mxu0 0
    %1819 = vmatpush1.bf16.xpose.msra.mxu0 0
    %1820 = vmatprep.subr.bf16.mxu0 0
    %1821 = vmatpush1.bf16.xpose.msra.mxu0 0
    %1822 = vmatprep.subr.bf16.mxu0 0
    %1823 = vmatpush1.bf16.xpose.msra.mxu0 0
    %1824 = vmatprep.subr.bf16.mxu0 0
    %1825 = vmatpush1.bf16.xpose.msra.mxu0 0
    %1826 = vmatprep.mubr.bf16.mxu0 0
    %1827 = vmatmul.mubr.bf16.gmra.mrb[0].mxu0 %v1789
    %v1828 = vpop.f32.mrb[0].mxu0
    %v1829 = vadd.f32 0.0, %v1828
    %v1830 = vpop.f32.mrb[0].mxu0
    %v1831 = vpop.f32.mrb[0].mxu0
    %v1832 = vpop.f32.mrb[0].mxu0
    %1833 = vdwg.mxu0
    %1835 = vrot.lane.b32.xlu0 %v1682, 96
    %v1836 = vpop.permute.xlu0 %1835
    %v1838 = vsel %vm333, %v1682, 0
    %v1841 = vsel %vm333, %v1836, 0
    %1843 = vmatprep.subr.bf16.mxu0 0
    %1844 = vmatpush1.bf16.xpose.msra.mxu0 %v1841
    %1845 = vmatprep.subr.bf16.mxu0 0
    %1846 = vmatpush1.bf16.xpose.msra.mxu0 0
    %1847 = vmatprep.subr.bf16.mxu0 0
    %1848 = vmatpush1.bf16.xpose.msra.mxu0 0
    %1849 = vmatprep.subr.bf16.mxu0 0
    %1850 = vmatpush1.bf16.xpose.msra.mxu0 0
    %1851 = vmatprep.subr.bf16.mxu0 0
    %1852 = vmatpush1.bf16.xpose.msra.mxu0 0
    %1853 = vmatprep.subr.bf16.mxu0 0
    %1854 = vmatpush1.bf16.xpose.msra.mxu0 0
    %1855 = vmatprep.subr.bf16.mxu0 0
    %1856 = vmatpush1.bf16.xpose.msra.mxu0 0
    %1857 = vmatprep.subr.bf16.mxu0 0
    %1858 = vmatpush1.bf16.xpose.msra.mxu0 0
    %1859 = vmatprep.subr.bf16.mxu0 0
    %1860 = vmatpush1.bf16.xpose.msra.mxu0 0
    %1861 = vmatprep.subr.bf16.mxu0 0
    %1862 = vmatpush1.bf16.xpose.msra.mxu0 0
    %1863 = vmatprep.subr.bf16.mxu0 0
    %1864 = vmatpush1.bf16.xpose.msra.mxu0 0
    %1865 = vmatprep.subr.bf16.mxu0 0
    %1866 = vmatpush1.bf16.xpose.msra.mxu0 0
    %1867 = vmatprep.subr.bf16.mxu0 0
    %1868 = vmatpush1.bf16.xpose.msra.mxu0 0
    %1869 = vmatprep.subr.bf16.mxu0 0
    %1870 = vmatpush1.bf16.xpose.msra.mxu0 0
    %1871 = vmatprep.subr.bf16.mxu0 0
    %1872 = vmatpush1.bf16.xpose.msra.mxu0 0
    %1873 = vmatprep.subr.bf16.mxu0 0
    %1874 = vmatpush1.bf16.xpose.msra.mxu0 0
    %1875 = vmatprep.mubr.bf16.mxu0 0
    %1876 = vmatmul.mubr.bf16.gmra.mrb[0].mxu0 %v1838
    %v1877 = vpop.f32.mrb[0].mxu0
    %v1878 = vadd.f32 0.0, %v1877
    %v1879 = vpop.f32.mrb[0].mxu0
    %v1880 = vpop.f32.mrb[0].mxu0
    %v1881 = vpop.f32.mrb[0].mxu0
    %1882 = vdwg.mxu0
    %1884 = vrot.lane.b32.xlu0 %v1683, 96
    %v1885 = vpop.permute.xlu0 %1884
    %v1887 = vsel %vm333, %v1683, 0
    %v1890 = vsel %vm333, %v1885, 0
    %1892 = vmatprep.subr.bf16.mxu0 0
    %1893 = vmatpush1.bf16.xpose.msra.mxu0 %v1890
    %1894 = vmatprep.subr.bf16.mxu0 0
    %1895 = vmatpush1.bf16.xpose.msra.mxu0 0
    %1896 = vmatprep.subr.bf16.mxu0 0
    %1897 = vmatpush1.bf16.xpose.msra.mxu0 0
    %1898 = vmatprep.subr.bf16.mxu0 0
    %1899 = vmatpush1.bf16.xpose.msra.mxu0 0
    %1900 = vmatprep.subr.bf16.mxu0 0
    %1901 = vmatpush1.bf16.xpose.msra.mxu0 0
    %1902 = vmatprep.subr.bf16.mxu0 0
    %1903 = vmatpush1.bf16.xpose.msra.mxu0 0
    %1904 = vmatprep.subr.bf16.mxu0 0
    %1905 = vmatpush1.bf16.xpose.msra.mxu0 0
    %1906 = vmatprep.subr.bf16.mxu0 0
    %1907 = vmatpush1.bf16.xpose.msra.mxu0 0
    %1908 = vmatprep.subr.bf16.mxu0 0
    %1909 = vmatpush1.bf16.xpose.msra.mxu0 0
    %1910 = vmatprep.subr.bf16.mxu0 0
    %1911 = vmatpush1.bf16.xpose.msra.mxu0 0
    %1912 = vmatprep.subr.bf16.mxu0 0
    %1913 = vmatpush1.bf16.xpose.msra.mxu0 0
    %1914 = vmatprep.subr.bf16.mxu0 0
    %1915 = vmatpush1.bf16.xpose.msra.mxu0 0
    %1916 = vmatprep.subr.bf16.mxu0 0
    %1917 = vmatpush1.bf16.xpose.msra.mxu0 0
    %1918 = vmatprep.subr.bf16.mxu0 0
    %1919 = vmatpush1.bf16.xpose.msra.mxu0 0
    %1920 = vmatprep.subr.bf16.mxu0 0
    %1921 = vmatpush1.bf16.xpose.msra.mxu0 0
    %1922 = vmatprep.subr.bf16.mxu0 0
    %1923 = vmatpush1.bf16.xpose.msra.mxu0 0
    %1924 = vmatprep.mubr.bf16.mxu0 0
    %1925 = vmatmul.mubr.bf16.gmra.mrb[0].mxu0 %v1887
    %v1926 = vpop.f32.mrb[0].mxu0
    %v1927 = vadd.f32 0.0, %v1926
    %v1928 = vpop.f32.mrb[0].mxu0
    %v1929 = vpop.f32.mrb[0].mxu0
    %v1930 = vpop.f32.mrb[0].mxu0
    %1931 = vdwg.mxu0
    %1933 = vrot.lane.b32.xlu0 %v1684, 96
    %v1934 = vpop.permute.xlu0 %1933
    %v1936 = vsel %vm333, %v1684, 0
    %v1939 = vsel %vm333, %v1934, 0
    %1941 = vmatprep.subr.bf16.mxu0 0
    %1942 = vmatpush1.bf16.xpose.msra.mxu0 %v1939
    %1943 = vmatprep.subr.bf16.mxu0 0
    %1944 = vmatpush1.bf16.xpose.msra.mxu0 0
    %1945 = vmatprep.subr.bf16.mxu0 0
    %1946 = vmatpush1.bf16.xpose.msra.mxu0 0
    %1947 = vmatprep.subr.bf16.mxu0 0
    %1948 = vmatpush1.bf16.xpose.msra.mxu0 0
    %1949 = vmatprep.subr.bf16.mxu0 0
    %1950 = vmatpush1.bf16.xpose.msra.mxu0 0
    %1951 = vmatprep.subr.bf16.mxu0 0
    %1952 = vmatpush1.bf16.xpose.msra.mxu0 0
    %1953 = vmatprep.subr.bf16.mxu0 0
    %1954 = vmatpush1.bf16.xpose.msra.mxu0 0
    %1955 = vmatprep.subr.bf16.mxu0 0
    %1956 = vmatpush1.bf16.xpose.msra.mxu0 0
    %1957 = vmatprep.subr.bf16.mxu0 0
    %1958 = vmatpush1.bf16.xpose.msra.mxu0 0
    %1959 = vmatprep.subr.bf16.mxu0 0
    %1960 = vmatpush1.bf16.xpose.msra.mxu0 0
    %1961 = vmatprep.subr.bf16.mxu0 0
    %1962 = vmatpush1.bf16.xpose.msra.mxu0 0
    %1963 = vmatprep.subr.bf16.mxu0 0
    %1964 = vmatpush1.bf16.xpose.msra.mxu0 0
    %1965 = vmatprep.subr.bf16.mxu0 0
    %1966 = vmatpush1.bf16.xpose.msra.mxu0 0
    %1967 = vmatprep.subr.bf16.mxu0 0
    %1968 = vmatpush1.bf16.xpose.msra.mxu0 0
    %1969 = vmatprep.subr.bf16.mxu0 0
    %1970 = vmatpush1.bf16.xpose.msra.mxu0 0
    %1971 = vmatprep.subr.bf16.mxu0 0
    %1972 = vmatpush1.bf16.xpose.msra.mxu0 0
    %1973 = vmatprep.mubr.bf16.mxu0 0
    %1974 = vmatmul.mubr.bf16.gmra.mrb[0].mxu0 %v1936
    %v1975 = vpop.f32.mrb[0].mxu0
    %v1976 = vadd.f32 0.0, %v1975
    %v1977 = vpop.f32.mrb[0].mxu0
    %v1978 = vpop.f32.mrb[0].mxu0
    %v1979 = vpop.f32.mrb[0].mxu0
    %1980 = vdwg.mxu0
    %1982 = vrot.lane.b32.xlu0 %v1685, 96
    %v1983 = vpop.permute.xlu0 %1982
    %v1985 = vsel %vm333, %v1685, 0
    %v1988 = vsel %vm333, %v1983, 0
    %1990 = vmatprep.subr.bf16.mxu0 0
    %1991 = vmatpush1.bf16.xpose.msra.mxu0 %v1988
    %1992 = vmatprep.subr.bf16.mxu0 0
    %1993 = vmatpush1.bf16.xpose.msra.mxu0 0
    %1994 = vmatprep.subr.bf16.mxu0 0
    %1995 = vmatpush1.bf16.xpose.msra.mxu0 0
    %1996 = vmatprep.subr.bf16.mxu0 0
    %1997 = vmatpush1.bf16.xpose.msra.mxu0 0
    %1998 = vmatprep.subr.bf16.mxu0 0
    %1999 = vmatpush1.bf16.xpose.msra.mxu0 0
    %2000 = vmatprep.subr.bf16.mxu0 0
    %2001 = vmatpush1.bf16.xpose.msra.mxu0 0
    %2002 = vmatprep.subr.bf16.mxu0 0
    %2003 = vmatpush1.bf16.xpose.msra.mxu0 0
    %2004 = vmatprep.subr.bf16.mxu0 0
    %2005 = vmatpush1.bf16.xpose.msra.mxu0 0
    %2006 = vmatprep.subr.bf16.mxu0 0
    %2007 = vmatpush1.bf16.xpose.msra.mxu0 0
    %2008 = vmatprep.subr.bf16.mxu0 0
    %2009 = vmatpush1.bf16.xpose.msra.mxu0 0
    %2010 = vmatprep.subr.bf16.mxu0 0
    %2011 = vmatpush1.bf16.xpose.msra.mxu0 0
    %2012 = vmatprep.subr.bf16.mxu0 0
    %2013 = vmatpush1.bf16.xpose.msra.mxu0 0
    %2014 = vmatprep.subr.bf16.mxu0 0
    %2015 = vmatpush1.bf16.xpose.msra.mxu0 0
    %2016 = vmatprep.subr.bf16.mxu0 0
    %2017 = vmatpush1.bf16.xpose.msra.mxu0 0
    %2018 = vmatprep.subr.bf16.mxu0 0
    %2019 = vmatpush1.bf16.xpose.msra.mxu0 0
    %2020 = vmatprep.subr.bf16.mxu0 0
    %2021 = vmatpush1.bf16.xpose.msra.mxu0 0
    %2022 = vmatprep.mubr.bf16.mxu0 0
    %2023 = vmatmul.mubr.bf16.gmra.mrb[0].mxu0 %v1985
    %v2024 = vpop.f32.mrb[0].mxu0
    %v2025 = vadd.f32 0.0, %v2024
    %v2026 = vpop.f32.mrb[0].mxu0
    %v2027 = vpop.f32.mrb[0].mxu0
    %v2028 = vpop.f32.mrb[0].mxu0
    %2029 = vdwg.mxu0
    %2031 = vrot.lane.b32.xlu0 %v1686, 96
    %v2032 = vpop.permute.xlu0 %2031
    %v2034 = vsel %vm333, %v1686, 0
    %v2037 = vsel %vm333, %v2032, 0
    %2039 = vmatprep.subr.bf16.mxu0 0
    %2040 = vmatpush1.bf16.xpose.msra.mxu0 %v2037
    %2041 = vmatprep.subr.bf16.mxu0 0
    %2042 = vmatpush1.bf16.xpose.msra.mxu0 0
    %2043 = vmatprep.subr.bf16.mxu0 0
    %2044 = vmatpush1.bf16.xpose.msra.mxu0 0
    %2045 = vmatprep.subr.bf16.mxu0 0
    %2046 = vmatpush1.bf16.xpose.msra.mxu0 0
    %2047 = vmatprep.subr.bf16.mxu0 0
    %2048 = vmatpush1.bf16.xpose.msra.mxu0 0
    %2049 = vmatprep.subr.bf16.mxu0 0
    %2050 = vmatpush1.bf16.xpose.msra.mxu0 0
    %2051 = vmatprep.subr.bf16.mxu0 0
    %2052 = vmatpush1.bf16.xpose.msra.mxu0 0
    %2053 = vmatprep.subr.bf16.mxu0 0
    %2054 = vmatpush1.bf16.xpose.msra.mxu0 0
    %2055 = vmatprep.subr.bf16.mxu0 0
    %2056 = vmatpush1.bf16.xpose.msra.mxu0 0
    %2057 = vmatprep.subr.bf16.mxu0 0
    %2058 = vmatpush1.bf16.xpose.msra.mxu0 0
    %2059 = vmatprep.subr.bf16.mxu0 0
    %2060 = vmatpush1.bf16.xpose.msra.mxu0 0
    %2061 = vmatprep.subr.bf16.mxu0 0
    %2062 = vmatpush1.bf16.xpose.msra.mxu0 0
    %2063 = vmatprep.subr.bf16.mxu0 0
    %2064 = vmatpush1.bf16.xpose.msra.mxu0 0
    %2065 = vmatprep.subr.bf16.mxu0 0
    %2066 = vmatpush1.bf16.xpose.msra.mxu0 0
    %2067 = vmatprep.subr.bf16.mxu0 0
    %2068 = vmatpush1.bf16.xpose.msra.mxu0 0
    %2069 = vmatprep.subr.bf16.mxu0 0
    %2070 = vmatpush1.bf16.xpose.msra.mxu0 0
    %2071 = vmatprep.mubr.bf16.mxu0 0
    %2072 = vmatmul.mubr.bf16.gmra.mrb[0].mxu0 %v2034
    %v2073 = vpop.f32.mrb[0].mxu0
    %v2074 = vadd.f32 0.0, %v2073
    %v2075 = vpop.f32.mrb[0].mxu0
    %v2076 = vpop.f32.mrb[0].mxu0
    %v2077 = vpop.f32.mrb[0].mxu0
    %2078 = vdwg.mxu0
    %v2079 = vmul.f32 %v1731, 0.35355338
    %v2080 = vmul.f32 %v1780, 0.35355338
    %v2081 = vmul.f32 %v1829, 0.35355338
    %v2082 = vmul.f32 %v1878, 0.35355338
    %v2083 = vmul.f32 %v1927, 0.35355338
    %v2084 = vmul.f32 %v1976, 0.35355338
    %v2085 = vmul.f32 %v2025, 0.35355338
    %v2086 = vmul.f32 %v2074, 0.35355338
    %v2087 = vadd.f32 %v2079, %v181
    %v2088 = vadd.f32 %v2080, %v185
    %v2089 = vadd.f32 %v2081, %v181
    %v2090 = vadd.f32 %v2082, %v185
    %v2091 = vadd.f32 %v2083, %v181
    %v2092 = vadd.f32 %v2084, %v185
    %v2093 = vadd.f32 %v2085, %v181
    %v2094 = vadd.f32 %v2086, %v185
    %v2095 = vsel %vm333, %v2087, -inf
    %2096 = vmax.xlane.f32.xlu0 %v2095
    %v2097 = vpop.xlane.xlu0 %2096
    %v2098 = vsel %vm333, %v2088, -inf
    %2099 = vmax.xlane.f32.xlu0 %v2098
    %v2100 = vpop.xlane.xlu0 %2099
    %v2101 = vsel %vm333, %v2089, -inf
    %2102 = vmax.xlane.f32.xlu0 %v2101
    %v2103 = vpop.xlane.xlu0 %2102
    %v2104 = vsel %vm333, %v2090, -inf
    %2105 = vmax.xlane.f32.xlu0 %v2104
    %v2106 = vpop.xlane.xlu0 %2105
    %v2107 = vsel %vm333, %v2091, -inf
    %2108 = vmax.xlane.f32.xlu0 %v2107
    %v2109 = vpop.xlane.xlu0 %2108
    %v2110 = vsel %vm333, %v2092, -inf
    %2111 = vmax.xlane.f32.xlu0 %v2110
    %v2112 = vpop.xlane.xlu0 %2111
    %v2113 = vsel %vm333, %v2093, -inf
    %2114 = vmax.xlane.f32.xlu0 %v2113
    %v2115 = vpop.xlane.xlu0 %2114
    %v2116 = vsel %vm333, %v2094, -inf
    %2117 = vmax.xlane.f32.xlu0 %v2116
    %v2118 = vpop.xlane.xlu0 %2117
    %v2119 = vsub.f32 %v2087, %v2097
    %v2120 = vsub.f32 %v2088, %v2100
    %v2121 = vsub.f32 %v2089, %v2103
    %v2122 = vsub.f32 %v2090, %v2106
    %v2123 = vsub.f32 %v2091, %v2109
    %v2124 = vsub.f32 %v2092, %v2112
    %v2125 = vsub.f32 %v2093, %v2115
    %v2126 = vsub.f32 %v2094, %v2118
    %v2127 = vmul.f32 %v2119, 1.442695
    %v2128 = vpow.pop %v2127
    %v2129 = vmul.f32 %v2120, 1.442695
    %v2130 = vpow.pop %v2129
    %v2131 = vmul.f32 %v2121, 1.442695
    %v2132 = vpow.pop %v2131
    %v2133 = vmul.f32 %v2122, 1.442695
    %v2134 = vpow.pop %v2133
    %v2135 = vmul.f32 %v2123, 1.442695
    %v2136 = vpow.pop %v2135
    %v2137 = vmul.f32 %v2124, 1.442695
    %v2138 = vpow.pop %v2137
    %v2139 = vmul.f32 %v2125, 1.442695
    %v2140 = vpow.pop %v2139
    %v2141 = vmul.f32 %v2126, 1.442695
    %v2142 = vpow.pop %v2141
    %v2143 = vsel %vm333, %v2128, 0.0
    %2144 = vadd.xlane.f32.xlu0 %v2143
    %v2145 = vpop.xlane.xlu0 %2144
    %v2146 = vsel %vm333, %v2130, 0.0
    %2147 = vadd.xlane.f32.xlu0 %v2146
    %v2148 = vpop.xlane.xlu0 %2147
    %v2149 = vsel %vm333, %v2132, 0.0
    %2150 = vadd.xlane.f32.xlu0 %v2149
    %v2151 = vpop.xlane.xlu0 %2150
    %v2152 = vsel %vm333, %v2134, 0.0
    %2153 = vadd.xlane.f32.xlu0 %v2152
    %v2154 = vpop.xlane.xlu0 %2153
    %v2155 = vsel %vm333, %v2136, 0.0
    %2156 = vadd.xlane.f32.xlu0 %v2155
    %v2157 = vpop.xlane.xlu0 %2156
    %v2158 = vsel %vm333, %v2138, 0.0
    %2159 = vadd.xlane.f32.xlu0 %v2158
    %v2160 = vpop.xlane.xlu0 %2159
    %v2161 = vsel %vm333, %v2140, 0.0
    %2162 = vadd.xlane.f32.xlu0 %v2161
    %v2163 = vpop.xlane.xlu0 %2162
    %v2164 = vsel %vm333, %v2142, 0.0
    %2165 = vadd.xlane.f32.xlu0 %v2164
    %v2166 = vpop.xlane.xlu0 %2165
    %v2167 = vrcp.pop %v2145
    %v2168 = vrcp.pop %v2148
    %v2169 = vrcp.pop %v2151
    %v2170 = vrcp.pop %v2154
    %v2171 = vrcp.pop %v2157
    %v2172 = vrcp.pop %v2160
    %v2173 = vrcp.pop %v2163
    %v2174 = vrcp.pop %v2166
    %v2175 = vmul.f32 %v2128, %v2167
    %v2176 = vmul.f32 %v2130, %v2168
    %v2177 = vmul.f32 %v2132, %v2169
    %v2178 = vmul.f32 %v2134, %v2170
    %v2179 = vmul.f32 %v2136, %v2171
    %v2180 = vmul.f32 %v2138, %v2172
    %v2181 = vmul.f32 %v2140, %v2173
    %v2182 = vmul.f32 %v2142, %v2174
    %v2183 = vpack.c.bf16 %v2175, %v2175
    %v2184 = vpack.c.bf16 %v2176, %v2176
    %v2185 = vpack.c.bf16 %v2177, %v2177
    %v2186 = vpack.c.bf16 %v2178, %v2178
    %v2187 = vpack.c.bf16 %v2179, %v2179
    %v2188 = vpack.c.bf16 %v2180, %v2180
    %v2189 = vpack.c.bf16 %v2181, %v2181
    %v2190 = vpack.c.bf16 %v2182, %v2182
    %2191 = vrot.lane.b32.xlu0 %v1679, 64
    %v2192 = vpop.permute.xlu0 %2191
    %v2194 = vsel %vm333, %v2183, 0
    %v2197 = vsel %vm840, %v2192, 0
    %2199 = vmatprep.subr.bf16.mxu0 0
    %2200 = vmatpush1.bf16.msra.mxu0 %v2197
    %2201 = vmatprep.subr.bf16.mxu0 0
    %2202 = vmatpush1.bf16.msra.mxu0 0
    %2203 = vmatprep.subr.bf16.mxu0 0
    %2204 = vmatpush1.bf16.msra.mxu0 0
    %2205 = vmatprep.subr.bf16.mxu0 0
    %2206 = vmatpush1.bf16.msra.mxu0 0
    %2207 = vmatprep.subr.bf16.mxu0 0
    %2208 = vmatpush1.bf16.msra.mxu0 0
    %2209 = vmatprep.subr.bf16.mxu0 0
    %2210 = vmatpush1.bf16.msra.mxu0 0
    %2211 = vmatprep.subr.bf16.mxu0 0
    %2212 = vmatpush1.bf16.msra.mxu0 0
    %2213 = vmatprep.subr.bf16.mxu0 0
    %2214 = vmatpush1.bf16.msra.mxu0 0
    %2215 = vmatprep.subr.bf16.mxu0 0
    %2216 = vmatpush1.bf16.msra.mxu0 0
    %2217 = vmatprep.subr.bf16.mxu0 0
    %2218 = vmatpush1.bf16.msra.mxu0 0
    %2219 = vmatprep.subr.bf16.mxu0 0
    %2220 = vmatpush1.bf16.msra.mxu0 0
    %2221 = vmatprep.subr.bf16.mxu0 0
    %2222 = vmatpush1.bf16.msra.mxu0 0
    %2223 = vmatprep.subr.bf16.mxu0 0
    %2224 = vmatpush1.bf16.msra.mxu0 0
    %2225 = vmatprep.subr.bf16.mxu0 0
    %2226 = vmatpush1.bf16.msra.mxu0 0
    %2227 = vmatprep.subr.bf16.mxu0 0
    %2228 = vmatpush1.bf16.msra.mxu0 0
    %2229 = vmatprep.subr.bf16.mxu0 0
    %2230 = vmatpush1.bf16.msra.mxu0 0
    %2231 = vmatprep.mubr.bf16.mxu0 0
    %2232 = vmatmul.mubr.bf16.gmra.mrb[0].mxu0 %v2194
    %v2233 = vpop.f32.mrb[0].mxu0
    %v2234 = vadd.f32 0.0, %v2233
    %v2235 = vpop.f32.mrb[0].mxu0
    %v2236 = vpop.f32.mrb[0].mxu0
    %v2237 = vpop.f32.mrb[0].mxu0
    %2238 = vdwg.mxu0
    %2239 = vrot.lane.b32.xlu0 %v1680, 64
    %v2240 = vpop.permute.xlu0 %2239
    %v2242 = vsel %vm333, %v2184, 0
    %v2245 = vsel %vm840, %v2240, 0
    %2247 = vmatprep.subr.bf16.mxu0 0
    %2248 = vmatpush1.bf16.msra.mxu0 %v2245
    %2249 = vmatprep.subr.bf16.mxu0 0
    %2250 = vmatpush1.bf16.msra.mxu0 0
    %2251 = vmatprep.subr.bf16.mxu0 0
    %2252 = vmatpush1.bf16.msra.mxu0 0
    %2253 = vmatprep.subr.bf16.mxu0 0
    %2254 = vmatpush1.bf16.msra.mxu0 0
    %2255 = vmatprep.subr.bf16.mxu0 0
    %2256 = vmatpush1.bf16.msra.mxu0 0
    %2257 = vmatprep.subr.bf16.mxu0 0
    %2258 = vmatpush1.bf16.msra.mxu0 0
    %2259 = vmatprep.subr.bf16.mxu0 0
    %2260 = vmatpush1.bf16.msra.mxu0 0
    %2261 = vmatprep.subr.bf16.mxu0 0
    %2262 = vmatpush1.bf16.msra.mxu0 0
    %2263 = vmatprep.subr.bf16.mxu0 0
    %2264 = vmatpush1.bf16.msra.mxu0 0
    %2265 = vmatprep.subr.bf16.mxu0 0
    %2266 = vmatpush1.bf16.msra.mxu0 0
    %2267 = vmatprep.subr.bf16.mxu0 0
    %2268 = vmatpush1.bf16.msra.mxu0 0
    %2269 = vmatprep.subr.bf16.mxu0 0
    %2270 = vmatpush1.bf16.msra.mxu0 0
    %2271 = vmatprep.subr.bf16.mxu0 0
    %2272 = vmatpush1.bf16.msra.mxu0 0
    %2273 = vmatprep.subr.bf16.mxu0 0
    %2274 = vmatpush1.bf16.msra.mxu0 0
    %2275 = vmatprep.subr.bf16.mxu0 0
    %2276 = vmatpush1.bf16.msra.mxu0 0
    %2277 = vmatprep.subr.bf16.mxu0 0
    %2278 = vmatpush1.bf16.msra.mxu0 0
    %2279 = vmatprep.mubr.bf16.mxu0 0
    %2280 = vmatmul.mubr.bf16.gmra.mrb[0].mxu0 %v2242
    %v2281 = vpop.f32.mrb[0].mxu0
    %v2282 = vadd.f32 0.0, %v2281
    %v2283 = vpop.f32.mrb[0].mxu0
    %v2284 = vpop.f32.mrb[0].mxu0
    %v2285 = vpop.f32.mrb[0].mxu0
    %2286 = vdwg.mxu0
    %2287 = vrot.lane.b32.xlu0 %v1681, 64
    %v2288 = vpop.permute.xlu0 %2287
    %v2290 = vsel %vm333, %v2185, 0
    %v2293 = vsel %vm840, %v2288, 0
    %2295 = vmatprep.subr.bf16.mxu0 0
    %2296 = vmatpush1.bf16.msra.mxu0 %v2293
    %2297 = vmatprep.subr.bf16.mxu0 0
    %2298 = vmatpush1.bf16.msra.mxu0 0
    %2299 = vmatprep.subr.bf16.mxu0 0
    %2300 = vmatpush1.bf16.msra.mxu0 0
    %2301 = vmatprep.subr.bf16.mxu0 0
    %2302 = vmatpush1.bf16.msra.mxu0 0
    %2303 = vmatprep.subr.bf16.mxu0 0
    %2304 = vmatpush1.bf16.msra.mxu0 0
    %2305 = vmatprep.subr.bf16.mxu0 0
    %2306 = vmatpush1.bf16.msra.mxu0 0
    %2307 = vmatprep.subr.bf16.mxu0 0
    %2308 = vmatpush1.bf16.msra.mxu0 0
    %2309 = vmatprep.subr.bf16.mxu0 0
    %2310 = vmatpush1.bf16.msra.mxu0 0
    %2311 = vmatprep.subr.bf16.mxu0 0
    %2312 = vmatpush1.bf16.msra.mxu0 0
    %2313 = vmatprep.subr.bf16.mxu0 0
    %2314 = vmatpush1.bf16.msra.mxu0 0
    %2315 = vmatprep.subr.bf16.mxu0 0
    %2316 = vmatpush1.bf16.msra.mxu0 0
    %2317 = vmatprep.subr.bf16.mxu0 0
    %2318 = vmatpush1.bf16.msra.mxu0 0
    %2319 = vmatprep.subr.bf16.mxu0 0
    %2320 = vmatpush1.bf16.msra.mxu0 0
    %2321 = vmatprep.subr.bf16.mxu0 0
    %2322 = vmatpush1.bf16.msra.mxu0 0
    %2323 = vmatprep.subr.bf16.mxu0 0
    %2324 = vmatpush1.bf16.msra.mxu0 0
    %2325 = vmatprep.subr.bf16.mxu0 0
    %2326 = vmatpush1.bf16.msra.mxu0 0
    %2327 = vmatprep.mubr.bf16.mxu0 0
    %2328 = vmatmul.mubr.bf16.gmra.mrb[0].mxu0 %v2290
    %v2329 = vpop.f32.mrb[0].mxu0
    %v2330 = vadd.f32 0.0, %v2329
    %v2331 = vpop.f32.mrb[0].mxu0
    %v2332 = vpop.f32.mrb[0].mxu0
    %v2333 = vpop.f32.mrb[0].mxu0
    %2334 = vdwg.mxu0
    %2335 = vrot.lane.b32.xlu0 %v1682, 64
    %v2336 = vpop.permute.xlu0 %2335
    %v2338 = vsel %vm333, %v2186, 0
    %v2341 = vsel %vm840, %v2336, 0
    %2343 = vmatprep.subr.bf16.mxu0 0
    %2344 = vmatpush1.bf16.msra.mxu0 %v2341
    %2345 = vmatprep.subr.bf16.mxu0 0
    %2346 = vmatpush1.bf16.msra.mxu0 0
    %2347 = vmatprep.subr.bf16.mxu0 0
    %2348 = vmatpush1.bf16.msra.mxu0 0
    %2349 = vmatprep.subr.bf16.mxu0 0
    %2350 = vmatpush1.bf16.msra.mxu0 0
    %2351 = vmatprep.subr.bf16.mxu0 0
    %2352 = vmatpush1.bf16.msra.mxu0 0
    %2353 = vmatprep.subr.bf16.mxu0 0
    %2354 = vmatpush1.bf16.msra.mxu0 0
    %2355 = vmatprep.subr.bf16.mxu0 0
    %2356 = vmatpush1.bf16.msra.mxu0 0
    %2357 = vmatprep.subr.bf16.mxu0 0
    %2358 = vmatpush1.bf16.msra.mxu0 0
    %2359 = vmatprep.subr.bf16.mxu0 0
    %2360 = vmatpush1.bf16.msra.mxu0 0
    %2361 = vmatprep.subr.bf16.mxu0 0
    %2362 = vmatpush1.bf16.msra.mxu0 0
    %2363 = vmatprep.subr.bf16.mxu0 0
    %2364 = vmatpush1.bf16.msra.mxu0 0
    %2365 = vmatprep.subr.bf16.mxu0 0
    %2366 = vmatpush1.bf16.msra.mxu0 0
    %2367 = vmatprep.subr.bf16.mxu0 0
    %2368 = vmatpush1.bf16.msra.mxu0 0
    %2369 = vmatprep.subr.bf16.mxu0 0
    %2370 = vmatpush1.bf16.msra.mxu0 0
    %2371 = vmatprep.subr.bf16.mxu0 0
    %2372 = vmatpush1.bf16.msra.mxu0 0
    %2373 = vmatprep.subr.bf16.mxu0 0
    %2374 = vmatpush1.bf16.msra.mxu0 0
    %2375 = vmatprep.mubr.bf16.mxu0 0
    %2376 = vmatmul.mubr.bf16.gmra.mrb[0].mxu0 %v2338
    %v2377 = vpop.f32.mrb[0].mxu0
    %v2378 = vadd.f32 0.0, %v2377
    %v2379 = vpop.f32.mrb[0].mxu0
    %v2380 = vpop.f32.mrb[0].mxu0
    %v2381 = vpop.f32.mrb[0].mxu0
    %2382 = vdwg.mxu0
    %2383 = vrot.lane.b32.xlu0 %v1683, 64
    %v2384 = vpop.permute.xlu0 %2383
    %v2386 = vsel %vm333, %v2187, 0
    %v2389 = vsel %vm840, %v2384, 0
    %2391 = vmatprep.subr.bf16.mxu0 0
    %2392 = vmatpush1.bf16.msra.mxu0 %v2389
    %2393 = vmatprep.subr.bf16.mxu0 0
    %2394 = vmatpush1.bf16.msra.mxu0 0
    %2395 = vmatprep.subr.bf16.mxu0 0
    %2396 = vmatpush1.bf16.msra.mxu0 0
    %2397 = vmatprep.subr.bf16.mxu0 0
    %2398 = vmatpush1.bf16.msra.mxu0 0
    %2399 = vmatprep.subr.bf16.mxu0 0
    %2400 = vmatpush1.bf16.msra.mxu0 0
    %2401 = vmatprep.subr.bf16.mxu0 0
    %2402 = vmatpush1.bf16.msra.mxu0 0
    %2403 = vmatprep.subr.bf16.mxu0 0
    %2404 = vmatpush1.bf16.msra.mxu0 0
    %2405 = vmatprep.subr.bf16.mxu0 0
    %2406 = vmatpush1.bf16.msra.mxu0 0
    %2407 = vmatprep.subr.bf16.mxu0 0
    %2408 = vmatpush1.bf16.msra.mxu0 0
    %2409 = vmatprep.subr.bf16.mxu0 0
    %2410 = vmatpush1.bf16.msra.mxu0 0
    %2411 = vmatprep.subr.bf16.mxu0 0
    %2412 = vmatpush1.bf16.msra.mxu0 0
    %2413 = vmatprep.subr.bf16.mxu0 0
    %2414 = vmatpush1.bf16.msra.mxu0 0
    %2415 = vmatprep.subr.bf16.mxu0 0
    %2416 = vmatpush1.bf16.msra.mxu0 0
    %2417 = vmatprep.subr.bf16.mxu0 0
    %2418 = vmatpush1.bf16.msra.mxu0 0
    %2419 = vmatprep.subr.bf16.mxu0 0
    %2420 = vmatpush1.bf16.msra.mxu0 0
    %2421 = vmatprep.subr.bf16.mxu0 0
    %2422 = vmatpush1.bf16.msra.mxu0 0
    %2423 = vmatprep.mubr.bf16.mxu0 0
    %2424 = vmatmul.mubr.bf16.gmra.mrb[0].mxu0 %v2386
    %v2425 = vpop.f32.mrb[0].mxu0
    %v2426 = vadd.f32 0.0, %v2425
    %v2427 = vpop.f32.mrb[0].mxu0
    %v2428 = vpop.f32.mrb[0].mxu0
    %v2429 = vpop.f32.mrb[0].mxu0
    %2430 = vdwg.mxu0
    %2431 = vrot.lane.b32.xlu0 %v1684, 64
    %v2432 = vpop.permute.xlu0 %2431
    %v2434 = vsel %vm333, %v2188, 0
    %v2437 = vsel %vm840, %v2432, 0
    %2439 = vmatprep.subr.bf16.mxu0 0
    %2440 = vmatpush1.bf16.msra.mxu0 %v2437
    %2441 = vmatprep.subr.bf16.mxu0 0
    %2442 = vmatpush1.bf16.msra.mxu0 0
    %2443 = vmatprep.subr.bf16.mxu0 0
    %2444 = vmatpush1.bf16.msra.mxu0 0
    %2445 = vmatprep.subr.bf16.mxu0 0
    %2446 = vmatpush1.bf16.msra.mxu0 0
    %2447 = vmatprep.subr.bf16.mxu0 0
    %2448 = vmatpush1.bf16.msra.mxu0 0
    %2449 = vmatprep.subr.bf16.mxu0 0
    %2450 = vmatpush1.bf16.msra.mxu0 0
    %2451 = vmatprep.subr.bf16.mxu0 0
    %2452 = vmatpush1.bf16.msra.mxu0 0
    %2453 = vmatprep.subr.bf16.mxu0 0
    %2454 = vmatpush1.bf16.msra.mxu0 0
    %2455 = vmatprep.subr.bf16.mxu0 0
    %2456 = vmatpush1.bf16.msra.mxu0 0
    %2457 = vmatprep.subr.bf16.mxu0 0
    %2458 = vmatpush1.bf16.msra.mxu0 0
    %2459 = vmatprep.subr.bf16.mxu0 0
    %2460 = vmatpush1.bf16.msra.mxu0 0
    %2461 = vmatprep.subr.bf16.mxu0 0
    %2462 = vmatpush1.bf16.msra.mxu0 0
    %2463 = vmatprep.subr.bf16.mxu0 0
    %2464 = vmatpush1.bf16.msra.mxu0 0
    %2465 = vmatprep.subr.bf16.mxu0 0
    %2466 = vmatpush1.bf16.msra.mxu0 0
    %2467 = vmatprep.subr.bf16.mxu0 0
    %2468 = vmatpush1.bf16.msra.mxu0 0
    %2469 = vmatprep.subr.bf16.mxu0 0
    %2470 = vmatpush1.bf16.msra.mxu0 0
    %2471 = vmatprep.mubr.bf16.mxu0 0
    %2472 = vmatmul.mubr.bf16.gmra.mrb[0].mxu0 %v2434
    %v2473 = vpop.f32.mrb[0].mxu0
    %v2474 = vadd.f32 0.0, %v2473
    %v2475 = vpop.f32.mrb[0].mxu0
    %v2476 = vpop.f32.mrb[0].mxu0
    %v2477 = vpop.f32.mrb[0].mxu0
    %2478 = vdwg.mxu0
    %2479 = vrot.lane.b32.xlu0 %v1685, 64
    %v2480 = vpop.permute.xlu0 %2479
    %v2482 = vsel %vm333, %v2189, 0
    %v2485 = vsel %vm840, %v2480, 0
    %2487 = vmatprep.subr.bf16.mxu0 0
    %2488 = vmatpush1.bf16.msra.mxu0 %v2485
    %2489 = vmatprep.subr.bf16.mxu0 0
    %2490 = vmatpush1.bf16.msra.mxu0 0
    %2491 = vmatprep.subr.bf16.mxu0 0
    %2492 = vmatpush1.bf16.msra.mxu0 0
    %2493 = vmatprep.subr.bf16.mxu0 0
    %2494 = vmatpush1.bf16.msra.mxu0 0
    %2495 = vmatprep.subr.bf16.mxu0 0
    %2496 = vmatpush1.bf16.msra.mxu0 0
    %2497 = vmatprep.subr.bf16.mxu0 0
    %2498 = vmatpush1.bf16.msra.mxu0 0
    %2499 = vmatprep.subr.bf16.mxu0 0
    %2500 = vmatpush1.bf16.msra.mxu0 0
    %2501 = vmatprep.subr.bf16.mxu0 0
    %2502 = vmatpush1.bf16.msra.mxu0 0
    %2503 = vmatprep.subr.bf16.mxu0 0
    %2504 = vmatpush1.bf16.msra.mxu0 0
    %2505 = vmatprep.subr.bf16.mxu0 0
    %2506 = vmatpush1.bf16.msra.mxu0 0
    %2507 = vmatprep.subr.bf16.mxu0 0
    %2508 = vmatpush1.bf16.msra.mxu0 0
    %2509 = vmatprep.subr.bf16.mxu0 0
    %2510 = vmatpush1.bf16.msra.mxu0 0
    %2511 = vmatprep.subr.bf16.mxu0 0
    %2512 = vmatpush1.bf16.msra.mxu0 0
    %2513 = vmatprep.subr.bf16.mxu0 0
    %2514 = vmatpush1.bf16.msra.mxu0 0
    %2515 = vmatprep.subr.bf16.mxu0 0
    %2516 = vmatpush1.bf16.msra.mxu0 0
    %2517 = vmatprep.subr.bf16.mxu0 0
    %2518 = vmatpush1.bf16.msra.mxu0 0
    %2519 = vmatprep.mubr.bf16.mxu0 0
    %2520 = vmatmul.mubr.bf16.gmra.mrb[0].mxu0 %v2482
    %v2521 = vpop.f32.mrb[0].mxu0
    %v2522 = vadd.f32 0.0, %v2521
    %v2523 = vpop.f32.mrb[0].mxu0
    %v2524 = vpop.f32.mrb[0].mxu0
    %v2525 = vpop.f32.mrb[0].mxu0
    %2526 = vdwg.mxu0
    %2527 = vrot.lane.b32.xlu0 %v1686, 64
    %v2528 = vpop.permute.xlu0 %2527
    %v2530 = vsel %vm333, %v2190, 0
    %v2533 = vsel %vm840, %v2528, 0
    %2535 = vmatprep.subr.bf16.mxu0 0
    %2536 = vmatpush1.bf16.msra.mxu0 %v2533
    %2537 = vmatprep.subr.bf16.mxu0 0
    %2538 = vmatpush1.bf16.msra.mxu0 0
    %2539 = vmatprep.subr.bf16.mxu0 0
    %2540 = vmatpush1.bf16.msra.mxu0 0
    %2541 = vmatprep.subr.bf16.mxu0 0
    %2542 = vmatpush1.bf16.msra.mxu0 0
    %2543 = vmatprep.subr.bf16.mxu0 0
    %2544 = vmatpush1.bf16.msra.mxu0 0
    %2545 = vmatprep.subr.bf16.mxu0 0
    %2546 = vmatpush1.bf16.msra.mxu0 0
    %2547 = vmatprep.subr.bf16.mxu0 0
    %2548 = vmatpush1.bf16.msra.mxu0 0
    %2549 = vmatprep.subr.bf16.mxu0 0
    %2550 = vmatpush1.bf16.msra.mxu0 0
    %2551 = vmatprep.subr.bf16.mxu0 0
    %2552 = vmatpush1.bf16.msra.mxu0 0
    %2553 = vmatprep.subr.bf16.mxu0 0
    %2554 = vmatpush1.bf16.msra.mxu0 0
    %2555 = vmatprep.subr.bf16.mxu0 0
    %2556 = vmatpush1.bf16.msra.mxu0 0
    %2557 = vmatprep.subr.bf16.mxu0 0
    %2558 = vmatpush1.bf16.msra.mxu0 0
    %2559 = vmatprep.subr.bf16.mxu0 0
    %2560 = vmatpush1.bf16.msra.mxu0 0
    %2561 = vmatprep.subr.bf16.mxu0 0
    %2562 = vmatpush1.bf16.msra.mxu0 0
    %2563 = vmatprep.subr.bf16.mxu0 0
    %2564 = vmatpush1.bf16.msra.mxu0 0
    %2565 = vmatprep.subr.bf16.mxu0 0
    %2566 = vmatpush1.bf16.msra.mxu0 0
    %2567 = vmatprep.mubr.bf16.mxu0 0
    %2568 = vmatmul.mubr.bf16.gmra.mrb[0].mxu0 %v2530
    %v2569 = vpop.f32.mrb[0].mxu0
    %v2570 = vadd.f32 0.0, %v2569
    %v2571 = vpop.f32.mrb[0].mxu0
    %v2572 = vpop.f32.mrb[0].mxu0
    %v2573 = vpop.f32.mrb[0].mxu0
    %2574 = vdwg.mxu0
    %2577 = vrot.lane.b32.xlu0 %v2330, 8
    %v2578 = vpop.permute.xlu0 %2577
    %2579 = vrot.lane.b32.xlu0 %v2378, 8
    %v2580 = vpop.permute.xlu0 %2579
    %2585 = vrot.lane.b32.xlu0 %v2426, 16
    %v2586 = vpop.permute.xlu0 %2585
    %2587 = vrot.lane.b32.xlu0 %v2474, 16
    %v2588 = vpop.permute.xlu0 %2587
    %2593 = vrot.lane.b32.xlu0 %v2522, 24
    %v2594 = vpop.permute.xlu0 %2593
    %2595 = vrot.lane.b32.xlu0 %v2570, 24
    %v2596 = vpop.permute.xlu0 %2595
    %v2599 = vsel %vm333, %v2234, %v2578
    %v2600 = vsel %vm333, %v2282, %v2580
    %v2601 = vsel %vm1246, %v2599, %v2586
    %v2602 = vsel %vm1246, %v2600, %v2588
    %v2603 = vsel %vm1249, %v2601, %v2594
    %v2604 = vsel %vm1249, %v2602, %v2596
    %s2605 = scalar_lea.vmem %s6, 16
    %v2606 = vld [vmem:[%s2605] sm:$0xf]
    %v2607 = vld [vmem:[%s2605 + $0x4] sm:$0xf]
    %v2608 = vld [vmem:[%s2605 + $0x8] sm:$0xf]
    %v2609 = vld [vmem:[%s2605 + $0xc] sm:$0xf]
    %v2610 = vpack.c.bf16 %v2604, %v2603
    %v2615 = vunpack.c.l.b16 %v2606
    %v2616 = vunpack.c.l.b16 %v2607
    %v2617 = vunpack.c.l.b16 %v2608
    %v2618 = vunpack.c.l.b16 %v2609
    %v2619 = vpack.c.b16 %v2616, %v2615
    %v2620 = vpack.c.b16 %v2618, %v2617
    %v2624 = vsel %vm190, %v2610, 0
    %2626 = vmatprep.subr.bf16.mxu0 0
    %2627 = vmatpush1.bf16.msra.mxu0 %v2619
    %2628 = vmatprep.subr.bf16.mxu0 0
    %2629 = vmatpush1.bf16.msra.mxu0 %v2620
    %2630 = vmatprep.subr.bf16.mxu0 0
    %2631 = vmatpush1.bf16.msra.mxu0 0
    %2632 = vmatprep.subr.bf16.mxu0 0
    %2633 = vmatpush1.bf16.msra.mxu0 0
    %2634 = vmatprep.subr.bf16.mxu0 0
    %2635 = vmatpush1.bf16.msra.mxu0 0
    %2636 = vmatprep.subr.bf16.mxu0 0
    %2637 = vmatpush1.bf16.msra.mxu0 0
    %2638 = vmatprep.subr.bf16.mxu0 0
    %2639 = vmatpush1.bf16.msra.mxu0 0
    %2640 = vmatprep.subr.bf16.mxu0 0
    %2641 = vmatpush1.bf16.msra.mxu0 0
    %2642 = vmatprep.subr.bf16.mxu0 0
    %2643 = vmatpush1.bf16.msra.mxu0 0
    %2644 = vmatprep.subr.bf16.mxu0 0
    %2645 = vmatpush1.bf16.msra.mxu0 0
    %2646 = vmatprep.subr.bf16.mxu0 0
    %2647 = vmatpush1.bf16.msra.mxu0 0
    %2648 = vmatprep.subr.bf16.mxu0 0
    %2649 = vmatpush1.bf16.msra.mxu0 0
    %2650 = vmatprep.subr.bf16.mxu0 0
    %2651 = vmatpush1.bf16.msra.mxu0 0
    %2652 = vmatprep.subr.bf16.mxu0 0
    %2653 = vmatpush1.bf16.msra.mxu0 0
    %2654 = vmatprep.subr.bf16.mxu0 0
    %2655 = vmatpush1.bf16.msra.mxu0 0
    %2656 = vmatprep.subr.bf16.mxu0 0
    %2657 = vmatpush1.bf16.msra.mxu0 0
    %2658 = vmatprep.mubr.bf16.mxu0 0
    %2659 = vmatmul.mubr.bf16.gmra.mrb[0].mxu0 %v2624
    %v2660 = vpop.f32.mrb[0].mxu0
    %v2661 = vadd.f32 0.0, %v2660
    %v2662 = vpop.f32.mrb[0].mxu0
    %v2663 = vpop.f32.mrb[0].mxu0
    %v2664 = vadd.f32 0.0, %v2663
    %v2665 = vpop.f32.mrb[0].mxu0
    %2666 = vdwg.mxu0
    %v2667 = vadd.f32 %v1541, %v2661
    %v2668 = vadd.f32 %v1542, %v2664
    %s2669 = scalar_lea.vmem %s7, 1
    %v2670 = vld [vmem:[%s2669] sm:$0x1]
    %v2672 = vlaneseq
    %v2673 = vshrl.u32 %v2672, 7
    %v2674 = vsub.s32 0, %v2673
    %v2675 = vrot.slane %v2670, %v2674
    %v2677 = vadd.f32 %v2667, %v2675
    %v2678 = vadd.f32 %v2668, %v2675
    %s2679 = scalar_lea.vmem %s8, 1
    %v2680 = vld [vmem:[%s2679] sm:$0x1]
    %s2681 = scalar_lea.vmem %s9, 1
    %v2682 = vld [vmem:[%s2681] sm:$0x1]
    %v2683 = vsel %vm190, %v2677, 0.0
    %2684 = vadd.xlane.f32.xlu0 %v2683
    %v2685 = vpop.xlane.xlu0 %2684
    %v2686 = vsel %vm190, %v2678, 0.0
    %2687 = vadd.xlane.f32.xlu0 %v2686
    %v2688 = vpop.xlane.xlu0 %2687
    %v2689 = vmul.f32 %v2685, %v197
    %v2690 = vmul.f32 %v2688, %v197
    %v2691 = vsub.f32 %v2677, %v2689
    %v2692 = vsub.f32 %v2678, %v2690
    %v2693 = vmul.f32 %v2691, %v2691
    %v2694 = vmul.f32 %v2692, %v2692
    %v2695 = vsel %vm190, %v2693, 0.0
    %2696 = vadd.xlane.f32.xlu0 %v2695
    %v2697 = vpop.xlane.xlu0 %2696
    %v2698 = vsel %vm190, %v2694, 0.0
    %2699 = vadd.xlane.f32.xlu0 %v2698
    %v2700 = vpop.xlane.xlu0 %2699
    %v2701 = vmul.f32 %v2697, %v197
    %v2702 = vmul.f32 %v2700, %v197
    %v2703 = vadd.f32 %v2701, 1e-05
    %v2704 = vadd.f32 %v2702, 1e-05
    %v2705 = vrsqrt.pop %v2703
    %v2706 = vrsqrt.pop %v2704
    %v2707 = vmul.f32 %v2691, %v2705
    %v2708 = vmul.f32 %v2692, %v2706
    %v2710 = vlaneseq
    %v2711 = vshrl.u32 %v2710, 7
    %v2712 = vsub.s32 0, %v2711
    %v2713 = vrot.slane %v2680, %v2712
    %v2715 = vmul.f32 %v2707, %v2713
    %v2716 = vmul.f32 %v2708, %v2713
    %v2718 = vlaneseq
    %v2719 = vshrl.u32 %v2718, 7
    %v2720 = vsub.s32 0, %v2719
    %v2721 = vrot.slane %v2682, %v2720
    %v2723 = vadd.f32 %v2715, %v2721
    %v2724 = vadd.f32 %v2716, %v2721
    %s2725 = scalar_lea.vmem %s10, 16
    %v2726 = vld [vmem:[%s2725] sm:$0xf]
    %v2727 = vld [vmem:[%s2725 + $0x4] sm:$0xf]
    %v2728 = vld [vmem:[%s2725 + $0x8] sm:$0xf]
    %v2729 = vld [vmem:[%s2725 + $0xc] sm:$0xf]
    %v2730 = vpack.c.bf16 %v2724, %v2723
    %s2731 = scalar_lea.vmem %s11, 1
    %v2732 = vld [vmem:[%s2731] sm:$0x1]
    %v2734 = vlaneseq
    %v2735 = vshrl.u32 %v2734, 7
    %v2736 = vsub.s32 0, %v2735
    %v2737 = vrot.slane %v2732, %v2736
    %v2743 = vunpack.c.l.b16 %v2726
    %v2744 = vunpack.c.l.b16 %v2727
    %v2745 = vunpack.c.l.b16 %v2728
    %v2746 = vunpack.c.l.b16 %v2729
    %v2747 = vpack.c.b16 %v2744, %v2743
    %v2748 = vpack.c.b16 %v2746, %v2745
    %v2752 = vsel %vm190, %v2730, 0
    %2754 = vmatprep.subr.bf16.mxu0 0
    %2755 = vmatpush1.bf16.msra.mxu0 %v2747
    %2756 = vmatprep.subr.bf16.mxu0 0
    %2757 = vmatpush1.bf16.msra.mxu0 %v2748
    %2758 = vmatprep.subr.bf16.mxu0 0
    %2759 = vmatpush1.bf16.msra.mxu0 0
    %2760 = vmatprep.subr.bf16.mxu0 0
    %2761 = vmatpush1.bf16.msra.mxu0 0
    %2762 = vmatprep.subr.bf16.mxu0 0
    %2763 = vmatpush1.bf16.msra.mxu0 0
    %2764 = vmatprep.subr.bf16.mxu0 0
    %2765 = vmatpush1.bf16.msra.mxu0 0
    %2766 = vmatprep.subr.bf16.mxu0 0
    %2767 = vmatpush1.bf16.msra.mxu0 0
    %2768 = vmatprep.subr.bf16.mxu0 0
    %2769 = vmatpush1.bf16.msra.mxu0 0
    %2770 = vmatprep.subr.bf16.mxu0 0
    %2771 = vmatpush1.bf16.msra.mxu0 0
    %2772 = vmatprep.subr.bf16.mxu0 0
    %2773 = vmatpush1.bf16.msra.mxu0 0
    %2774 = vmatprep.subr.bf16.mxu0 0
    %2775 = vmatpush1.bf16.msra.mxu0 0
    %2776 = vmatprep.subr.bf16.mxu0 0
    %2777 = vmatpush1.bf16.msra.mxu0 0
    %2778 = vmatprep.subr.bf16.mxu0 0
    %2779 = vmatpush1.bf16.msra.mxu0 0
    %2780 = vmatprep.subr.bf16.mxu0 0
    %2781 = vmatpush1.bf16.msra.mxu0 0
    %2782 = vmatprep.subr.bf16.mxu0 0
    %2783 = vmatpush1.bf16.msra.mxu0 0
    %2784 = vmatprep.subr.bf16.mxu0 0
    %2785 = vmatpush1.bf16.msra.mxu0 0
    %2786 = vmatprep.mubr.bf16.mxu0 0
    %2787 = vmatmul.mubr.bf16.gmra.mrb[0].mxu0 %v2752
    %v2788 = vpop.f32.mrb[0].mxu0
    %v2789 = vadd.f32 %v2737, %v2788
    %v2790 = vpop.f32.mrb[0].mxu0
    %v2791 = vpop.f32.mrb[0].mxu0
    %v2792 = vadd.f32 %v2737, %v2791
    %v2793 = vpop.f32.mrb[0].mxu0
    %2794 = vdwg.mxu0
    %v2795 = vmul.f32 %v2789, 0.5
    %v2796 = vmul.f32 %v2792, 0.5
    %v2797 = vmul.f32 %v2789, 0.044715
    %v2798 = vmul.f32 %v2792, 0.044715
    %v2799 = vmul.f32 %v2797, %v2789
    %v2800 = vmul.f32 %v2798, %v2792
    %v2801 = vmul.f32 %v2799, %v2789
    %v2802 = vmul.f32 %v2800, %v2792
    %v2803 = vadd.f32 %v2789, %v2801
    %v2804 = vadd.f32 %v2792, %v2802
    %v2805 = vmul.f32 %v2803, 0.7978846
    %v2806 = vmul.f32 %v2804, 0.7978846
    %v2807 = vtanh.pop %v2805
    %v2808 = vtanh.pop %v2806
    %v2809 = vadd.f32 %v2807, 1.0
    %v2810 = vadd.f32 %v2808, 1.0
    %v2811 = vmul.f32 %v2795, %v2809
    %v2812 = vmul.f32 %v2796, %v2810
    %s2813 = scalar_lea.vmem %s12, 32
    %v2814 = vld [vmem:[%s2813] sm:$0xf]
    %v2815 = vld [vmem:[%s2813 + $0x4] sm:$0xf]
    %v2816 = vld [vmem:[%s2813 + $0x8] sm:$0xf]
    %v2817 = vld [vmem:[%s2813 + $0xc] sm:$0xf]
    %v2818 = vld [vmem:[%s2813 + $0x10] sm:$0xf]
    %v2819 = vld [vmem:[%s2813 + $0x14] sm:$0xf]
    %v2820 = vld [vmem:[%s2813 + $0x18] sm:$0xf]
    %v2821 = vld [vmem:[%s2813 + $0x1c] sm:$0xf]
    %v2822 = vpack.c.bf16 %v2812, %v2811
    %v2831 = vunpack.c.l.b16 %v2814
    %v2832 = vunpack.c.l.b16 %v2815
    %v2833 = vunpack.c.l.b16 %v2816
    %v2834 = vunpack.c.l.b16 %v2817
    %v2835 = vunpack.c.l.b16 %v2818
    %v2836 = vunpack.c.l.b16 %v2819
    %v2837 = vunpack.c.l.b16 %v2820
    %v2838 = vunpack.c.l.b16 %v2821
    %v2839 = vpack.c.b16 %v2832, %v2831
    %v2840 = vpack.c.b16 %v2834, %v2833
    %v2841 = vpack.c.b16 %v2836, %v2835
    %v2842 = vpack.c.b16 %v2838, %v2837
    %v2848 = vsel %vm1487, %v2822, 0
    %2850 = vmatprep.subr.bf16.mxu0 0
    %2851 = vmatpush1.bf16.msra.mxu0 %v2839
    %2852 = vmatprep.subr.bf16.mxu0 0
    %2853 = vmatpush1.bf16.msra.mxu0 %v2840
    %2854 = vmatprep.subr.bf16.mxu0 0
    %2855 = vmatpush1.bf16.msra.mxu0 %v2841
    %2856 = vmatprep.subr.bf16.mxu0 0
    %2857 = vmatpush1.bf16.msra.mxu0 %v2842
    %2858 = vmatprep.subr.bf16.mxu0 0
    %2859 = vmatpush1.bf16.msra.mxu0 0
    %2860 = vmatprep.subr.bf16.mxu0 0
    %2861 = vmatpush1.bf16.msra.mxu0 0
    %2862 = vmatprep.subr.bf16.mxu0 0
    %2863 = vmatpush1.bf16.msra.mxu0 0
    %2864 = vmatprep.subr.bf16.mxu0 0
    %2865 = vmatpush1.bf16.msra.mxu0 0
    %2866 = vmatprep.subr.bf16.mxu0 0
    %2867 = vmatpush1.bf16.msra.mxu0 0
    %2868 = vmatprep.subr.bf16.mxu0 0
    %2869 = vmatpush1.bf16.msra.mxu0 0
    %2870 = vmatprep.subr.bf16.mxu0 0
    %2871 = vmatpush1.bf16.msra.mxu0 0
    %2872 = vmatprep.subr.bf16.mxu0 0
    %2873 = vmatpush1.bf16.msra.mxu0 0
    %2874 = vmatprep.subr.bf16.mxu0 0
    %2875 = vmatpush1.bf16.msra.mxu0 0
    %2876 = vmatprep.subr.bf16.mxu0 0
    %2877 = vmatpush1.bf16.msra.mxu0 0
    %2878 = vmatprep.subr.bf16.mxu0 0
    %2879 = vmatpush1.bf16.msra.mxu0 0
    %2880 = vmatprep.subr.bf16.mxu0 0
    %2881 = vmatpush1.bf16.msra.mxu0 0
    %2882 = vmatprep.mubr.bf16.mxu0 0
    %2883 = vmatmul.mubr.bf16.gmra.mrb[0].mxu0 %v2848
    %v2884 = vpop.f32.mrb[0].mxu0
    %v2885 = vadd.f32 0.0, %v2884
    %v2886 = vpop.f32.mrb[0].mxu0
    %v2887 = vpop.f32.mrb[0].mxu0
    %v2888 = vadd.f32 0.0, %v2887
    %v2889 = vpop.f32.mrb[0].mxu0
    %2890 = vdwg.mxu0
    %v2891 = vadd.f32 %v2677, %v2885
    %v2892 = vadd.f32 %v2678, %v2888
    %s2893 = scalar_lea.vmem %s13, 1
    %v2894 = vld [vmem:[%s2893] sm:$0x1]
    %v2896 = vlaneseq
    %v2897 = vshrl.u32 %v2896, 7
    %v2898 = vsub.s32 0, %v2897
    %v2899 = vrot.slane %v2894, %v2898
    %v2901 = vadd.f32 %v2891, %v2899
    %v2902 = vadd.f32 %v2892, %v2899
    %v2903 = vld [vmem:[%s14] sm:$0x1]
    %v2904 = vld [vmem:[%s15] sm:$0x1]
    %v2905 = vsel %vm190, %v2901, 0.0
    %2906 = vadd.xlane.f32.xlu0 %v2905
    %v2907 = vpop.xlane.xlu0 %2906
    %v2908 = vsel %vm190, %v2902, 0.0
    %2909 = vadd.xlane.f32.xlu0 %v2908
    %v2910 = vpop.xlane.xlu0 %2909
    %v2911 = vmul.f32 %v2907, %v197
    %v2912 = vmul.f32 %v2910, %v197
    %v2913 = vsub.f32 %v2901, %v2911
    %v2914 = vsub.f32 %v2902, %v2912
    %v2915 = vmul.f32 %v2913, %v2913
    %v2916 = vmul.f32 %v2914, %v2914
    %v2917 = vsel %vm190, %v2915, 0.0
    %2918 = vadd.xlane.f32.xlu0 %v2917
    %v2919 = vpop.xlane.xlu0 %2918
    %v2920 = vsel %vm190, %v2916, 0.0
    %2921 = vadd.xlane.f32.xlu0 %v2920
    %v2922 = vpop.xlane.xlu0 %2921
    %v2923 = vmul.f32 %v2919, %v197
    %v2924 = vmul.f32 %v2922, %v197
    %v2925 = vadd.f32 %v2923, 1e-05
    %v2926 = vadd.f32 %v2924, 1e-05
    %v2927 = vrsqrt.pop %v2925
    %v2928 = vrsqrt.pop %v2926
    %v2929 = vmul.f32 %v2913, %v2927
    %v2930 = vmul.f32 %v2914, %v2928
    %v2932 = vlaneseq
    %v2933 = vshrl.u32 %v2932, 7
    %v2934 = vsub.s32 0, %v2933
    %v2935 = vrot.slane %v2903, %v2934
    %v2937 = vmul.f32 %v2929, %v2935
    %v2938 = vmul.f32 %v2930, %v2935
    %v2940 = vlaneseq
    %v2941 = vshrl.u32 %v2940, 7
    %v2942 = vsub.s32 0, %v2941
    %v2943 = vrot.slane %v2904, %v2942
    %v2945 = vadd.f32 %v2937, %v2943
    %v2946 = vadd.f32 %v2938, %v2943
    %v2947 = vlaneseq
    %v2948 = vshrl.u32 %v2947, 7
    %v2949 = vsub.s32 0, %v2948
    %v2950 = vrot.slane %v152, %v2949
    %2952 = vbcast.lane.b32.xlu0 %v2950, 256
    %v2953 = vpop.permute.xlu0 %2952
    %v2954 = vlaneseq
    %v2955 = vshrl.u32 %v2954, 7
    %v2956 = vsub.s32 1, %v2955
    %v2957 = vrot.slane %v152, %v2956
    %2959 = vbcast.lane.b32.xlu0 %v2957, 256
    %v2960 = vpop.permute.xlu0 %2959
    %v2961 = vmul.f32 %v2945, %v2953
    %v2962 = vmul.f32 %v2946, %v2960
    %v2963 = vsel %vm190, %v2961, 0.0
    %v2964 = vrot.slane %v2963, 4
    %v2965 = vadd.f32 %v2963, %v2964
    %v2966 = vrot.slane %v2965, 2
    %v2967 = vadd.f32 %v2965, %v2966
    %v2968 = vrot.slane %v2967, 1
    %v2969 = vadd.f32 %v2967, %v2968
    %v2970 = vsel %vm190, %v2962, 0.0
    %v2971 = vrot.slane %v2970, 4
    %v2972 = vadd.f32 %v2970, %v2971
    %v2973 = vrot.slane %v2972, 2
    %v2974 = vadd.f32 %v2972, %v2973
    %v2975 = vrot.slane %v2974, 1
    %v2976 = vadd.f32 %v2974, %v2975
    %vm2977 = vcmask 58368
    %v2978 = vsel %vm2977, %v152, 0.0
    %2979 = vadd.xlane.f32.xlu0 %v2978
    %v2980 = vpop.xlane.xlu0 %2979
    %v2981 = vmax.f32 %v2980, 1.0
    %v2982 = vrcp.pop %v2981
    %v2984 = vrot.slane %v2982, 1
    %v2987 = vmul.f32 %v2969, %v2982
    %v2988 = vmul.f32 %v2976, %v2984
    %v2991 = vrot.slane %v2988, 7
    %vm2992 = vcmask 1041409
    %v2993 = vsel %vm2992, %v2991, %v2987
    %vm2995 = vcmask 254976
    %2996 = vst.msk [vmem:[#allocation2] sm:$0x3] %vm2995, %v2993
    // Predicated region
    $region66: #{esm2_representation_lora_forward.1} parent=1 // pred_check
      _
    $region67: #{esm2_representation_lora_forward.1} parent=1 // pred_check_branch
      %2998 = sbr.rel (0) target = $region69
    $region68: #{esm2_representation_lora_forward.1} parent=1 // pred_region
      %s3000 = ssub.s32 32, 32
      %3001 = vsyncadd [#allocation3], %s3000
      %s3003 = sshll.u32 [#allocation2], 4
      %s3004 = int_to_ptr.vmem [resolvable:$true] %s3003
      %3006 = dma.vmem_to_hbm [thread:$0]  %s3004, 32, %s16, [#allocation3]
    $region69: #{esm2_representation_lora_forward.1} parent=1 // pred_fallthru
      _
    // Predicated region
    $region70: #{esm2_representation_lora_forward.1} parent=1 // pred_check
      _
    $region71: #{esm2_representation_lora_forward.1} parent=1 // pred_check_branch
      %3008 = sbr.rel (0) target = $region73
    $region72: #{esm2_representation_lora_forward.1} parent=1 // pred_region
      %3009 = dma.done [#allocation3], 32
    $region73: #{esm2_representation_lora_forward.1} parent=1 // pred_fallthru
      _
    %3010 = vsyncpa [#allocation3], 1

</llo_original>
